<compile_context>
chip_gen: v7x
topology: tpu7x:2x2x1
jax: 0.10.0
libtpu: 0.0.40
codegen_flags: <defaults>
</compile_context>

<pallas_src>
import math
import functools

import jax
import jax.numpy as jnp
from jax import lax
from jax.experimental import pallas as pl
from jax.experimental.pallas import tpu as pltpu

NEG_INF = -1e30                      # additive mask; exp() underflows to 0
VMEM_LIMIT = 48 * 1024 * 1024        # > v5e 16MiB scoped default, < v7x 64MiB


# ---------------------------------------------------------------------------
# Kernel 1: cosine + (implicit channel-concat) + conv1(1x1) + full ResBlock
# (1x1+ReLU, 3x3+ReLU via in-kernel shifted taps, 1x1, skip, ReLU), fused.
# ---------------------------------------------------------------------------
def _frontend_res_kernel(x1_ref, x2_ref, wca_ref, wcb_ref, bc_ref,
                         wr1_ref, br1_ref, wr2_ref, br2_ref, wr3_ref, br3_ref,
                         mem_ref, *, h, w):
    a = x1_ref[...]                                    # (HW, C) f32
    b = x2_ref[...]
    dot = jnp.sum(a * b, axis=-1, keepdims=True)
    na = jnp.sqrt(jnp.sum(a * a, axis=-1, keepdims=True))
    nb = jnp.sqrt(jnp.sum(b * b, axis=-1, keepdims=True))
    cos = dot / jnp.maximum(na * nb, 1e-8)

    # cat([x1,x2], ch) + cos then 1x1 conv == (x1+cos)@Wa + (x2+cos)@Wb + b
    y = (jnp.dot((a + cos).astype(jnp.bfloat16), wca_ref[...],
                 preferred_element_type=jnp.float32)
         + jnp.dot((b + cos).astype(jnp.bfloat16), wcb_ref[...],
                   preferred_element_type=jnp.float32)
         + bc_ref[...])                                # (HW, F) f32 skip input

    out1 = jnp.maximum(
        jnp.dot(y.astype(jnp.bfloat16), wr1_ref[...],
                preferred_element_type=jnp.float32) + br1_ref[...], 0.0)

    hw = h * w
    f = out1.shape[1]
    z_row = jnp.zeros((1, f), jnp.float32)
    z_img_row = jnp.zeros((w, f), jnp.float32)
    col = lax.broadcasted_iota(jnp.int32, (hw, 1), 0) % w

    def shift_down(x, n, zblk):      # out[m] = x[m-n], zero-filled head
        return jnp.concatenate([zblk, x[:hw - n]], axis=0)

    def shift_up(x, n, zblk):        # out[m] = x[m+n], zero-filled tail
        return jnp.concatenate([x[n:], zblk], axis=0)

    # column (dj) shifted slabs of the flat activation, zeroed at image edges
    s_left = jnp.where(col == 0, 0.0, shift_down(out1, 1, z_row))
    s_right = jnp.where(col == w - 1, 0.0, shift_up(out1, 1, z_row))
    slabs = (s_left, out1, s_right)

    # 3x3 conv as nine shifted-tap matmuls accumulated in f32
    acc = jnp.zeros((hw, f), jnp.float32)
    for dj in range(3):
        s_dj = slabs[dj]
        taps = (shift_down(s_dj, w, z_img_row), s_dj, shift_up(s_dj, w, z_img_row))
        for di in range(3):
            acc = acc + jnp.dot(taps[di].astype(jnp.bfloat16),
                                wr2_ref[di * 3 + dj],
                                preferred_element_type=jnp.float32)
    h2 = jnp.maximum(acc + br2_ref[...], 0.0)
    out = (jnp.dot(h2.astype(jnp.bfloat16), wr3_ref[...],
                   preferred_element_type=jnp.float32) + br3_ref[...] + y)
    mem_ref[0] = jnp.maximum(out, 0.0).astype(mem_ref.dtype)


def frontend_res(x1f, x2f, p, batch, hh, ww):
    assert ww % 8 == 0, "W must be a multiple of 8 for aligned sublane taps"
    c = x1f.shape[1]
    f = p["res_w1"].shape[1]
    hw = hh * ww
    row = lambda i: (i, 0)
    full2 = lambda i: (0, 0)
    full3 = lambda i: (0, 0, 0)
    return pl.pallas_call(
        functools.partial(_frontend_res_kernel, h=hh, w=ww),
        out_shape=jax.ShapeDtypeStruct((batch, hw, f), jnp.bfloat16),
        grid=(batch,),
        in_specs=[pl.BlockSpec((hw, c), row),
                  pl.BlockSpec((hw, c), row),
                  pl.BlockSpec((c, f), full2),
                  pl.BlockSpec((c, f), full2),
                  pl.BlockSpec((1, f), full2),
                  pl.BlockSpec((f, f), full2),
                  pl.BlockSpec((1, f), full2),
                  pl.BlockSpec((9, f, f), full3),
                  pl.BlockSpec((1, f), full2),
                  pl.BlockSpec((f, f), full2),
                  pl.BlockSpec((1, f), full2)],
        out_specs=pl.BlockSpec((1, hw, f), lambda i: (i, 0, 0)),
        compiler_params=pltpu.CompilerParams(
            dimension_semantics=("parallel",),
            vmem_limit_bytes=VMEM_LIMIT),
    )(x1f, x2f, p["conv1_wa"], p["conv1_wb"], p["conv1_b"],
      p["res_w1"], p["res_b1"], p["res_w2"], p["res_b2"],
      p["res_w3"], p["res_b3"])


# ---------------------------------------------------------------------------
# Kernel 2: the whole shared-weight transformer decoder stack, one batch
# element per grid step; weights VMEM-resident across all layers.
# ---------------------------------------------------------------------------
def _decoder_stack_kernel(tgt_ref, mem_ref, kp_ref,
                          wqkv_s_ref, bqkv_s_ref, wo_s_ref, bo_s_ref,
                          wq_c_ref, bq_c_ref, wkv_c_ref, bkv_c_ref,
                          wo_c_ref, bo_c_ref,
                          w1_ref, b1_ref, w2_ref, b2_ref,
                          ln_g_ref, ln_b_ref,
                          o_ref, *, n_head, n_layers):
    x0 = tgt_ref[0]                                    # (T, E) f32
    mem = mem_ref[0]                                   # (S, E) bf16
    kp = kp_ref[0]                                     # (1, T) additive key-pad
    t, e = x0.shape
    hd = e // n_head
    scale = 1.0 / math.sqrt(hd)

    # causal + key-padding additive bias, built in-kernel (never hits HBM)
    r_idx = lax.broadcasted_iota(jnp.int32, (t, t), 0)
    c_idx = lax.broadcasted_iota(jnp.int32, (t, t), 1)
    self_bias = jnp.where(c_idx > r_idx, NEG_INF, 0.0) + kp      # (T, T)

    def layernorm(z, idx):
        mu = jnp.mean(z, axis=-1, keepdims=True)
        d = z - mu
        var = jnp.mean(d * d, axis=-1, keepdims=True)
        return d * lax.rsqrt(var + 1e-5) * ln_g_ref[idx] + ln_b_ref[idx]

    def mha(q_pack, k_pack, v_pack, bias):
        # q_pack (T,E) f32; k_pack/v_pack (S,E) bf16. Heads split with static
        # lane slices; scores/PV are inherently per-head matmuls.
        outs = []
        for hh_ in range(n_head):
            lo, hi = hh_ * hd, (hh_ + 1) * hd
            qh = q_pack[:, lo:hi].astype(jnp.bfloat16)
            kh = k_pack[:, lo:hi]
            vh = v_pack[:, lo:hi]
            s = lax.dot_general(qh, kh, (((1,), (1,)), ((), ())),
                                preferred_element_type=jnp.float32) * scale
            if bias is not None:
                s = s + bias
            m = jnp.max(s, axis=-1, keepdims=True)
            p = jnp.exp(s - m)
            denom = jnp.sum(p, axis=-1, keepdims=True)
            o = jnp.dot(p.astype(jnp.bfloat16), vh,
                        preferred_element_type=jnp.float32)
            outs.append(o * (1.0 / denom))             # normalize after PV
        return jnp.concatenate(outs, axis=-1)          # (T, E)

    # cross-attention K/V: memory & weights constant across layers -> once,
    # as a single packed lane-dense (S,E)@(E,2E) matmul.
    kv_c = (jnp.dot(mem, wkv_c_ref[...], preferred_element_type=jnp.float32)
            + bkv_c_ref[...])                          # (S, 2E)
    k_c = kv_c[:, :e].astype(jnp.bfloat16)
    v_c = kv_c[:, e:].astype(jnp.bfloat16)

    def layer(_, x):
        x_bf = x.astype(jnp.bfloat16)
        # ---- self-attention: packed QKV, packed out-proj ----
        qkv = (jnp.dot(x_bf, wqkv_s_ref[...],
                       preferred_element_type=jnp.float32) + bqkv_s_ref[...])
        q = qkv[:, :e]
        k = qkv[:, e:2 * e].astype(jnp.bfloat16)
        v = qkv[:, 2 * e:].astype(jnp.bfloat16)
        attn = mha(q, k, v, self_bias)
        t2 = (jnp.dot(attn.astype(jnp.bfloat16), wo_s_ref[...],
                      preferred_element_type=jnp.float32) + bo_s_ref[...])
        x = layernorm(x + t2, 0)

        # ---- cross-attention (no mask in reference) ----
        q_c = (jnp.dot(x.astype(jnp.bfloat16), wq_c_ref[...],
                       preferred_element_type=jnp.float32) + bq_c_ref[...])
        attn = mha(q_c, k_c, v_c, None)
        t2 = (jnp.dot(attn.astype(jnp.bfloat16), wo_c_ref[...],
                      preferred_element_type=jnp.float32) + bo_c_ref[...])
        x = layernorm(x + t2, 1)

        # ---- feed-forward ----
        h1 = jnp.maximum(
            jnp.dot(x.astype(jnp.bfloat16), w1_ref[...],
                    preferred_element_type=jnp.float32) + b1_ref[...], 0.0)
        t2 = (jnp.dot(h1.astype(jnp.bfloat16), w2_ref[...],
                      preferred_element_type=jnp.float32) + b2_ref[...])
        return layernorm(x + t2, 2)

    x = lax.fori_loop(0, n_layers, layer, x0)          # shared-weight stack
    o_ref[0] = x.astype(o_ref.dtype)


def decoder_stack(word_embed, memory, kp, lp, *, n_head, n_layers):
    b, t, e = word_embed.shape
    s = memory.shape[1]
    blk = lambda i: (i, 0, 0)
    c2 = lambda i: (0, 0)
    c3 = lambda i: (0, 0, 0)
    return pl.pallas_call(
        functools.partial(_decoder_stack_kernel, n_head=n_head,
                          n_layers=n_layers),
        out_shape=jax.ShapeDtypeStruct((b, t, e), jnp.bfloat16),
        grid=(b,),
        in_specs=[
            pl.BlockSpec((1, t, e), blk),                 # tgt
            pl.BlockSpec((1, s, e), blk),                 # memory
            pl.BlockSpec((1, 1, t), blk),                 # key-padding bias
            pl.BlockSpec((e, 3 * e), c2),                 # self QKV W (packed)
            pl.BlockSpec((1, 3 * e), c2),
            pl.BlockSpec((e, e), c2),                     # self out W
            pl.BlockSpec((1, e), c2),
            pl.BlockSpec((e, e), c2),                     # cross Q W
            pl.BlockSpec((1, e), c2),
            pl.BlockSpec((e, 2 * e), c2),                 # cross KV W (packed)
            pl.BlockSpec((1, 2 * e), c2),
            pl.BlockSpec((e, e), c2),                     # cross out W
            pl.BlockSpec((1, e), c2),
            pl.BlockSpec((e, 2 * e), c2),                 # FFN W1
            pl.BlockSpec((1, 2 * e), c2),
            pl.BlockSpec((2 * e, e), c2),                 # FFN W2
            pl.BlockSpec((1, e), c2),
            pl.BlockSpec((3, 1, e), c3),                  # LN gammas
            pl.BlockSpec((3, 1, e), c3),                  # LN betas
        ],
        out_specs=pl.BlockSpec((1, t, e), blk),
        compiler_params=pltpu.CompilerParams(
            dimension_semantics=("parallel",),
            vmem_limit_bytes=VMEM_LIMIT),
    )(word_embed, memory, kp,
      lp["wqkv_s"], lp["bqkv_s"], lp["wo_s"], lp["bo_s"],
      lp["wq_c"], lp["bq_c"], lp["wkv_c"], lp["bkv_c"], lp["wo_c"], lp["bo_c"],
      lp["w1"], lp["b1"], lp["w2"], lp["b2"],
      lp["ln_g"], lp["ln_b"])


# ---------------------------------------------------------------------------
# Kernel 3: final vocab projection (lane-dense N-tiled linear; N pre-padded)
# ---------------------------------------------------------------------------
def _linear_kernel(x_ref, w_ref, b_ref, o_ref):
    o_ref[...] = (jnp.dot(x_ref[...], w_ref[...],
                          preferred_element_type=jnp.float32)
                  + b_ref[...]).astype(o_ref.dtype)


def linear_tiled(x, w, b):
    m, k = x.shape
    n = w.shape[1]                       # pre-padded to a multiple of 128
    assert n % 128 == 0
    tn = 512 if n % 512 == 0 else 128
    return pl.pallas_call(
        _linear_kernel,
        out_shape=jax.ShapeDtypeStruct((m, n), jnp.float32),
        grid=(n // tn,),
        in_specs=[pl.BlockSpec((m, k), lambda j: (0, 0)),
                  pl.BlockSpec((k, tn), lambda j: (0, j)),
                  pl.BlockSpec((1, tn), lambda j: (0, j))],
        out_specs=pl.BlockSpec((m, tn), lambda j: (0, j)),
        compiler_params=pltpu.CompilerParams(
            dimension_semantics=("parallel",),
            vmem_limit_bytes=VMEM_LIMIT),
    )(x, w, b)


# ---------------------------------------------------------------------------
# Forward pass (glue in plain JAX; all hot compute in the 3 kernels above)
# ---------------------------------------------------------------------------
def light_decoder_forward(params, x1, x2, encoded_captions, caption_lengths,
                          *, n_head, n_layers, word_vocab, vocab_size):
    b, c, hh, ww = x1.shape
    hw = hh * ww
    f = params["res_w1"].shape[0]

    # NCHW -> channels-last flat slabs (same spatial order as torch's view)
    x1f = x1.transpose(0, 2, 3, 1).reshape(b * hw, c)
    x2f = x2.transpose(0, 2, 3, 1).reshape(b * hw, c)

    # fused cos + concat + conv1 + whole ResBlock  ->  (B, HW, F) bf16 memory
    memory = frontend_res(x1f, x2f, params, b, hh, ww)

    t = encoded_captions.shape[1]
    word_embed = params["emb"][encoded_captions] + params["pe"][None, :t, :]
    tgt_pad = (encoded_captions == word_vocab['<NULL>']) | \
              (encoded_captions == word_vocab['<END>'])
    kp = jnp.where(tgt_pad, NEG_INF, 0.0).astype(jnp.float32).reshape(b, 1, t)

    out = decoder_stack(word_embed, memory, kp, params["layer"],
                        n_head=n_head, n_layers=n_layers)          # (B,T,F)

    pred = linear_tiled(out.reshape(b * t, f), params["fc_w"], params["fc_b"])
    pred = pred[:, :vocab_size].reshape(b, t, vocab_size)

    # TODO(synk): torch.sort(descending=True) is not guaranteed stable; this
    # stable argsort may order tied lengths differently.
    sort_ind = jnp.argsort(-caption_lengths)
    sorted_lengths = caption_lengths[sort_ind]
    encoded_sorted = encoded_captions[sort_ind]
    pred = pred[sort_ind]
    decode_lengths = sorted_lengths - 1
    return pred, encoded_sorted, decode_lengths, sort_ind


# ---------------------------------------------------------------------------
# Deterministic synthetic parameters (no checkpoint)
# ---------------------------------------------------------------------------
def make_positional_encoding(max_len, d_model):
    position = jnp.arange(max_len, dtype=jnp.float32)[:, None]
    div_term = jnp.exp(jnp.arange(0, d_model, 2, dtype=jnp.float32)
                       * (-math.log(10000.0) / d_model))
    pe = jnp.zeros((max_len, d_model), jnp.float32)
    pe = pe.at[:, 0::2].set(jnp.sin(position * div_term))
    pe = pe.at[:, 1::2].set(jnp.cos(position * div_term))
    return pe


def init_params(key, encoder_dim, feature_dim, vocab_size, max_len, n_head):
    f = feature_dim
    keys = iter(jax.random.split(key, 64))

    def wf(shape, fan_in):
        return jax.random.normal(next(keys), shape, jnp.float32) / math.sqrt(fan_in)

    def wb(shape, fan_in):
        return wf(shape, fan_in).astype(jnp.bfloat16)

    def zeros(shape):
        return jnp.zeros(shape, jnp.float32)

    bn_scale = 1.0 / math.sqrt(1.0 + 1e-5)   # eval-mode BatchNorm folded in

    conv1_w = wf((2 * encoder_dim, f), 2 * encoder_dim)
    conv2 = wf((f, f, 3, 3), 9 * f)          # torch layout (out, in, kh, kw)

    vpad = ((vocab_size + 127) // 128) * 128
    fc_w = wf((f, vocab_size), f)
    fc_w = jnp.pad(fc_w, ((0, 0), (0, vpad - vocab_size)))

    params = {
        "conv1_wa": conv1_w[:encoder_dim].astype(jnp.bfloat16),
        "conv1_wb": conv1_w[encoder_dim:].astype(jnp.bfloat16),
        "conv1_b": zeros((1, f)),
        "res_w1": (wf((f, f), f) * bn_scale).astype(jnp.bfloat16),
        "res_b1": zeros((1, f)),
        # tap-major (kh*3+kw), each tap (in, out)
        "res_w2": (conv2.transpose(2, 3, 1, 0).reshape(9, f, f)
                   * bn_scale).astype(jnp.bfloat16),
        "res_b2": zeros((1, f)),
        "res_w3": (wf((f, f), f) * bn_scale).astype(jnp.bfloat16),
        "res_b3": zeros((1, f)),
        "emb": wf((vocab_size, f), f),
        "pe": make_positional_encoding(max_len, f),
        "fc_w": fc_w.astype(jnp.bfloat16),
        "fc_b": zeros((1, vpad)),
    }
    params["layer"] = {
        # packed, lane-dense weight layouts (equivalent to torch's in_proj)
        "wqkv_s": wb((f, 3 * f), f), "bqkv_s": zeros((1, 3 * f)),
        "wo_s": wb((f, f), f), "bo_s": zeros((1, f)),
        "wq_c": wb((f, f), f), "bq_c": zeros((1, f)),
        "wkv_c": wb((f, 2 * f), f), "bkv_c": zeros((1, 2 * f)),
        "wo_c": wb((f, f), f), "bo_c": zeros((1, f)),
        "w1": wb((f, 2 * f), f), "b1": zeros((1, 2 * f)),
        "w2": wb((2 * f, f), 2 * f), "b2": zeros((1, f)),
        "ln_g": jnp.ones((3, 1, f), jnp.float32), "ln_b": zeros((3, 1, f)),
    }
    return params


if __name__ == "__main__":
    encoder_dim, n_layers, feature_dim, vocab_size, n_head = 4, 2, 32, 32, 4
    max_lengths = 16
    word_vocab = {"<NULL>": 0, "<START>": 1, "<END>": 2}
    batch, himg, wimg, seq = 2, 8, 8, 8

    root = jax.random.PRNGKey(0)
    k1, k2, k3, kparam = jax.random.split(root, 4)
    x1 = jax.random.normal(k1, (batch, encoder_dim, himg, wimg), jnp.float32)
    x2 = jax.random.normal(k2, (batch, encoder_dim, himg, wimg), jnp.float32)
    encoded_captions = jax.random.randint(k3, (batch, seq), 3, vocab_size,
                                          dtype=jnp.int32)
    encoded_captions = encoded_captions.at[:, 0].set(word_vocab["<START>"])
    encoded_captions = encoded_captions.at[0, seq - 1].set(word_vocab["<END>"])
    encoded_captions = encoded_captions.at[1, seq - 2].set(word_vocab["<END>"])
    encoded_captions = encoded_captions.at[1, seq - 1].set(word_vocab["<NULL>"])
    caption_lengths = jnp.array([seq, seq - 1], dtype=jnp.int32)

    params = init_params(kparam, encoder_dim, feature_dim, vocab_size,
                         max_lengths, n_head)

    fwd = jax.jit(functools.partial(light_decoder_forward, n_head=n_head,
                                    n_layers=n_layers, word_vocab=word_vocab,
                                    vocab_size=vocab_size))
    pred, enc_sorted, decode_lengths, sort_ind = fwd(
        params, x1, x2, encoded_captions, caption_lengths)

    jax.block_until_ready((pred, enc_sorted, decode_lengths, sort_ind))
    assert pred.shape == (batch, seq, vocab_size)
    assert enc_sorted.shape == (batch, seq)
    decode_lengths = decode_lengths.tolist()  # mirrors torch .tolist()
    assert bool(jnp.all(jnp.isfinite(pred)))
    print("KERNEL_OK")
</pallas_src>

<mosaic_0001>
module attributes {stable_mosaic.version = 11 : i64} {
  func.func @_frontend_res_kernel(%arg0: i32, %arg1: memref<64x4xf32, #tpu.memory_space<vmem>>, %arg2: memref<64x4xf32, #tpu.memory_space<vmem>>, %arg3: memref<4x32xbf16, #tpu.memory_space<vmem>>, %arg4: memref<4x32xbf16, #tpu.memory_space<vmem>>, %arg5: memref<1x32xf32, #tpu.memory_space<vmem>>, %arg6: memref<32x32xbf16, #tpu.memory_space<vmem>>, %arg7: memref<1x32xf32, #tpu.memory_space<vmem>>, %arg8: memref<9x32x32xbf16, #tpu.memory_space<vmem>>, %arg9: memref<1x32xf32, #tpu.memory_space<vmem>>, %arg10: memref<32x32xbf16, #tpu.memory_space<vmem>>, %arg11: memref<1x32xf32, #tpu.memory_space<vmem>>, %arg12: memref<1x64x32xbf16, #tpu.memory_space<vmem>>) attributes {dimension_semantics = [#tpu.dimension_semantics<parallel>], iteration_bounds = array<i64: 2>, scalar_prefetch = 0 : i64, scratch_operands = 0 : i64, tpu.core_type = #tpu.core_type<tc>, window_params = [{transform_indices = @transform_0, window_bounds = array<i64: 64, 4>}, {transform_indices = @transform_1, window_bounds = array<i64: 64, 4>}, {pipeline_mode = #tpu.pipeline_mode<synchronous>, transform_indices = @transform_2, window_bounds = array<i64: 4, 32>}, {pipeline_mode = #tpu.pipeline_mode<synchronous>, transform_indices = @transform_3, window_bounds = array<i64: 4, 32>}, {pipeline_mode = #tpu.pipeline_mode<synchronous>, transform_indices = @transform_4, window_bounds = array<i64: 1, 32>}, {pipeline_mode = #tpu.pipeline_mode<synchronous>, transform_indices = @transform_5, window_bounds = array<i64: 32, 32>}, {pipeline_mode = #tpu.pipeline_mode<synchronous>, transform_indices = @transform_6, window_bounds = array<i64: 1, 32>}, {pipeline_mode = #tpu.pipeline_mode<synchronous>, transform_indices = @transform_7, window_bounds = array<i64: 9, 32, 32>}, {pipeline_mode = #tpu.pipeline_mode<synchronous>, transform_indices = @transform_8, window_bounds = array<i64: 1, 32>}, {pipeline_mode = #tpu.pipeline_mode<synchronous>, transform_indices = @transform_9, window_bounds = array<i64: 32, 32>}, {pipeline_mode = #tpu.pipeline_mode<synchronous>, transform_indices = @transform_10, window_bounds = array<i64: 1, 32>}, {transform_indices = @transform_11, window_bounds = array<i64: 1, 64, 32>}]} {
    %c0 = arith.constant 0 : index
    %c0_0 = arith.constant 0 : index
    %0 = vector.load %arg1[%c0, %c0_0] : memref<64x4xf32, #tpu.memory_space<vmem>>, vector<64x4xf32>
    %c0_1 = arith.constant 0 : index
    %c0_2 = arith.constant 0 : index
    %1 = vector.load %arg2[%c0_1, %c0_2] : memref<64x4xf32, #tpu.memory_space<vmem>>, vector<64x4xf32>
    %2 = arith.mulf %0, %1 : vector<64x4xf32>
    %cst = arith.constant dense<0.000000e+00> : vector<64xf32>
    %3 = vector.multi_reduction <add>, %2, %cst [1] : vector<64x4xf32> to vector<64xf32>
    %4 = vector.shape_cast %3 : vector<64xf32> to vector<64x1xf32>
    %5 = arith.mulf %0, %0 : vector<64x4xf32>
    %cst_3 = arith.constant dense<0.000000e+00> : vector<64xf32>
    %6 = vector.multi_reduction <add>, %5, %cst_3 [1] : vector<64x4xf32> to vector<64xf32>
    %7 = vector.shape_cast %6 : vector<64xf32> to vector<64x1xf32>
    %8 = math.sqrt %7 : vector<64x1xf32>
    %9 = arith.mulf %1, %1 : vector<64x4xf32>
    %cst_4 = arith.constant dense<0.000000e+00> : vector<64xf32>
    %10 = vector.multi_reduction <add>, %9, %cst_4 [1] : vector<64x4xf32> to vector<64xf32>
    %11 = vector.shape_cast %10 : vector<64xf32> to vector<64x1xf32>
    %12 = math.sqrt %11 : vector<64x1xf32>
    %13 = arith.mulf %8, %12 : vector<64x1xf32>
    %cst_5 = arith.constant 9.99999993E-9 : f32
    %14 = vector.broadcast %cst_5 : f32 to vector<64x1xf32>
    %15 = arith.maximumf %13, %14 : vector<64x1xf32>
    %16 = arith.divf %4, %15 : vector<64x1xf32>
    %17 = vector.broadcast %16 : vector<64x1xf32> to vector<64x4xf32>
    %18 = arith.addf %0, %17 : vector<64x4xf32>
    %19 = arith.truncf %18 : vector<64x4xf32> to vector<64x4xbf16>
    %c0_6 = arith.constant 0 : index
    %c0_7 = arith.constant 0 : index
    %20 = vector.load %arg3[%c0_6, %c0_7] : memref<4x32xbf16, #tpu.memory_space<vmem>>, vector<4x32xbf16>
    %cst_8 = arith.constant dense<0.000000e+00> : vector<64x32xf32>
    %21 = tpu.matmul %19, %20, %cst_8 {dimension_numbers = #tpu.dot_dimension_numbers<[1], [0], [0], [1], [0, 0, 1, 1], [], []>} : vector<64x4xbf16>, vector<4x32xbf16>, vector<64x32xf32> -> vector<64x32xf32>
    %22 = vector.broadcast %16 : vector<64x1xf32> to vector<64x4xf32>
    %23 = arith.addf %1, %22 : vector<64x4xf32>
    %24 = arith.truncf %23 : vector<64x4xf32> to vector<64x4xbf16>
    %c0_9 = arith.constant 0 : index
    %c0_10 = arith.constant 0 : index
    %25 = vector.load %arg4[%c0_9, %c0_10] : memref<4x32xbf16, #tpu.memory_space<vmem>>, vector<4x32xbf16>
    %cst_11 = arith.constant dense<0.000000e+00> : vector<64x32xf32>
    %26 = tpu.matmul %24, %25, %cst_11 {dimension_numbers = #tpu.dot_dimension_numbers<[1], [0], [0], [1], [0, 0, 1, 1], [], []>} : vector<64x4xbf16>, vector<4x32xbf16>, vector<64x32xf32> -> vector<64x32xf32>
    %27 = arith.addf %21, %26 : vector<64x32xf32>
    %c0_12 = arith.constant 0 : index
    %c0_13 = arith.constant 0 : index
    %28 = vector.load %arg5[%c0_12, %c0_13] : memref<1x32xf32, #tpu.memory_space<vmem>>, vector<1x32xf32>
    %29 = vector.broadcast %28 : vector<1x32xf32> to vector<64x32xf32>
    %30 = arith.addf %27, %29 : vector<64x32xf32>
    %31 = arith.truncf %30 : vector<64x32xf32> to vector<64x32xbf16>
    %c0_14 = arith.constant 0 : index
    %c0_15 = arith.constant 0 : index
    %32 = vector.load %arg6[%c0_14, %c0_15] : memref<32x32xbf16, #tpu.memory_space<vmem>>, vector<32x32xbf16>
    %cst_16 = arith.constant dense<0.000000e+00> : vector<64x32xf32>
    %33 = tpu.matmul %31, %32, %cst_16 {dimension_numbers = #tpu.dot_dimension_numbers<[1], [0], [0], [1], [0, 0, 1, 1], [], []>} : vector<64x32xbf16>, vector<32x32xbf16>, vector<64x32xf32> -> vector<64x32xf32>
    %c0_17 = arith.constant 0 : index
    %c0_18 = arith.constant 0 : index
    %34 = vector.load %arg7[%c0_17, %c0_18] : memref<1x32xf32, #tpu.memory_space<vmem>>, vector<1x32xf32>
    %35 = vector.broadcast %34 : vector<1x32xf32> to vector<64x32xf32>
    %36 = arith.addf %33, %35 : vector<64x32xf32>
    %cst_19 = arith.constant 0.000000e+00 : f32
    %37 = vector.broadcast %cst_19 : f32 to vector<64x32xf32>
    %38 = arith.maximumf %36, %37 : vector<64x32xf32>
    %cst_20 = arith.constant 0.000000e+00 : f32
    %39 = vector.broadcast %cst_20 : f32 to vector<1x32xf32>
    %cst_21 = arith.constant 0.000000e+00 : f32
    %40 = vector.broadcast %cst_21 : f32 to vector<8x32xf32>
    %41 = tpu.iota {dimensions = array<i32: 0>} : vector<64x1xi32>
    %c8_i32 = arith.constant 8 : i32
    %c0_i32 = arith.constant 0 : i32
    %42 = arith.cmpi eq, %c8_i32, %c0_i32 : i32
    %c1_i32 = arith.constant 1 : i32
    %43 = arith.select %42, %c1_i32, %c8_i32 : i32
    %44 = vector.broadcast %43 : i32 to vector<64x1xi32>
    %45 = arith.remsi %41, %44 : vector<64x1xi32>
    %c0_i32_22 = arith.constant 0 : i32
    %46 = vector.broadcast %c0_i32_22 : i32 to vector<64x1xi32>
    %47 = arith.cmpi ne, %45, %46 : vector<64x1xi32>
    %c0_i32_23 = arith.constant 0 : i32
    %48 = vector.broadcast %c0_i32_23 : i32 to vector<64x1xi32>
    %49 = arith.cmpi slt, %45, %48 : vector<64x1xi32>
    %c0_i32_24 = arith.constant 0 : i32
    %50 = arith.cmpi slt, %43, %c0_i32_24 : i32
    %51 = vector.broadcast %50 : i1 to vector<64x1xi1>
    %52 = vector.broadcast %51 : vector<64x1xi1> to vector<64x1xi1>
    %53 = arith.xori %49, %52 : vector<64x1xi1>
    %54 = arith.andi %53, %47 : vector<64x1xi1>
    %55 = vector.broadcast %43 : i32 to vector<64x1xi32>
    %56 = arith.addi %45, %55 : vector<64x1xi32>
    %57 = arith.select %54, %56, %45 : vector<64x1xi1>, vector<64x1xi32>
    %c0_i32_25 = arith.constant 0 : i32
    %58 = vector.broadcast %c0_i32_25 : i32 to vector<64x1xi32>
    %59 = arith.cmpi eq, %57, %58 : vector<64x1xi32>
    %60 = vector.extract_strided_slice %38 {offsets = [0, 0], sizes = [63, 32], strides = [1, 1]} : vector<64x32xf32> to vector<63x32xf32>
    %61 = tpu.concatenate %39, %60 in 0 : vector<1x32xf32>, vector<63x32xf32> -> vector<64x32xf32>
    %cst_26 = arith.constant 0.000000e+00 : f32
    %62 = vector.shape_cast %59 : vector<64x1xi1> to vector<64x1xi1>
    %63 = vector.broadcast %62 : vector<64x1xi1> to vector<64x32xi1>
    %64 = vector.broadcast %cst_26 : f32 to vector<64x32xf32>
    %65 = arith.select %63, %64, %61 : vector<64x32xi1>, vector<64x32xf32>
    %c7_i32 = arith.constant 7 : i32
    %66 = vector.broadcast %c7_i32 : i32 to vector<64x1xi32>
    %67 = arith.cmpi eq, %57, %66 : vector<64x1xi32>
    %68 = vector.extract_strided_slice %38 {offsets = [1, 0], sizes = [63, 32], strides = [1, 1]} : vector<64x32xf32> to vector<63x32xf32>
    %69 = tpu.concatenate %68, %39 in 0 : vector<63x32xf32>, vector<1x32xf32> -> vector<64x32xf32>
    %cst_27 = arith.constant 0.000000e+00 : f32
    %70 = vector.shape_cast %67 : vector<64x1xi1> to vector<64x1xi1>
    %71 = vector.broadcast %70 : vector<64x1xi1> to vector<64x32xi1>
    %72 = vector.broadcast %cst_27 : f32 to vector<64x32xf32>
    %73 = arith.select %71, %72, %69 : vector<64x32xi1>, vector<64x32xf32>
    %cst_28 = arith.constant 0.000000e+00 : f32
    %74 = vector.broadcast %cst_28 : f32 to vector<64x32xf32>
    %75 = vector.extract_strided_slice %65 {offsets = [0, 0], sizes = [56, 32], strides = [1, 1]} : vector<64x32xf32> to vector<56x32xf32>
    %76 = tpu.concatenate %40, %75 in 0 : vector<8x32xf32>, vector<56x32xf32> -> vector<64x32xf32>
    %77 = vector.extract_strided_slice %65 {offsets = [8, 0], sizes = [56, 32], strides = [1, 1]} : vector<64x32xf32> to vector<56x32xf32>
    %78 = tpu.concatenate %77, %40 in 0 : vector<56x32xf32>, vector<8x32xf32> -> vector<64x32xf32>
    %79 = arith.truncf %76 : vector<64x32xf32> to vector<64x32xbf16>
    %c0_29 = arith.constant 0 : index
    %c0_30 = arith.constant 0 : index
    %c0_31 = arith.constant 0 : index
    %80 = vector.load %arg8[%c0_29, %c0_30, %c0_31] : memref<9x32x32xbf16, #tpu.memory_space<vmem>>, vector<1x32x32xbf16>
    %81 = vector.shape_cast %80 : vector<1x32x32xbf16> to vector<32x32xbf16>
    %cst_32 = arith.constant dense<0.000000e+00> : vector<64x32xf32>
    %82 = tpu.matmul %79, %81, %cst_32 {dimension_numbers = #tpu.dot_dimension_numbers<[1], [0], [0], [1], [0, 0, 1, 1], [], []>} : vector<64x32xbf16>, vector<32x32xbf16>, vector<64x32xf32> -> vector<64x32xf32>
    %83 = arith.addf %74, %82 : vector<64x32xf32>
    %84 = arith.truncf %65 : vector<64x32xf32> to vector<64x32xbf16>
    %c3 = arith.constant 3 : index
    %c0_33 = arith.constant 0 : index
    %c0_34 = arith.constant 0 : index
    %85 = vector.load %arg8[%c3, %c0_33, %c0_34] : memref<9x32x32xbf16, #tpu.memory_space<vmem>>, vector<1x32x32xbf16>
    %86 = vector.shape_cast %85 : vector<1x32x32xbf16> to vector<32x32xbf16>
    %cst_35 = arith.constant dense<0.000000e+00> : vector<64x32xf32>
    %87 = tpu.matmul %84, %86, %cst_35 {dimension_numbers = #tpu.dot_dimension_numbers<[1], [0], [0], [1], [0, 0, 1, 1], [], []>} : vector<64x32xbf16>, vector<32x32xbf16>, vector<64x32xf32> -> vector<64x32xf32>
    %88 = arith.addf %83, %87 : vector<64x32xf32>
    %89 = arith.truncf %78 : vector<64x32xf32> to vector<64x32xbf16>
    %c6 = arith.constant 6 : index
    %c0_36 = arith.constant 0 : index
    %c0_37 = arith.constant 0 : index
    %90 = vector.load %arg8[%c6, %c0_36, %c0_37] : memref<9x32x32xbf16, #tpu.memory_space<vmem>>, vector<1x32x32xbf16>
    %91 = vector.shape_cast %90 : vector<1x32x32xbf16> to vector<32x32xbf16>
    %cst_38 = arith.constant dense<0.000000e+00> : vector<64x32xf32>
    %92 = tpu.matmul %89, %91, %cst_38 {dimension_numbers = #tpu.dot_dimension_numbers<[1], [0], [0], [1], [0, 0, 1, 1], [], []>} : vector<64x32xbf16>, vector<32x32xbf16>, vector<64x32xf32> -> vector<64x32xf32>
    %93 = arith.addf %88, %92 : vector<64x32xf32>
    %94 = vector.extract_strided_slice %38 {offsets = [0, 0], sizes = [56, 32], strides = [1, 1]} : vector<64x32xf32> to vector<56x32xf32>
    %95 = tpu.concatenate %40, %94 in 0 : vector<8x32xf32>, vector<56x32xf32> -> vector<64x32xf32>
    %96 = vector.extract_strided_slice %38 {offsets = [8, 0], sizes = [56, 32], strides = [1, 1]} : vector<64x32xf32> to vector<56x32xf32>
    %97 = tpu.concatenate %96, %40 in 0 : vector<56x32xf32>, vector<8x32xf32> -> vector<64x32xf32>
    %98 = arith.truncf %95 : vector<64x32xf32> to vector<64x32xbf16>
    %c1 = arith.constant 1 : index
    %c0_39 = arith.constant 0 : index
    %c0_40 = arith.constant 0 : index
    %99 = vector.load %arg8[%c1, %c0_39, %c0_40] : memref<9x32x32xbf16, #tpu.memory_space<vmem>>, vector<1x32x32xbf16>
    %100 = vector.shape_cast %99 : vector<1x32x32xbf16> to vector<32x32xbf16>
    %cst_41 = arith.constant dense<0.000000e+00> : vector<64x32xf32>
    %101 = tpu.matmul %98, %100, %cst_41 {dimension_numbers = #tpu.dot_dimension_numbers<[1], [0], [0], [1], [0, 0, 1, 1], [], []>} : vector<64x32xbf16>, vector<32x32xbf16>, vector<64x32xf32> -> vector<64x32xf32>
    %102 = arith.addf %93, %101 : vector<64x32xf32>
    %103 = arith.truncf %38 : vector<64x32xf32> to vector<64x32xbf16>
    %c4 = arith.constant 4 : index
    %c0_42 = arith.constant 0 : index
    %c0_43 = arith.constant 0 : index
    %104 = vector.load %arg8[%c4, %c0_42, %c0_43] : memref<9x32x32xbf16, #tpu.memory_space<vmem>>, vector<1x32x32xbf16>
    %105 = vector.shape_cast %104 : vector<1x32x32xbf16> to vector<32x32xbf16>
    %cst_44 = arith.constant dense<0.000000e+00> : vector<64x32xf32>
    %106 = tpu.matmul %103, %105, %cst_44 {dimension_numbers = #tpu.dot_dimension_numbers<[1], [0], [0], [1], [0, 0, 1, 1], [], []>} : vector<64x32xbf16>, vector<32x32xbf16>, vector<64x32xf32> -> vector<64x32xf32>
    %107 = arith.addf %102, %106 : vector<64x32xf32>
    %108 = arith.truncf %97 : vector<64x32xf32> to vector<64x32xbf16>
    %c7 = arith.constant 7 : index
    %c0_45 = arith.constant 0 : index
    %c0_46 = arith.constant 0 : index
    %109 = vector.load %arg8[%c7, %c0_45, %c0_46] : memref<9x32x32xbf16, #tpu.memory_space<vmem>>, vector<1x32x32xbf16>
    %110 = vector.shape_cast %109 : vector<1x32x32xbf16> to vector<32x32xbf16>
    %cst_47 = arith.constant dense<0.000000e+00> : vector<64x32xf32>
    %111 = tpu.matmul %108, %110, %cst_47 {dimension_numbers = #tpu.dot_dimension_numbers<[1], [0], [0], [1], [0, 0, 1, 1], [], []>} : vector<64x32xbf16>, vector<32x32xbf16>, vector<64x32xf32> -> vector<64x32xf32>
    %112 = arith.addf %107, %111 : vector<64x32xf32>
    %113 = vector.extract_strided_slice %73 {offsets = [0, 0], sizes = [56, 32], strides = [1, 1]} : vector<64x32xf32> to vector<56x32xf32>
    %114 = tpu.concatenate %40, %113 in 0 : vector<8x32xf32>, vector<56x32xf32> -> vector<64x32xf32>
    %115 = vector.extract_strided_slice %73 {offsets = [8, 0], sizes = [56, 32], strides = [1, 1]} : vector<64x32xf32> to vector<56x32xf32>
    %116 = tpu.concatenate %115, %40 in 0 : vector<56x32xf32>, vector<8x32xf32> -> vector<64x32xf32>
    %117 = arith.truncf %114 : vector<64x32xf32> to vector<64x32xbf16>
    %c2 = arith.constant 2 : index
    %c0_48 = arith.constant 0 : index
    %c0_49 = arith.constant 0 : index
    %118 = vector.load %arg8[%c2, %c0_48, %c0_49] : memref<9x32x32xbf16, #tpu.memory_space<vmem>>, vector<1x32x32xbf16>
    %119 = vector.shape_cast %118 : vector<1x32x32xbf16> to vector<32x32xbf16>
    %cst_50 = arith.constant dense<0.000000e+00> : vector<64x32xf32>
    %120 = tpu.matmul %117, %119, %cst_50 {dimension_numbers = #tpu.dot_dimension_numbers<[1], [0], [0], [1], [0, 0, 1, 1], [], []>} : vector<64x32xbf16>, vector<32x32xbf16>, vector<64x32xf32> -> vector<64x32xf32>
    %121 = arith.addf %112, %120 : vector<64x32xf32>
    %122 = arith.truncf %73 : vector<64x32xf32> to vector<64x32xbf16>
    %c5 = arith.constant 5 : index
    %c0_51 = arith.constant 0 : index
    %c0_52 = arith.constant 0 : index
    %123 = vector.load %arg8[%c5, %c0_51, %c0_52] : memref<9x32x32xbf16, #tpu.memory_space<vmem>>, vector<1x32x32xbf16>
    %124 = vector.shape_cast %123 : vector<1x32x32xbf16> to vector<32x32xbf16>
    %cst_53 = arith.constant dense<0.000000e+00> : vector<64x32xf32>
    %125 = tpu.matmul %122, %124, %cst_53 {dimension_numbers = #tpu.dot_dimension_numbers<[1], [0], [0], [1], [0, 0, 1, 1], [], []>} : vector<64x32xbf16>, vector<32x32xbf16>, vector<64x32xf32> -> vector<64x32xf32>
    %126 = arith.addf %121, %125 : vector<64x32xf32>
    %127 = arith.truncf %116 : vector<64x32xf32> to vector<64x32xbf16>
    %c8 = arith.constant 8 : index
    %c0_54 = arith.constant 0 : index
    %c0_55 = arith.constant 0 : index
    %128 = vector.load %arg8[%c8, %c0_54, %c0_55] : memref<9x32x32xbf16, #tpu.memory_space<vmem>>, vector<1x32x32xbf16>
    %129 = vector.shape_cast %128 : vector<1x32x32xbf16> to vector<32x32xbf16>
    %cst_56 = arith.constant dense<0.000000e+00> : vector<64x32xf32>
    %130 = tpu.matmul %127, %129, %cst_56 {dimension_numbers = #tpu.dot_dimension_numbers<[1], [0], [0], [1], [0, 0, 1, 1], [], []>} : vector<64x32xbf16>, vector<32x32xbf16>, vector<64x32xf32> -> vector<64x32xf32>
    %131 = arith.addf %126, %130 : vector<64x32xf32>
    %c0_57 = arith.constant 0 : index
    %c0_58 = arith.constant 0 : index
    %132 = vector.load %arg9[%c0_57, %c0_58] : memref<1x32xf32, #tpu.memory_space<vmem>>, vector<1x32xf32>
    %133 = vector.broadcast %132 : vector<1x32xf32> to vector<64x32xf32>
    %134 = arith.addf %131, %133 : vector<64x32xf32>
    %cst_59 = arith.constant 0.000000e+00 : f32
    %135 = vector.broadcast %cst_59 : f32 to vector<64x32xf32>
    %136 = arith.maximumf %134, %135 : vector<64x32xf32>
    %137 = arith.truncf %136 : vector<64x32xf32> to vector<64x32xbf16>
    %c0_60 = arith.constant 0 : index
    %c0_61 = arith.constant 0 : index
    %138 = vector.load %arg10[%c0_60, %c0_61] : memref<32x32xbf16, #tpu.memory_space<vmem>>, vector<32x32xbf16>
    %cst_62 = arith.constant dense<0.000000e+00> : vector<64x32xf32>
    %139 = tpu.matmul %137, %138, %cst_62 {dimension_numbers = #tpu.dot_dimension_numbers<[1], [0], [0], [1], [0, 0, 1, 1], [], []>} : vector<64x32xbf16>, vector<32x32xbf16>, vector<64x32xf32> -> vector<64x32xf32>
    %c0_63 = arith.constant 0 : index
    %c0_64 = arith.constant 0 : index
    %140 = vector.load %arg11[%c0_63, %c0_64] : memref<1x32xf32, #tpu.memory_space<vmem>>, vector<1x32xf32>
    %141 = vector.broadcast %140 : vector<1x32xf32> to vector<64x32xf32>
    %142 = arith.addf %139, %141 : vector<64x32xf32>
    %143 = arith.addf %142, %30 : vector<64x32xf32>
    %cst_65 = arith.constant 0.000000e+00 : f32
    %144 = vector.broadcast %cst_65 : f32 to vector<64x32xf32>
    %145 = arith.maximumf %143, %144 : vector<64x32xf32>
    %146 = arith.truncf %145 : vector<64x32xf32> to vector<64x32xbf16>
    %c0_66 = arith.constant 0 : index
    %c0_67 = arith.constant 0 : index
    %c0_68 = arith.constant 0 : index
    %147 = vector.load %arg12[%c0_66, %c0_67, %c0_68] : memref<1x64x32xbf16, #tpu.memory_space<vmem>>, vector<1x64x32xbf16>
    %148 = vector.shape_cast %147 : vector<1x64x32xbf16> to vector<64x32xbf16>
    %149 = vector.shape_cast %146 : vector<64x32xbf16> to vector<1x64x32xbf16>
    tpu.vector_store %arg12[%c0_66, %c0_67, %c0_68], %149 {strides = array<i32>} : memref<1x64x32xbf16, #tpu.memory_space<vmem>>, vector<1x64x32xbf16>,
    return
  }
  func.func @transform_0(%arg0: i32) -> (i32, i32) {
    %c0_i32 = arith.constant 0 : i32
    %c0_i32_0 = arith.constant 0 : i32
    return %arg0, %c0_i32 : i32, i32
  }
  func.func @transform_1(%arg0: i32) -> (i32, i32) {
    %c0_i32 = arith.constant 0 : i32
    %c0_i32_0 = arith.constant 0 : i32
    return %arg0, %c0_i32 : i32, i32
  }
  func.func @transform_2(%arg0: i32) -> (i32, i32) {
    %c0_i32 = arith.constant 0 : i32
    %c0_i32_0 = arith.constant 0 : i32
    %c0_i32_1 = arith.constant 0 : i32
    return %c0_i32, %c0_i32_0 : i32, i32
  }
  func.func @transform_3(%arg0: i32) -> (i32, i32) {
    %c0_i32 = arith.constant 0 : i32
    %c0_i32_0 = arith.constant 0 : i32
    %c0_i32_1 = arith.constant 0 : i32
    return %c0_i32, %c0_i32_0 : i32, i32
  }
  func.func @transform_4(%arg0: i32) -> (i32, i32) {
    %c0_i32 = arith.constant 0 : i32
    %c0_i32_0 = arith.constant 0 : i32
    %c0_i32_1 = arith.constant 0 : i32
    return %c0_i32, %c0_i32_0 : i32, i32
  }
  func.func @transform_5(%arg0: i32) -> (i32, i32) {
    %c0_i32 = arith.constant 0 : i32
    %c0_i32_0 = arith.constant 0 : i32
    %c0_i32_1 = arith.constant 0 : i32
    return %c0_i32, %c0_i32_0 : i32, i32
  }
  func.func @transform_6(%arg0: i32) -> (i32, i32) {
    %c0_i32 = arith.constant 0 : i32
    %c0_i32_0 = arith.constant 0 : i32
    %c0_i32_1 = arith.constant 0 : i32
    return %c0_i32, %c0_i32_0 : i32, i32
  }
  func.func @transform_7(%arg0: i32) -> (i32, i32, i32) {
    %c0_i32 = arith.constant 0 : i32
    %c0_i32_0 = arith.constant 0 : i32
    %c0_i32_1 = arith.constant 0 : i32
    %c0_i32_2 = arith.constant 0 : i32
    return %c0_i32, %c0_i32_0, %c0_i32_1 : i32, i32, i32
  }
  func.func @transform_8(%arg0: i32) -> (i32, i32) {
    %c0_i32 = arith.constant 0 : i32
    %c0_i32_0 = arith.constant 0 : i32
    %c0_i32_1 = arith.constant 0 : i32
    return %c0_i32, %c0_i32_0 : i32, i32
  }
  func.func @transform_9(%arg0: i32) -> (i32, i32) {
    %c0_i32 = arith.constant 0 : i32
    %c0_i32_0 = arith.constant 0 : i32
    %c0_i32_1 = arith.constant 0 : i32
    return %c0_i32, %c0_i32_0 : i32, i32
  }
  func.func @transform_10(%arg0: i32) -> (i32, i32) {
    %c0_i32 = arith.constant 0 : i32
    %c0_i32_0 = arith.constant 0 : i32
    %c0_i32_1 = arith.constant 0 : i32
    return %c0_i32, %c0_i32_0 : i32, i32
  }
  func.func @transform_11(%arg0: i32) -> (i32, i32, i32) {
    %c0_i32 = arith.constant 0 : i32
    %c0_i32_0 = arith.constant 0 : i32
    %c0_i32_1 = arith.constant 0 : i32
    return %arg0, %c0_i32, %c0_i32_0 : i32, i32, i32
  }
}

module attributes {stable_mosaic.version = 11 : i64} {
  func.func @_linear_kernel(%arg0: i32, %arg1: memref<16x32xbf16, #tpu.memory_space<vmem>>, %arg2: memref<32x128xbf16, #tpu.memory_space<vmem>>, %arg3: memref<1x128xf32, #tpu.memory_space<vmem>>, %arg4: memref<16x128xf32, #tpu.memory_space<vmem>>) attributes {dimension_semantics = [#tpu.dimension_semantics<parallel>], iteration_bounds = array<i64: 1>, scalar_prefetch = 0 : i64, scratch_operands = 0 : i64, tpu.core_type = #tpu.core_type<tc>, window_params = [{pipeline_mode = #tpu.pipeline_mode<synchronous>, transform_indices = @transform_0, window_bounds = array<i64: 16, 32>}, {transform_indices = @transform_1, window_bounds = array<i64: 32, 128>}, {transform_indices = @transform_2, window_bounds = array<i64: 1, 128>}, {transform_indices = @transform_3, window_bounds = array<i64: 16, 128>}]} {
    %c0 = arith.constant 0 : index
    %c0_0 = arith.constant 0 : index
    %0 = vector.load %arg1[%c0, %c0_0] : memref<16x32xbf16, #tpu.memory_space<vmem>>, vector<16x32xbf16>
    %c0_1 = arith.constant 0 : index
    %c0_2 = arith.constant 0 : index
    %1 = vector.load %arg2[%c0_1, %c0_2] : memref<32x128xbf16, #tpu.memory_space<vmem>>, vector<32x128xbf16>
    %cst = arith.constant dense<0.000000e+00> : vector<16x128xf32>
    %2 = tpu.matmul %0, %1, %cst {dimension_numbers = #tpu.dot_dimension_numbers<[1], [0], [0], [1], [0, 0, 1, 1], [], []>} : vector<16x32xbf16>, vector<32x128xbf16>, vector<16x128xf32> -> vector<16x128xf32>
    %c0_3 = arith.constant 0 : index
    %c0_4 = arith.constant 0 : index
    %3 = vector.load %arg3[%c0_3, %c0_4] : memref<1x128xf32, #tpu.memory_space<vmem>>, vector<1x128xf32>
    %4 = vector.broadcast %3 : vector<1x128xf32> to vector<16x128xf32>
    %5 = arith.addf %2, %4 : vector<16x128xf32>
    %c0_5 = arith.constant 0 : index
    %c0_6 = arith.constant 0 : index
    %6 = vector.load %arg4[%c0_5, %c0_6] : memref<16x128xf32, #tpu.memory_space<vmem>>, vector<16x128xf32>
    tpu.vector_store %arg4[%c0_5, %c0_6], %5 {strides = array<i32>} : memref<16x128xf32, #tpu.memory_space<vmem>>, vector<16x128xf32>,
    return
  }
  func.func @transform_0(%arg0: i32) -> (i32, i32) {
    %c0_i32 = arith.constant 0 : i32
    %c0_i32_0 = arith.constant 0 : i32
    %c0_i32_1 = arith.constant 0 : i32
    return %c0_i32, %c0_i32_0 : i32, i32
  }
  func.func @transform_1(%arg0: i32) -> (i32, i32) {
    %c0_i32 = arith.constant 0 : i32
    %c0_i32_0 = arith.constant 0 : i32
    return %c0_i32, %arg0 : i32, i32
  }
  func.func @transform_2(%arg0: i32) -> (i32, i32) {
    %c0_i32 = arith.constant 0 : i32
    %c0_i32_0 = arith.constant 0 : i32
    return %c0_i32, %arg0 : i32, i32
  }
  func.func @transform_3(%arg0: i32) -> (i32, i32) {
    %c0_i32 = arith.constant 0 : i32
    %c0_i32_0 = arith.constant 0 : i32
    return %c0_i32, %arg0 : i32, i32
  }
}

module attributes {stable_mosaic.version = 11 : i64} {
  func.func @_decoder_stack_kernel(%arg0: i32, %arg1: memref<1x8x32xf32, #tpu.memory_space<vmem>>, %arg2: memref<1x64x32xbf16, #tpu.memory_space<vmem>>, %arg3: memref<1x1x8xf32, #tpu.memory_space<vmem>>, %arg4: memref<32x96xbf16, #tpu.memory_space<vmem>>, %arg5: memref<1x96xf32, #tpu.memory_space<vmem>>, %arg6: memref<32x32xbf16, #tpu.memory_space<vmem>>, %arg7: memref<1x32xf32, #tpu.memory_space<vmem>>, %arg8: memref<32x32xbf16, #tpu.memory_space<vmem>>, %arg9: memref<1x32xf32, #tpu.memory_space<vmem>>, %arg10: memref<32x64xbf16, #tpu.memory_space<vmem>>, %arg11: memref<1x64xf32, #tpu.memory_space<vmem>>, %arg12: memref<32x32xbf16, #tpu.memory_space<vmem>>, %arg13: memref<1x32xf32, #tpu.memory_space<vmem>>, %arg14: memref<32x64xbf16, #tpu.memory_space<vmem>>, %arg15: memref<1x64xf32, #tpu.memory_space<vmem>>, %arg16: memref<64x32xbf16, #tpu.memory_space<vmem>>, %arg17: memref<1x32xf32, #tpu.memory_space<vmem>>, %arg18: memref<3x1x32xf32, #tpu.memory_space<vmem>>, %arg19: memref<3x1x32xf32, #tpu.memory_space<vmem>>, %arg20: memref<1x8x32xbf16, #tpu.memory_space<vmem>>) attributes {dimension_semantics = [#tpu.dimension_semantics<parallel>], iteration_bounds = array<i64: 2>, scalar_prefetch = 0 : i64, scratch_operands = 0 : i64, tpu.core_type = #tpu.core_type<tc>, window_params = [{transform_indices = @transform_0, window_bounds = array<i64: 1, 8, 32>}, {transform_indices = @transform_1, window_bounds = array<i64: 1, 64, 32>}, {transform_indices = @transform_2, window_bounds = array<i64: 1, 1, 8>}, {pipeline_mode = #tpu.pipeline_mode<synchronous>, transform_indices = @transform_3, window_bounds = array<i64: 32, 96>}, {pipeline_mode = #tpu.pipeline_mode<synchronous>, transform_indices = @transform_4, window_bounds = array<i64: 1, 96>}, {pipeline_mode = #tpu.pipeline_mode<synchronous>, transform_indices = @transform_5, window_bounds = array<i64: 32, 32>}, {pipeline_mode = #tpu.pipeline_mode<synchronous>, transform_indices = @transform_6, window_bounds = array<i64: 1, 32>}, {pipeline_mode = #tpu.pipeline_mode<synchronous>, transform_indices = @transform_7, window_bounds = array<i64: 32, 32>}, {pipeline_mode = #tpu.pipeline_mode<synchronous>, transform_indices = @transform_8, window_bounds = array<i64: 1, 32>}, {pipeline_mode = #tpu.pipeline_mode<synchronous>, transform_indices = @transform_9, window_bounds = array<i64: 32, 64>}, {pipeline_mode = #tpu.pipeline_mode<synchronous>, transform_indices = @transform_10, window_bounds = array<i64: 1, 64>}, {pipeline_mode = #tpu.pipeline_mode<synchronous>, transform_indices = @transform_11, window_bounds = array<i64: 32, 32>}, {pipeline_mode = #tpu.pipeline_mode<synchronous>, transform_indices = @transform_12, window_bounds = array<i64: 1, 32>}, {pipeline_mode = #tpu.pipeline_mode<synchronous>, transform_indices = @transform_13, window_bounds = array<i64: 32, 64>}, {pipeline_mode = #tpu.pipeline_mode<synchronous>, transform_indices = @transform_14, window_bounds = array<i64: 1, 64>}, {pipeline_mode = #tpu.pipeline_mode<synchronous>, transform_indices = @transform_15, window_bounds = array<i64: 64, 32>}, {pipeline_mode = #tpu.pipeline_mode<synchronous>, transform_indices = @transform_16, window_bounds = array<i64: 1, 32>}, {pipeline_mode = #tpu.pipeline_mode<synchronous>, transform_indices = @transform_17, window_bounds = array<i64: 3, 1, 32>}, {pipeline_mode = #tpu.pipeline_mode<synchronous>, transform_indices = @transform_18, window_bounds = array<i64: 3, 1, 32>}, {transform_indices = @transform_19, window_bounds = array<i64: 1, 8, 32>}]} {
    %c0 = arith.constant 0 : index
    %c0_0 = arith.constant 0 : index
    %c0_1 = arith.constant 0 : index
    %0 = vector.load %arg1[%c0, %c0_0, %c0_1] : memref<1x8x32xf32, #tpu.memory_space<vmem>>, vector<1x8x32xf32>
    %1 = vector.shape_cast %0 : vector<1x8x32xf32> to vector<8x32xf32>
    %c0_2 = arith.constant 0 : index
    %c0_3 = arith.constant 0 : index
    %c0_4 = arith.constant 0 : index
    %2 = vector.load %arg2[%c0_2, %c0_3, %c0_4] : memref<1x64x32xbf16, #tpu.memory_space<vmem>>, vector<1x64x32xbf16>
    %3 = vector.shape_cast %2 : vector<1x64x32xbf16> to vector<64x32xbf16>
    %c0_5 = arith.constant 0 : index
    %c0_6 = arith.constant 0 : index
    %c0_7 = arith.constant 0 : index
    %4 = vector.load %arg3[%c0_5, %c0_6, %c0_7] : memref<1x1x8xf32, #tpu.memory_space<vmem>>, vector<1x1x8xf32>
    %5 = vector.shape_cast %4 : vector<1x1x8xf32> to vector<1x8xf32>
    %6 = tpu.iota {dimensions = array<i32: 0>} : vector<8x8xi32>
    %7 = tpu.iota {dimensions = array<i32: 1>} : vector<8x8xi32>
    %8 = arith.cmpi sgt, %7, %6 : vector<8x8xi32>
    %cst = arith.constant -1.000000e+30 : f32
    %cst_8 = arith.constant 0.000000e+00 : f32
    %9 = vector.broadcast %cst : f32 to vector<8x8xf32>
    %10 = vector.broadcast %cst_8 : f32 to vector<8x8xf32>
    %11 = arith.select %8, %9, %10 : vector<8x8xi1>, vector<8x8xf32>
    %12 = vector.broadcast %5 : vector<1x8xf32> to vector<8x8xf32>
    %13 = arith.addf %11, %12 : vector<8x8xf32>
    %c0_9 = arith.constant 0 : index
    %c0_10 = arith.constant 0 : index
    %14 = vector.load %arg10[%c0_9, %c0_10] : memref<32x64xbf16, #tpu.memory_space<vmem>>, vector<32x64xbf16>
    %cst_11 = arith.constant dense<0.000000e+00> : vector<64x64xf32>
    %15 = tpu.matmul %3, %14, %cst_11 {dimension_numbers = #tpu.dot_dimension_numbers<[1], [0], [0], [1], [0, 0, 1, 1], [], []>} : vector<64x32xbf16>, vector<32x64xbf16>, vector<64x64xf32> -> vector<64x64xf32>
    %c0_12 = arith.constant 0 : index
    %c0_13 = arith.constant 0 : index
    %16 = vector.load %arg11[%c0_12, %c0_13] : memref<1x64xf32, #tpu.memory_space<vmem>>, vector<1x64xf32>
    %17 = vector.broadcast %16 : vector<1x64xf32> to vector<64x64xf32>
    %18 = arith.addf %15, %17 : vector<64x64xf32>
    %19 = vector.extract_strided_slice %18 {offsets = [0, 0], sizes = [64, 32], strides = [1, 1]} : vector<64x64xf32> to vector<64x32xf32>
    %20 = arith.truncf %19 : vector<64x32xf32> to vector<64x32xbf16>
    %21 = vector.extract_strided_slice %18 {offsets = [0, 32], sizes = [64, 32], strides = [1, 1]} : vector<64x64xf32> to vector<64x32xf32>
    %22 = arith.truncf %21 : vector<64x32xf32> to vector<64x32xbf16>
    %c0_i32 = arith.constant 0 : i32
    %c2_i32 = arith.constant 2 : i32
    %23 = arith.addi %c0_i32, %c2_i32 : i32
    %c1_i32 = arith.constant 1 : i32
    %24 = scf.for %arg21 = %c0_i32 to %23 step %c1_i32 iter_args(%arg22 = %1) -> (vector<8x32xf32>)  : i32 {
      %29 = arith.truncf %arg22 : vector<8x32xf32> to vector<8x32xbf16>
      %c0_17 = arith.constant 0 : index
      %c0_18 = arith.constant 0 : index
      %30 = vector.load %arg4[%c0_17, %c0_18] : memref<32x96xbf16, #tpu.memory_space<vmem>>, vector<32x96xbf16>
      %cst_19 = arith.constant dense<0.000000e+00> : vector<8x96xf32>
      %31 = tpu.matmul %29, %30, %cst_19 {dimension_numbers = #tpu.dot_dimension_numbers<[1], [0], [0], [1], [0, 0, 1, 1], [], []>} : vector<8x32xbf16>, vector<32x96xbf16>, vector<8x96xf32> -> vector<8x96xf32>
      %c0_20 = arith.constant 0 : index
      %c0_21 = arith.constant 0 : index
      %32 = vector.load %arg5[%c0_20, %c0_21] : memref<1x96xf32, #tpu.memory_space<vmem>>, vector<1x96xf32>
      %33 = vector.broadcast %32 : vector<1x96xf32> to vector<8x96xf32>
      %34 = arith.addf %31, %33 : vector<8x96xf32>
      %35 = vector.extract_strided_slice %34 {offsets = [0, 0], sizes = [8, 32], strides = [1, 1]} : vector<8x96xf32> to vector<8x32xf32>
      %36 = vector.extract_strided_slice %34 {offsets = [0, 32], sizes = [8, 32], strides = [1, 1]} : vector<8x96xf32> to vector<8x32xf32>
      %37 = arith.truncf %36 : vector<8x32xf32> to vector<8x32xbf16>
      %38 = vector.extract_strided_slice %34 {offsets = [0, 64], sizes = [8, 32], strides = [1, 1]} : vector<8x96xf32> to vector<8x32xf32>
      %39 = arith.truncf %38 : vector<8x32xf32> to vector<8x32xbf16>
      %40 = vector.extract_strided_slice %35 {offsets = [0, 0], sizes = [8, 8], strides = [1, 1]} : vector<8x32xf32> to vector<8x8xf32>
      %41 = arith.truncf %40 : vector<8x8xf32> to vector<8x8xbf16>
      %42 = vector.extract_strided_slice %37 {offsets = [0, 0], sizes = [8, 8], strides = [1, 1]} : vector<8x32xbf16> to vector<8x8xbf16>
      %43 = vector.extract_strided_slice %39 {offsets = [0, 0], sizes = [8, 8], strides = [1, 1]} : vector<8x32xbf16> to vector<8x8xbf16>
      %cst_22 = arith.constant dense<0.000000e+00> : vector<8x8xf32>
      %44 = tpu.matmul %41, %42, %cst_22 {dimension_numbers = #tpu.dot_dimension_numbers<[1], [1], [0], [0], [0, 0, 1, 0], [], []>} : vector<8x8xbf16>, vector<8x8xbf16>, vector<8x8xf32> -> vector<8x8xf32>
      %cst_23 = arith.constant 0.353553385 : f32
      %45 = vector.broadcast %cst_23 : f32 to vector<8x8xf32>
      %46 = arith.mulf %44, %45 : vector<8x8xf32>
      %47 = arith.addf %46, %13 : vector<8x8xf32>
      %cst_24 = arith.constant dense<0xFF800000> : vector<8xf32>
      %48 = vector.multi_reduction <maximumf>, %47, %cst_24 [1] : vector<8x8xf32> to vector<8xf32>
      %49 = vector.shape_cast %48 : vector<8xf32> to vector<8x1xf32>
      %50 = vector.broadcast %49 : vector<8x1xf32> to vector<8x8xf32>
      %51 = arith.subf %47, %50 : vector<8x8xf32>
      %52 = math.exp %51 : vector<8x8xf32>
      %cst_25 = arith.constant dense<0.000000e+00> : vector<8xf32>
      %53 = vector.multi_reduction <add>, %52, %cst_25 [1] : vector<8x8xf32> to vector<8xf32>
      %54 = vector.shape_cast %53 : vector<8xf32> to vector<8x1xf32>
      %55 = arith.truncf %52 : vector<8x8xf32> to vector<8x8xbf16>
      %cst_26 = arith.constant dense<0.000000e+00> : vector<8x8xf32>
      %56 = tpu.matmul %55, %43, %cst_26 {dimension_numbers = #tpu.dot_dimension_numbers<[1], [0], [0], [1], [0, 0, 1, 1], [], []>} : vector<8x8xbf16>, vector<8x8xbf16>, vector<8x8xf32> -> vector<8x8xf32>
      %cst_27 = arith.constant 1.000000e+00 : f32
      %57 = vector.broadcast %cst_27 : f32 to vector<8x1xf32>
      %58 = arith.divf %57, %54 : vector<8x1xf32>
      %59 = vector.broadcast %58 : vector<8x1xf32> to vector<8x8xf32>
      %60 = arith.mulf %56, %59 : vector<8x8xf32>
      %61 = vector.extract_strided_slice %35 {offsets = [0, 8], sizes = [8, 8], strides = [1, 1]} : vector<8x32xf32> to vector<8x8xf32>
      %62 = arith.truncf %61 : vector<8x8xf32> to vector<8x8xbf16>
      %63 = vector.extract_strided_slice %37 {offsets = [0, 8], sizes = [8, 8], strides = [1, 1]} : vector<8x32xbf16> to vector<8x8xbf16>
      %64 = vector.extract_strided_slice %39 {offsets = [0, 8], sizes = [8, 8], strides = [1, 1]} : vector<8x32xbf16> to vector<8x8xbf16>
      %cst_28 = arith.constant dense<0.000000e+00> : vector<8x8xf32>
      %65 = tpu.matmul %62, %63, %cst_28 {dimension_numbers = #tpu.dot_dimension_numbers<[1], [1], [0], [0], [0, 0, 1, 0], [], []>} : vector<8x8xbf16>, vector<8x8xbf16>, vector<8x8xf32> -> vector<8x8xf32>
      %cst_29 = arith.constant 0.353553385 : f32
      %66 = vector.broadcast %cst_29 : f32 to vector<8x8xf32>
      %67 = arith.mulf %65, %66 : vector<8x8xf32>
      %68 = arith.addf %67, %13 : vector<8x8xf32>
      %cst_30 = arith.constant dense<0xFF800000> : vector<8xf32>
      %69 = vector.multi_reduction <maximumf>, %68, %cst_30 [1] : vector<8x8xf32> to vector<8xf32>
      %70 = vector.shape_cast %69 : vector<8xf32> to vector<8x1xf32>
      %71 = vector.broadcast %70 : vector<8x1xf32> to vector<8x8xf32>
      %72 = arith.subf %68, %71 : vector<8x8xf32>
      %73 = math.exp %72 : vector<8x8xf32>
      %cst_31 = arith.constant dense<0.000000e+00> : vector<8xf32>
      %74 = vector.multi_reduction <add>, %73, %cst_31 [1] : vector<8x8xf32> to vector<8xf32>
      %75 = vector.shape_cast %74 : vector<8xf32> to vector<8x1xf32>
      %76 = arith.truncf %73 : vector<8x8xf32> to vector<8x8xbf16>
      %cst_32 = arith.constant dense<0.000000e+00> : vector<8x8xf32>
      %77 = tpu.matmul %76, %64, %cst_32 {dimension_numbers = #tpu.dot_dimension_numbers<[1], [0], [0], [1], [0, 0, 1, 1], [], []>} : vector<8x8xbf16>, vector<8x8xbf16>, vector<8x8xf32> -> vector<8x8xf32>
      %cst_33 = arith.constant 1.000000e+00 : f32
      %78 = vector.broadcast %cst_33 : f32 to vector<8x1xf32>
      %79 = arith.divf %78, %75 : vector<8x1xf32>
      %80 = vector.broadcast %79 : vector<8x1xf32> to vector<8x8xf32>
      %81 = arith.mulf %77, %80 : vector<8x8xf32>
      %82 = vector.extract_strided_slice %35 {offsets = [0, 16], sizes = [8, 8], strides = [1, 1]} : vector<8x32xf32> to vector<8x8xf32>
      %83 = arith.truncf %82 : vector<8x8xf32> to vector<8x8xbf16>
      %84 = vector.extract_strided_slice %37 {offsets = [0, 16], sizes = [8, 8], strides = [1, 1]} : vector<8x32xbf16> to vector<8x8xbf16>
      %85 = vector.extract_strided_slice %39 {offsets = [0, 16], sizes = [8, 8], strides = [1, 1]} : vector<8x32xbf16> to vector<8x8xbf16>
      %cst_34 = arith.constant dense<0.000000e+00> : vector<8x8xf32>
      %86 = tpu.matmul %83, %84, %cst_34 {dimension_numbers = #tpu.dot_dimension_numbers<[1], [1], [0], [0], [0, 0, 1, 0], [], []>} : vector<8x8xbf16>, vector<8x8xbf16>, vector<8x8xf32> -> vector<8x8xf32>
      %cst_35 = arith.constant 0.353553385 : f32
      %87 = vector.broadcast %cst_35 : f32 to vector<8x8xf32>
      %88 = arith.mulf %86, %87 : vector<8x8xf32>
      %89 = arith.addf %88, %13 : vector<8x8xf32>
      %cst_36 = arith.constant dense<0xFF800000> : vector<8xf32>
      %90 = vector.multi_reduction <maximumf>, %89, %cst_36 [1] : vector<8x8xf32> to vector<8xf32>
      %91 = vector.shape_cast %90 : vector<8xf32> to vector<8x1xf32>
      %92 = vector.broadcast %91 : vector<8x1xf32> to vector<8x8xf32>
      %93 = arith.subf %89, %92 : vector<8x8xf32>
      %94 = math.exp %93 : vector<8x8xf32>
      %cst_37 = arith.constant dense<0.000000e+00> : vector<8xf32>
      %95 = vector.multi_reduction <add>, %94, %cst_37 [1] : vector<8x8xf32> to vector<8xf32>
      %96 = vector.shape_cast %95 : vector<8xf32> to vector<8x1xf32>
      %97 = arith.truncf %94 : vector<8x8xf32> to vector<8x8xbf16>
      %cst_38 = arith.constant dense<0.000000e+00> : vector<8x8xf32>
      %98 = tpu.matmul %97, %85, %cst_38 {dimension_numbers = #tpu.dot_dimension_numbers<[1], [0], [0], [1], [0, 0, 1, 1], [], []>} : vector<8x8xbf16>, vector<8x8xbf16>, vector<8x8xf32> -> vector<8x8xf32>
      %cst_39 = arith.constant 1.000000e+00 : f32
      %99 = vector.broadcast %cst_39 : f32 to vector<8x1xf32>
      %100 = arith.divf %99, %96 : vector<8x1xf32>
      %101 = vector.broadcast %100 : vector<8x1xf32> to vector<8x8xf32>
      %102 = arith.mulf %98, %101 : vector<8x8xf32>
      %103 = vector.extract_strided_slice %35 {offsets = [0, 24], sizes = [8, 8], strides = [1, 1]} : vector<8x32xf32> to vector<8x8xf32>
      %104 = arith.truncf %103 : vector<8x8xf32> to vector<8x8xbf16>
      %105 = vector.extract_strided_slice %37 {offsets = [0, 24], sizes = [8, 8], strides = [1, 1]} : vector<8x32xbf16> to vector<8x8xbf16>
      %106 = vector.extract_strided_slice %39 {offsets = [0, 24], sizes = [8, 8], strides = [1, 1]} : vector<8x32xbf16> to vector<8x8xbf16>
      %cst_40 = arith.constant dense<0.000000e+00> : vector<8x8xf32>
      %107 = tpu.matmul %104, %105, %cst_40 {dimension_numbers = #tpu.dot_dimension_numbers<[1], [1], [0], [0], [0, 0, 1, 0], [], []>} : vector<8x8xbf16>, vector<8x8xbf16>, vector<8x8xf32> -> vector<8x8xf32>
      %cst_41 = arith.constant 0.353553385 : f32
      %108 = vector.broadcast %cst_41 : f32 to vector<8x8xf32>
      %109 = arith.mulf %107, %108 : vector<8x8xf32>
      %110 = arith.addf %109, %13 : vector<8x8xf32>
      %cst_42 = arith.constant dense<0xFF800000> : vector<8xf32>
      %111 = vector.multi_reduction <maximumf>, %110, %cst_42 [1] : vector<8x8xf32> to vector<8xf32>
      %112 = vector.shape_cast %111 : vector<8xf32> to vector<8x1xf32>
      %113 = vector.broadcast %112 : vector<8x1xf32> to vector<8x8xf32>
      %114 = arith.subf %110, %113 : vector<8x8xf32>
      %115 = math.exp %114 : vector<8x8xf32>
      %cst_43 = arith.constant dense<0.000000e+00> : vector<8xf32>
      %116 = vector.multi_reduction <add>, %115, %cst_43 [1] : vector<8x8xf32> to vector<8xf32>
      %117 = vector.shape_cast %116 : vector<8xf32> to vector<8x1xf32>
      %118 = arith.truncf %115 : vector<8x8xf32> to vector<8x8xbf16>
      %cst_44 = arith.constant dense<0.000000e+00> : vector<8x8xf32>
      %119 = tpu.matmul %118, %106, %cst_44 {dimension_numbers = #tpu.dot_dimension_numbers<[1], [0], [0], [1], [0, 0, 1, 1], [], []>} : vector<8x8xbf16>, vector<8x8xbf16>, vector<8x8xf32> -> vector<8x8xf32>
      %cst_45 = arith.constant 1.000000e+00 : f32
      %120 = vector.broadcast %cst_45 : f32 to vector<8x1xf32>
      %121 = arith.divf %120, %117 : vector<8x1xf32>
      %122 = vector.broadcast %121 : vector<8x1xf32> to vector<8x8xf32>
      %123 = arith.mulf %119, %122 : vector<8x8xf32>
      %124 = tpu.concatenate %60, %81, %102, %123 in 1 : vector<8x8xf32>, vector<8x8xf32>, vector<8x8xf32>, vector<8x8xf32> -> vector<8x32xf32>
      %125 = arith.truncf %124 : vector<8x32xf32> to vector<8x32xbf16>
      %c0_46 = arith.constant 0 : index
      %c0_47 = arith.constant 0 : index
      %126 = vector.load %arg6[%c0_46, %c0_47] : memref<32x32xbf16, #tpu.memory_space<vmem>>, vector<32x32xbf16>
      %cst_48 = arith.constant dense<0.000000e+00> : vector<8x32xf32>
      %127 = tpu.matmul %125, %126, %cst_48 {dimension_numbers = #tpu.dot_dimension_numbers<[1], [0], [0], [1], [0, 0, 1, 1], [], []>} : vector<8x32xbf16>, vector<32x32xbf16>, vector<8x32xf32> -> vector<8x32xf32>
      %c0_49 = arith.constant 0 : index
      %c0_50 = arith.constant 0 : index
      %128 = vector.load %arg7[%c0_49, %c0_50] : memref<1x32xf32, #tpu.memory_space<vmem>>, vector<1x32xf32>
      %129 = vector.broadcast %128 : vector<1x32xf32> to vector<8x32xf32>
      %130 = arith.addf %127, %129 : vector<8x32xf32>
      %131 = arith.addf %arg22, %130 : vector<8x32xf32>
      %cst_51 = arith.constant dense<0.000000e+00> : vector<8xf32>
      %132 = vector.multi_reduction <add>, %131, %cst_51 [1] : vector<8x32xf32> to vector<8xf32>
      %133 = vector.shape_cast %132 : vector<8xf32> to vector<8x1xf32>
      %cst_52 = arith.constant 3.200000e+01 : f32
      %134 = vector.broadcast %cst_52 : f32 to vector<8x1xf32>
      %135 = arith.divf %133, %134 : vector<8x1xf32>
      %136 = vector.broadcast %135 : vector<8x1xf32> to vector<8x32xf32>
      %137 = arith.subf %131, %136 : vector<8x32xf32>
      %138 = arith.mulf %137, %137 : vector<8x32xf32>
      %cst_53 = arith.constant dense<0.000000e+00> : vector<8xf32>
      %139 = vector.multi_reduction <add>, %138, %cst_53 [1] : vector<8x32xf32> to vector<8xf32>
      %140 = vector.shape_cast %139 : vector<8xf32> to vector<8x1xf32>
      %cst_54 = arith.constant 3.200000e+01 : f32
      %141 = vector.broadcast %cst_54 : f32 to vector<8x1xf32>
      %142 = arith.divf %140, %141 : vector<8x1xf32>
      %cst_55 = arith.constant 9.99999974E-6 : f32
      %143 = vector.broadcast %cst_55 : f32 to vector<8x1xf32>
      %144 = arith.addf %142, %143 : vector<8x1xf32>
      %145 = math.rsqrt %144 : vector<8x1xf32>
      %146 = vector.broadcast %145 : vector<8x1xf32> to vector<8x32xf32>
      %147 = arith.mulf %137, %146 : vector<8x32xf32>
      %c0_56 = arith.constant 0 : index
      %c0_57 = arith.constant 0 : index
      %c0_58 = arith.constant 0 : index
      %148 = vector.load %arg18[%c0_56, %c0_57, %c0_58] : memref<3x1x32xf32, #tpu.memory_space<vmem>>, vector<1x1x32xf32>
      %149 = vector.shape_cast %148 : vector<1x1x32xf32> to vector<1x32xf32>
      %150 = vector.broadcast %149 : vector<1x32xf32> to vector<8x32xf32>
      %151 = arith.mulf %147, %150 : vector<8x32xf32>
      %c0_59 = arith.constant 0 : index
      %c0_60 = arith.constant 0 : index
      %c0_61 = arith.constant 0 : index
      %152 = vector.load %arg19[%c0_59, %c0_60, %c0_61] : memref<3x1x32xf32, #tpu.memory_space<vmem>>, vector<1x1x32xf32>
      %153 = vector.shape_cast %152 : vector<1x1x32xf32> to vector<1x32xf32>
      %154 = vector.broadcast %153 : vector<1x32xf32> to vector<8x32xf32>
      %155 = arith.addf %151, %154 : vector<8x32xf32>
      %156 = arith.truncf %155 : vector<8x32xf32> to vector<8x32xbf16>
      %c0_62 = arith.constant 0 : index
      %c0_63 = arith.constant 0 : index
      %157 = vector.load %arg8[%c0_62, %c0_63] : memref<32x32xbf16, #tpu.memory_space<vmem>>, vector<32x32xbf16>
      %cst_64 = arith.constant dense<0.000000e+00> : vector<8x32xf32>
      %158 = tpu.matmul %156, %157, %cst_64 {dimension_numbers = #tpu.dot_dimension_numbers<[1], [0], [0], [1], [0, 0, 1, 1], [], []>} : vector<8x32xbf16>, vector<32x32xbf16>, vector<8x32xf32> -> vector<8x32xf32>
      %c0_65 = arith.constant 0 : index
      %c0_66 = arith.constant 0 : index
      %159 = vector.load %arg9[%c0_65, %c0_66] : memref<1x32xf32, #tpu.memory_space<vmem>>, vector<1x32xf32>
      %160 = vector.broadcast %159 : vector<1x32xf32> to vector<8x32xf32>
      %161 = arith.addf %158, %160 : vector<8x32xf32>
      %162 = vector.extract_strided_slice %161 {offsets = [0, 0], sizes = [8, 8], strides = [1, 1]} : vector<8x32xf32> to vector<8x8xf32>
      %163 = arith.truncf %162 : vector<8x8xf32> to vector<8x8xbf16>
      %164 = vector.extract_strided_slice %20 {offsets = [0, 0], sizes = [64, 8], strides = [1, 1]} : vector<64x32xbf16> to vector<64x8xbf16>
      %165 = vector.extract_strided_slice %22 {offsets = [0, 0], sizes = [64, 8], strides = [1, 1]} : vector<64x32xbf16> to vector<64x8xbf16>
      %cst_67 = arith.constant dense<0.000000e+00> : vector<8x64xf32>
      %166 = tpu.matmul %163, %164, %cst_67 {dimension_numbers = #tpu.dot_dimension_numbers<[1], [1], [0], [0], [0, 0, 1, 0], [], []>} : vector<8x8xbf16>, vector<64x8xbf16>, vector<8x64xf32> -> vector<8x64xf32>
      %cst_68 = arith.constant 0.353553385 : f32
      %167 = vector.broadcast %cst_68 : f32 to vector<8x64xf32>
      %168 = arith.mulf %166, %167 : vector<8x64xf32>
      %cst_69 = arith.constant dense<0xFF800000> : vector<8xf32>
      %169 = vector.multi_reduction <maximumf>, %168, %cst_69 [1] : vector<8x64xf32> to vector<8xf32>
      %170 = vector.shape_cast %169 : vector<8xf32> to vector<8x1xf32>
      %171 = vector.broadcast %170 : vector<8x1xf32> to vector<8x64xf32>
      %172 = arith.subf %168, %171 : vector<8x64xf32>
      %173 = math.exp %172 : vector<8x64xf32>
      %cst_70 = arith.constant dense<0.000000e+00> : vector<8xf32>
      %174 = vector.multi_reduction <add>, %173, %cst_70 [1] : vector<8x64xf32> to vector<8xf32>
      %175 = vector.shape_cast %174 : vector<8xf32> to vector<8x1xf32>
      %176 = arith.truncf %173 : vector<8x64xf32> to vector<8x64xbf16>
      %cst_71 = arith.constant dense<0.000000e+00> : vector<8x8xf32>
      %177 = tpu.matmul %176, %165, %cst_71 {dimension_numbers = #tpu.dot_dimension_numbers<[1], [0], [0], [1], [0, 0, 1, 1], [], []>} : vector<8x64xbf16>, vector<64x8xbf16>, vector<8x8xf32> -> vector<8x8xf32>
      %cst_72 = arith.constant 1.000000e+00 : f32
      %178 = vector.broadcast %cst_72 : f32 to vector<8x1xf32>
      %179 = arith.divf %178, %175 : vector<8x1xf32>
      %180 = vector.broadcast %179 : vector<8x1xf32> to vector<8x8xf32>
      %181 = arith.mulf %177, %180 : vector<8x8xf32>
      %182 = vector.extract_strided_slice %161 {offsets = [0, 8], sizes = [8, 8], strides = [1, 1]} : vector<8x32xf32> to vector<8x8xf32>
      %183 = arith.truncf %182 : vector<8x8xf32> to vector<8x8xbf16>
      %184 = vector.extract_strided_slice %20 {offsets = [0, 8], sizes = [64, 8], strides = [1, 1]} : vector<64x32xbf16> to vector<64x8xbf16>
      %185 = vector.extract_strided_slice %22 {offsets = [0, 8], sizes = [64, 8], strides = [1, 1]} : vector<64x32xbf16> to vector<64x8xbf16>
      %cst_73 = arith.constant dense<0.000000e+00> : vector<8x64xf32>
      %186 = tpu.matmul %183, %184, %cst_73 {dimension_numbers = #tpu.dot_dimension_numbers<[1], [1], [0], [0], [0, 0, 1, 0], [], []>} : vector<8x8xbf16>, vector<64x8xbf16>, vector<8x64xf32> -> vector<8x64xf32>
      %cst_74 = arith.constant 0.353553385 : f32
      %187 = vector.broadcast %cst_74 : f32 to vector<8x64xf32>
      %188 = arith.mulf %186, %187 : vector<8x64xf32>
      %cst_75 = arith.constant dense<0xFF800000> : vector<8xf32>
      %189 = vector.multi_reduction <maximumf>, %188, %cst_75 [1] : vector<8x64xf32> to vector<8xf32>
      %190 = vector.shape_cast %189 : vector<8xf32> to vector<8x1xf32>
      %191 = vector.broadcast %190 : vector<8x1xf32> to vector<8x64xf32>
      %192 = arith.subf %188, %191 : vector<8x64xf32>
      %193 = math.exp %192 : vector<8x64xf32>
      %cst_76 = arith.constant dense<0.000000e+00> : vector<8xf32>
      %194 = vector.multi_reduction <add>, %193, %cst_76 [1] : vector<8x64xf32> to vector<8xf32>
      %195 = vector.shape_cast %194 : vector<8xf32> to vector<8x1xf32>
      %196 = arith.truncf %193 : vector<8x64xf32> to vector<8x64xbf16>
      %cst_77 = arith.constant dense<0.000000e+00> : vector<8x8xf32>
      %197 = tpu.matmul %196, %185, %cst_77 {dimension_numbers = #tpu.dot_dimension_numbers<[1], [0], [0], [1], [0, 0, 1, 1], [], []>} : vector<8x64xbf16>, vector<64x8xbf16>, vector<8x8xf32> -> vector<8x8xf32>
      %cst_78 = arith.constant 1.000000e+00 : f32
      %198 = vector.broadcast %cst_78 : f32 to vector<8x1xf32>
      %199 = arith.divf %198, %195 : vector<8x1xf32>
      %200 = vector.broadcast %199 : vector<8x1xf32> to vector<8x8xf32>
      %201 = arith.mulf %197, %200 : vector<8x8xf32>
      %202 = vector.extract_strided_slice %161 {offsets = [0, 16], sizes = [8, 8], strides = [1, 1]} : vector<8x32xf32> to vector<8x8xf32>
      %203 = arith.truncf %202 : vector<8x8xf32> to vector<8x8xbf16>
      %204 = vector.extract_strided_slice %20 {offsets = [0, 16], sizes = [64, 8], strides = [1, 1]} : vector<64x32xbf16> to vector<64x8xbf16>
      %205 = vector.extract_strided_slice %22 {offsets = [0, 16], sizes = [64, 8], strides = [1, 1]} : vector<64x32xbf16> to vector<64x8xbf16>
      %cst_79 = arith.constant dense<0.000000e+00> : vector<8x64xf32>
      %206 = tpu.matmul %203, %204, %cst_79 {dimension_numbers = #tpu.dot_dimension_numbers<[1], [1], [0], [0], [0, 0, 1, 0], [], []>} : vector<8x8xbf16>, vector<64x8xbf16>, vector<8x64xf32> -> vector<8x64xf32>
      %cst_80 = arith.constant 0.353553385 : f32
      %207 = vector.broadcast %cst_80 : f32 to vector<8x64xf32>
      %208 = arith.mulf %206, %207 : vector<8x64xf32>
      %cst_81 = arith.constant dense<0xFF800000> : vector<8xf32>
      %209 = vector.multi_reduction <maximumf>, %208, %cst_81 [1] : vector<8x64xf32> to vector<8xf32>
      %210 = vector.shape_cast %209 : vector<8xf32> to vector<8x1xf32>
      %211 = vector.broadcast %210 : vector<8x1xf32> to vector<8x64xf32>
      %212 = arith.subf %208, %211 : vector<8x64xf32>
      %213 = math.exp %212 : vector<8x64xf32>
      %cst_82 = arith.constant dense<0.000000e+00> : vector<8xf32>
      %214 = vector.multi_reduction <add>, %213, %cst_82 [1] : vector<8x64xf32> to vector<8xf32>
      %215 = vector.shape_cast %214 : vector<8xf32> to vector<8x1xf32>
      %216 = arith.truncf %213 : vector<8x64xf32> to vector<8x64xbf16>
      %cst_83 = arith.constant dense<0.000000e+00> : vector<8x8xf32>
      %217 = tpu.matmul %216, %205, %cst_83 {dimension_numbers = #tpu.dot_dimension_numbers<[1], [0], [0], [1], [0, 0, 1, 1], [], []>} : vector<8x64xbf16>, vector<64x8xbf16>, vector<8x8xf32> -> vector<8x8xf32>
      %cst_84 = arith.constant 1.000000e+00 : f32
      %218 = vector.broadcast %cst_84 : f32 to vector<8x1xf32>
      %219 = arith.divf %218, %215 : vector<8x1xf32>
      %220 = vector.broadcast %219 : vector<8x1xf32> to vector<8x8xf32>
      %221 = arith.mulf %217, %220 : vector<8x8xf32>
      %222 = vector.extract_strided_slice %161 {offsets = [0, 24], sizes = [8, 8], strides = [1, 1]} : vector<8x32xf32> to vector<8x8xf32>
      %223 = arith.truncf %222 : vector<8x8xf32> to vector<8x8xbf16>
      %224 = vector.extract_strided_slice %20 {offsets = [0, 24], sizes = [64, 8], strides = [1, 1]} : vector<64x32xbf16> to vector<64x8xbf16>
      %225 = vector.extract_strided_slice %22 {offsets = [0, 24], sizes = [64, 8], strides = [1, 1]} : vector<64x32xbf16> to vector<64x8xbf16>
      %cst_85 = arith.constant dense<0.000000e+00> : vector<8x64xf32>
      %226 = tpu.matmul %223, %224, %cst_85 {dimension_numbers = #tpu.dot_dimension_numbers<[1], [1], [0], [0], [0, 0, 1, 0], [], []>} : vector<8x8xbf16>, vector<64x8xbf16>, vector<8x64xf32> -> vector<8x64xf32>
      %cst_86 = arith.constant 0.353553385 : f32
      %227 = vector.broadcast %cst_86 : f32 to vector<8x64xf32>
      %228 = arith.mulf %226, %227 : vector<8x64xf32>
      %cst_87 = arith.constant dense<0xFF800000> : vector<8xf32>
      %229 = vector.multi_reduction <maximumf>, %228, %cst_87 [1] : vector<8x64xf32> to vector<8xf32>
      %230 = vector.shape_cast %229 : vector<8xf32> to vector<8x1xf32>
      %231 = vector.broadcast %230 : vector<8x1xf32> to vector<8x64xf32>
      %232 = arith.subf %228, %231 : vector<8x64xf32>
      %233 = math.exp %232 : vector<8x64xf32>
      %cst_88 = arith.constant dense<0.000000e+00> : vector<8xf32>
      %234 = vector.multi_reduction <add>, %233, %cst_88 [1] : vector<8x64xf32> to vector<8xf32>
      %235 = vector.shape_cast %234 : vector<8xf32> to vector<8x1xf32>
      %236 = arith.truncf %233 : vector<8x64xf32> to vector<8x64xbf16>
      %cst_89 = arith.constant dense<0.000000e+00> : vector<8x8xf32>
      %237 = tpu.matmul %236, %225, %cst_89 {dimension_numbers = #tpu.dot_dimension_numbers<[1], [0], [0], [1], [0, 0, 1, 1], [], []>} : vector<8x64xbf16>, vector<64x8xbf16>, vector<8x8xf32> -> vector<8x8xf32>
      %cst_90 = arith.constant 1.000000e+00 : f32
      %238 = vector.broadcast %cst_90 : f32 to vector<8x1xf32>
      %239 = arith.divf %238, %235 : vector<8x1xf32>
      %240 = vector.broadcast %239 : vector<8x1xf32> to vector<8x8xf32>
      %241 = arith.mulf %237, %240 : vector<8x8xf32>
      %242 = tpu.concatenate %181, %201, %221, %241 in 1 : vector<8x8xf32>, vector<8x8xf32>, vector<8x8xf32>, vector<8x8xf32> -> vector<8x32xf32>
      %243 = arith.truncf %242 : vector<8x32xf32> to vector<8x32xbf16>
      %c0_91 = arith.constant 0 : index
      %c0_92 = arith.constant 0 : index
      %244 = vector.load %arg12[%c0_91, %c0_92] : memref<32x32xbf16, #tpu.memory_space<vmem>>, vector<32x32xbf16>
      %cst_93 = arith.constant dense<0.000000e+00> : vector<8x32xf32>
      %245 = tpu.matmul %243, %244, %cst_93 {dimension_numbers = #tpu.dot_dimension_numbers<[1], [0], [0], [1], [0, 0, 1, 1], [], []>} : vector<8x32xbf16>, vector<32x32xbf16>, vector<8x32xf32> -> vector<8x32xf32>
      %c0_94 = arith.constant 0 : index
      %c0_95 = arith.constant 0 : index
      %246 = vector.load %arg13[%c0_94, %c0_95] : memref<1x32xf32, #tpu.memory_space<vmem>>, vector<1x32xf32>
      %247 = vector.broadcast %246 : vector<1x32xf32> to vector<8x32xf32>
      %248 = arith.addf %245, %247 : vector<8x32xf32>
      %249 = arith.addf %155, %248 : vector<8x32xf32>
      %cst_96 = arith.constant dense<0.000000e+00> : vector<8xf32>
      %250 = vector.multi_reduction <add>, %249, %cst_96 [1] : vector<8x32xf32> to vector<8xf32>
      %251 = vector.shape_cast %250 : vector<8xf32> to vector<8x1xf32>
      %cst_97 = arith.constant 3.200000e+01 : f32
      %252 = vector.broadcast %cst_97 : f32 to vector<8x1xf32>
      %253 = arith.divf %251, %252 : vector<8x1xf32>
      %254 = vector.broadcast %253 : vector<8x1xf32> to vector<8x32xf32>
      %255 = arith.subf %249, %254 : vector<8x32xf32>
      %256 = arith.mulf %255, %255 : vector<8x32xf32>
      %cst_98 = arith.constant dense<0.000000e+00> : vector<8xf32>
      %257 = vector.multi_reduction <add>, %256, %cst_98 [1] : vector<8x32xf32> to vector<8xf32>
      %258 = vector.shape_cast %257 : vector<8xf32> to vector<8x1xf32>
      %cst_99 = arith.constant 3.200000e+01 : f32
      %259 = vector.broadcast %cst_99 : f32 to vector<8x1xf32>
      %260 = arith.divf %258, %259 : vector<8x1xf32>
      %cst_100 = arith.constant 9.99999974E-6 : f32
      %261 = vector.broadcast %cst_100 : f32 to vector<8x1xf32>
      %262 = arith.addf %260, %261 : vector<8x1xf32>
      %263 = math.rsqrt %262 : vector<8x1xf32>
      %264 = vector.broadcast %263 : vector<8x1xf32> to vector<8x32xf32>
      %265 = arith.mulf %255, %264 : vector<8x32xf32>
      %c1 = arith.constant 1 : index
      %c0_101 = arith.constant 0 : index
      %c0_102 = arith.constant 0 : index
      %266 = vector.load %arg18[%c1, %c0_101, %c0_102] : memref<3x1x32xf32, #tpu.memory_space<vmem>>, vector<1x1x32xf32>
      %267 = vector.shape_cast %266 : vector<1x1x32xf32> to vector<1x32xf32>
      %268 = vector.broadcast %267 : vector<1x32xf32> to vector<8x32xf32>
      %269 = arith.mulf %265, %268 : vector<8x32xf32>
      %c1_103 = arith.constant 1 : index
      %c0_104 = arith.constant 0 : index
      %c0_105 = arith.constant 0 : index
      %270 = vector.load %arg19[%c1_103, %c0_104, %c0_105] : memref<3x1x32xf32, #tpu.memory_space<vmem>>, vector<1x1x32xf32>
      %271 = vector.shape_cast %270 : vector<1x1x32xf32> to vector<1x32xf32>
      %272 = vector.broadcast %271 : vector<1x32xf32> to vector<8x32xf32>
      %273 = arith.addf %269, %272 : vector<8x32xf32>
      %274 = arith.truncf %273 : vector<8x32xf32> to vector<8x32xbf16>
      %c0_106 = arith.constant 0 : index
      %c0_107 = arith.constant 0 : index
      %275 = vector.load %arg14[%c0_106, %c0_107] : memref<32x64xbf16, #tpu.memory_space<vmem>>, vector<32x64xbf16>
      %cst_108 = arith.constant dense<0.000000e+00> : vector<8x64xf32>
      %276 = tpu.matmul %274, %275, %cst_108 {dimension_numbers = #tpu.dot_dimension_numbers<[1], [0], [0], [1], [0, 0, 1, 1], [], []>} : vector<8x32xbf16>, vector<32x64xbf16>, vector<8x64xf32> -> vector<8x64xf32>
      %c0_109 = arith.constant 0 : index
      %c0_110 = arith.constant 0 : index
      %277 = vector.load %arg15[%c0_109, %c0_110] : memref<1x64xf32, #tpu.memory_space<vmem>>, vector<1x64xf32>
      %278 = vector.broadcast %277 : vector<1x64xf32> to vector<8x64xf32>
      %279 = arith.addf %276, %278 : vector<8x64xf32>
      %cst_111 = arith.constant 0.000000e+00 : f32
      %280 = vector.broadcast %cst_111 : f32 to vector<8x64xf32>
      %281 = arith.maximumf %279, %280 : vector<8x64xf32>
      %282 = arith.truncf %281 : vector<8x64xf32> to vector<8x64xbf16>
      %c0_112 = arith.constant 0 : index
      %c0_113 = arith.constant 0 : index
      %283 = vector.load %arg16[%c0_112, %c0_113] : memref<64x32xbf16, #tpu.memory_space<vmem>>, vector<64x32xbf16>
      %cst_114 = arith.constant dense<0.000000e+00> : vector<8x32xf32>
      %284 = tpu.matmul %282, %283, %cst_114 {dimension_numbers = #tpu.dot_dimension_numbers<[1], [0], [0], [1], [0, 0, 1, 1], [], []>} : vector<8x64xbf16>, vector<64x32xbf16>, vector<8x32xf32> -> vector<8x32xf32>
      %c0_115 = arith.constant 0 : index
      %c0_116 = arith.constant 0 : index
      %285 = vector.load %arg17[%c0_115, %c0_116] : memref<1x32xf32, #tpu.memory_space<vmem>>, vector<1x32xf32>
      %286 = vector.broadcast %285 : vector<1x32xf32> to vector<8x32xf32>
      %287 = arith.addf %284, %286 : vector<8x32xf32>
      %288 = arith.addf %273, %287 : vector<8x32xf32>
      %cst_117 = arith.constant dense<0.000000e+00> : vector<8xf32>
      %289 = vector.multi_reduction <add>, %288, %cst_117 [1] : vector<8x32xf32> to vector<8xf32>
      %290 = vector.shape_cast %289 : vector<8xf32> to vector<8x1xf32>
      %cst_118 = arith.constant 3.200000e+01 : f32
      %291 = vector.broadcast %cst_118 : f32 to vector<8x1xf32>
      %292 = arith.divf %290, %291 : vector<8x1xf32>
      %293 = vector.broadcast %292 : vector<8x1xf32> to vector<8x32xf32>
      %294 = arith.subf %288, %293 : vector<8x32xf32>
      %295 = arith.mulf %294, %294 : vector<8x32xf32>
      %cst_119 = arith.constant dense<0.000000e+00> : vector<8xf32>
      %296 = vector.multi_reduction <add>, %295, %cst_119 [1] : vector<8x32xf32> to vector<8xf32>
      %297 = vector.shape_cast %296 : vector<8xf32> to vector<8x1xf32>
      %cst_120 = arith.constant 3.200000e+01 : f32
      %298 = vector.broadcast %cst_120 : f32 to vector<8x1xf32>
      %299 = arith.divf %297, %298 : vector<8x1xf32>
      %cst_121 = arith.constant 9.99999974E-6 : f32
      %300 = vector.broadcast %cst_121 : f32 to vector<8x1xf32>
      %301 = arith.addf %299, %300 : vector<8x1xf32>
      %302 = math.rsqrt %301 : vector<8x1xf32>
      %303 = vector.broadcast %302 : vector<8x1xf32> to vector<8x32xf32>
      %304 = arith.mulf %294, %303 : vector<8x32xf32>
      %c2 = arith.constant 2 : index
      %c0_122 = arith.constant 0 : index
      %c0_123 = arith.constant 0 : index
      %305 = vector.load %arg18[%c2, %c0_122, %c0_123] : memref<3x1x32xf32, #tpu.memory_space<vmem>>, vector<1x1x32xf32>
      %306 = vector.shape_cast %305 : vector<1x1x32xf32> to vector<1x32xf32>
      %307 = vector.broadcast %306 : vector<1x32xf32> to vector<8x32xf32>
      %308 = arith.mulf %304, %307 : vector<8x32xf32>
      %c2_124 = arith.constant 2 : index
      %c0_125 = arith.constant 0 : index
      %c0_126 = arith.constant 0 : index
      %309 = vector.load %arg19[%c2_124, %c0_125, %c0_126] : memref<3x1x32xf32, #tpu.memory_space<vmem>>, vector<1x1x32xf32>
      %310 = vector.shape_cast %309 : vector<1x1x32xf32> to vector<1x32xf32>
      %311 = vector.broadcast %310 : vector<1x32xf32> to vector<8x32xf32>
      %312 = arith.addf %308, %311 : vector<8x32xf32>
      scf.yield %312 : vector<8x32xf32>
    }
    %25 = arith.truncf %24 : vector<8x32xf32> to vector<8x32xbf16>
    %c0_14 = arith.constant 0 : index
    %c0_15 = arith.constant 0 : index
    %c0_16 = arith.constant 0 : index
    %26 = vector.load %arg20[%c0_14, %c0_15, %c0_16] : memref<1x8x32xbf16, #tpu.memory_space<vmem>>, vector<1x8x32xbf16>
    %27 = vector.shape_cast %26 : vector<1x8x32xbf16> to vector<8x32xbf16>
    %28 = vector.shape_cast %25 : vector<8x32xbf16> to vector<1x8x32xbf16>
    tpu.vector_store %arg20[%c0_14, %c0_15, %c0_16], %28 {strides = array<i32>} : memref<1x8x32xbf16, #tpu.memory_space<vmem>>, vector<1x8x32xbf16>,
    return
  }
  func.func @transform_0(%arg0: i32) -> (i32, i32, i32) {
    %c0_i32 = arith.constant 0 : i32
    %c0_i32_0 = arith.constant 0 : i32
    %c0_i32_1 = arith.constant 0 : i32
    return %arg0, %c0_i32, %c0_i32_0 : i32, i32, i32
  }
  func.func @transform_1(%arg0: i32) -> (i32, i32, i32) {
    %c0_i32 = arith.constant 0 : i32
    %c0_i32_0 = arith.constant 0 : i32
    %c0_i32_1 = arith.constant 0 : i32
    return %arg0, %c0_i32, %c0_i32_0 : i32, i32, i32
  }
  func.func @transform_2(%arg0: i32) -> (i32, i32, i32) {
    %c0_i32 = arith.constant 0 : i32
    %c0_i32_0 = arith.constant 0 : i32
    %c0_i32_1 = arith.constant 0 : i32
    return %arg0, %c0_i32, %c0_i32_0 : i32, i32, i32
  }
  func.func @transform_3(%arg0: i32) -> (i32, i32) {
    %c0_i32 = arith.constant 0 : i32
    %c0_i32_0 = arith.constant 0 : i32
    %c0_i32_1 = arith.constant 0 : i32
    return %c0_i32, %c0_i32_0 : i32, i32
  }
  func.func @transform_4(%arg0: i32) -> (i32, i32) {
    %c0_i32 = arith.constant 0 : i32
    %c0_i32_0 = arith.constant 0 : i32
    %c0_i32_1 = arith.constant 0 : i32
    return %c0_i32, %c0_i32_0 : i32, i32
  }
  func.func @transform_5(%arg0: i32) -> (i32, i32) {
    %c0_i32 = arith.constant 0 : i32
    %c0_i32_0 = arith.constant 0 : i32
    %c0_i32_1 = arith.constant 0 : i32
    return %c0_i32, %c0_i32_0 : i32, i32
  }
  func.func @transform_6(%arg0: i32) -> (i32, i32) {
    %c0_i32 = arith.constant 0 : i32
    %c0_i32_0 = arith.constant 0 : i32
    %c0_i32_1 = arith.constant 0 : i32
    return %c0_i32, %c0_i32_0 : i32, i32
  }
  func.func @transform_7(%arg0: i32) -> (i32, i32) {
    %c0_i32 = arith.constant 0 : i32
    %c0_i32_0 = arith.constant 0 : i32
    %c0_i32_1 = arith.constant 0 : i32
    return %c0_i32, %c0_i32_0 : i32, i32
  }
  func.func @transform_8(%arg0: i32) -> (i32, i32) {
    %c0_i32 = arith.constant 0 : i32
    %c0_i32_0 = arith.constant 0 : i32
    %c0_i32_1 = arith.constant 0 : i32
    return %c0_i32, %c0_i32_0 : i32, i32
  }
  func.func @transform_9(%arg0: i32) -> (i32, i32) {
    %c0_i32 = arith.constant 0 : i32
    %c0_i32_0 = arith.constant 0 : i32
    %c0_i32_1 = arith.constant 0 : i32
    return %c0_i32, %c0_i32_0 : i32, i32
  }
  func.func @transform_10(%arg0: i32) -> (i32, i32) {
    %c0_i32 = arith.constant 0 : i32
    %c0_i32_0 = arith.constant 0 : i32
    %c0_i32_1 = arith.constant 0 : i32
    return %c0_i32, %c0_i32_0 : i32, i32
  }
  func.func @transform_11(%arg0: i32) -> (i32, i32) {
    %c0_i32 = arith.constant 0 : i32
    %c0_i32_0 = arith.constant 0 : i32
    %c0_i32_1 = arith.constant 0 : i32
    return %c0_i32, %c0_i32_0 : i32, i32
  }
  func.func @transform_12(%arg0: i32) -> (i32, i32) {
    %c0_i32 = arith.constant 0 : i32
    %c0_i32_0 = arith.constant 0 : i32
    %c0_i32_1 = arith.constant 0 : i32
    return %c0_i32, %c0_i32_0 : i32, i32
  }
  func.func @transform_13(%arg0: i32) -> (i32, i32) {
    %c0_i32 = arith.constant 0 : i32
    %c0_i32_0 = arith.constant 0 : i32
    %c0_i32_1 = arith.constant 0 : i32
    return %c0_i32, %c0_i32_0 : i32, i32
  }
  func.func @transform_14(%arg0: i32) -> (i32, i32) {
    %c0_i32 = arith.constant 0 : i32
    %c0_i32_0 = arith.constant 0 : i32
    %c0_i32_1 = arith.constant 0 : i32
    return %c0_i32, %c0_i32_0 : i32, i32
  }
  func.func @transform_15(%arg0: i32) -> (i32, i32) {
    %c0_i32 = arith.constant 0 : i32
    %c0_i32_0 = arith.constant 0 : i32
    %c0_i32_1 = arith.constant 0 : i32
    return %c0_i32, %c0_i32_0 : i32, i32
  }
  func.func @transform_16(%arg0: i32) -> (i32, i32) {
    %c0_i32 = arith.constant 0 : i32
    %c0_i32_0 = arith.constant 0 : i32
    %c0_i32_1 = arith.constant 0 : i32
    return %c0_i32, %c0_i32_0 : i32, i32
  }
  func.func @transform_17(%arg0: i32) -> (i32, i32, i32) {
    %c0_i32 = arith.constant 0 : i32
    %c0_i32_0 = arith.constant 0 : i32
    %c0_i32_1 = arith.constant 0 : i32
    %c0_i32_2 = arith.constant 0 : i32
    return %c0_i32, %c0_i32_0, %c0_i32_1 : i32, i32, i32
  }
  func.func @transform_18(%arg0: i32) -> (i32, i32, i32) {
    %c0_i32 = arith.constant 0 : i32
    %c0_i32_0 = arith.constant 0 : i32
    %c0_i32_1 = arith.constant 0 : i32
    %c0_i32_2 = arith.constant 0 : i32
    return %c0_i32, %c0_i32_0, %c0_i32_1 : i32, i32, i32
  }
  func.func @transform_19(%arg0: i32) -> (i32, i32, i32) {
    %c0_i32 = arith.constant 0 : i32
    %c0_i32_0 = arith.constant 0 : i32
    %c0_i32_1 = arith.constant 0 : i32
    return %arg0, %c0_i32, %c0_i32_0 : i32, i32, i32
  }
}

</mosaic_0001>

<llo_original>
// kernel: neg.1
$region0: #{neg.1}
  #allocation0 [shape = 's32[1]{0}', space=sflag, size = 0x4, scoped, tag = 'scoped memory for neg.1']
  %s0 = inlined_call_operand.vmem [shape: s32[2], index: 0, kind: input, shape index: {}]
  %s1 = inlined_call_operand.vmem [shape: s32[2], index: 1, kind: output, shape index: {}]
  %v2 = vld [vmem:[%s0] sm:$0x1]
  %3 = xla_tuple %v2
  %4 = xla_tuple %3
  %v5 = vsub.s32 0, %v2
  %6 = xla_tuple %v5
  %7 = vst [vmem:[%s1] sm:$0x1] %v5

// kernel: light_decoder_forward.5
$region0: #{light_decoder_forward.5}
  #allocation0 [shape = 'u32[]', space=smem, size = 0x4, offset = 0x4, fixed_abs, tag = 'smem constant byte address 0x4 - core index']
  #allocation1 [shape = 'u32[144,128]{1,0:T(1,128)}', space=vmem, size = 0x12000, scoped, tag = 'internal scratch']
  %s0 = inlined_call_operand.vmem [shape: bf16[16,32], index: 0, kind: input, shape index: {}]
  %s1 = inlined_call_operand.vmem [shape: bf16[32,128], index: 1, kind: input, shape index: {}]
  %s2 = inlined_call_operand.vmem [shape: f32[1,128], index: 2, kind: input, shape index: {}]
  %s3 = inlined_call_operand.vmem [shape: f32[16,128], index: 3, kind: output, shape index: {}]
  %s4 = sld [smem:[#allocation0]]
  $region22: #{light_decoder_forward.5} parent=0
    _
  %s6 = ssub.s32 1, %s4
  %s7 = scalar_select 0, %s6, %s4
  // Predicated region
  $region2: #{light_decoder_forward.5} parent=0 // pred_check
    _
  $region3: #{light_decoder_forward.5} parent=0 // pred_check_branch
    %9 = sbr.rel (0) target = $region5
  $region4: #{light_decoder_forward.5} parent=0 // pred_region
    _
  $region5: #{light_decoder_forward.5} parent=0 // pred_fallthru
    _
  // Predicated region
  $region6: #{light_decoder_forward.5} parent=0 // pred_check
    _
  $region7: #{light_decoder_forward.5} parent=0 // pred_check_branch
    %11 = sbr.rel (0) target = $region9
  $region8: #{light_decoder_forward.5} parent=0 // pred_region
    _
  $region9: #{light_decoder_forward.5} parent=0 // pred_fallthru
    _
  // Predicated region
  $region10: #{light_decoder_forward.5} parent=0 // pred_check
    _
  $region11: #{light_decoder_forward.5} parent=0 // pred_check_branch
    %13 = sbr.rel (0) target = $region13
  $region12: #{light_decoder_forward.5} parent=0 // pred_region
    _
  $region13: #{light_decoder_forward.5} parent=0 // pred_fallthru
    _
  %v15 = vld [vmem:[%s0] sm:$0xf]
  %v16 = vld [vmem:[%s0 + $0x4] sm:$0xf]
  %v17 = vld [vmem:[%s1] sm:$0xf]
  %v18 = vld [vmem:[%s1 + $0x4] sm:$0xf]
  %v19 = vld [vmem:[%s1 + $0x8] sm:$0xf]
  %v20 = vld [vmem:[%s1 + $0xc] sm:$0xf]
  %v21 = vld [vmem:[%s2] sm:$0x1]
  %v23 = vlaneseq
  %v24 = vshrl.u32 %v23, 7
  %v25 = vsub.s32 0, %v24
  %v26 = vrot.slane %v21, %v25
  %v30 = vunpack.c.l.b16 %v15
  %v31 = vunpack.c.l.b16 %v16
  %v32 = vpack.c.b16 %v31, %v30
  %v37 = vunpack.c.l.b16 %v17
  %v38 = vunpack.c.l.b16 %v18
  %v39 = vunpack.c.l.b16 %v19
  %v40 = vunpack.c.l.b16 %v20
  %v41 = vpack.c.b16 %v38, %v37
  %v42 = vpack.c.b16 %v40, %v39
  %vm45 = vcmask 261120
  %v47 = vsel %vm45, %v32, 0
  %49 = vmatprep.subr.bf16.mxu0 0
  %50 = vmatpush1.bf16.msra.mxu0 %v41
  %51 = vmatprep.subr.bf16.mxu0 0
  %52 = vmatpush1.bf16.msra.mxu0 %v42
  %53 = vmatprep.subr.bf16.mxu0 0
  %54 = vmatpush1.bf16.msra.mxu0 0
  %55 = vmatprep.subr.bf16.mxu0 0
  %56 = vmatpush1.bf16.msra.mxu0 0
  %57 = vmatprep.subr.bf16.mxu0 0
  %58 = vmatpush1.bf16.msra.mxu0 0
  %59 = vmatprep.subr.bf16.mxu0 0
  %60 = vmatpush1.bf16.msra.mxu0 0
  %61 = vmatprep.subr.bf16.mxu0 0
  %62 = vmatpush1.bf16.msra.mxu0 0
  %63 = vmatprep.subr.bf16.mxu0 0
  %64 = vmatpush1.bf16.msra.mxu0 0
  %65 = vmatprep.subr.bf16.mxu0 0
  %66 = vmatpush1.bf16.msra.mxu0 0
  %67 = vmatprep.subr.bf16.mxu0 0
  %68 = vmatpush1.bf16.msra.mxu0 0
  %69 = vmatprep.subr.bf16.mxu0 0
  %70 = vmatpush1.bf16.msra.mxu0 0
  %71 = vmatprep.subr.bf16.mxu0 0
  %72 = vmatpush1.bf16.msra.mxu0 0
  %73 = vmatprep.subr.bf16.mxu0 0
  %74 = vmatpush1.bf16.msra.mxu0 0
  %75 = vmatprep.subr.bf16.mxu0 0
  %76 = vmatpush1.bf16.msra.mxu0 0
  %77 = vmatprep.subr.bf16.mxu0 0
  %78 = vmatpush1.bf16.msra.mxu0 0
  %79 = vmatprep.subr.bf16.mxu0 0
  %80 = vmatpush1.bf16.msra.mxu0 0
  %81 = vmatprep.mubr.bf16.mxu0 0
  %82 = vmatmul.mubr.bf16.gmra.mrb[0].mxu0 %v47
  %v83 = vpop.f32.mrb[0].mxu0
  %v84 = vadd.f32 %v26, %v83
  %v85 = vpop.f32.mrb[0].mxu0
  %v86 = vpop.f32.mrb[0].mxu0
  %v87 = vadd.f32 %v26, %v86
  %v88 = vpop.f32.mrb[0].mxu0
  %89 = vdwg.mxu0
  %90 = vst [vmem:[%s3] sm:$0xff] %v84
  %91 = vst [vmem:[%s3 + $0x8] sm:$0xff] %v87
  // Predicated region
  $region14: #{light_decoder_forward.5} parent=0 // pred_check
    _
  $region15: #{light_decoder_forward.5} parent=0 // pred_check_branch
    %93 = sbr.rel (0) target = $region17
  $region16: #{light_decoder_forward.5} parent=0 // pred_region
    _
  $region17: #{light_decoder_forward.5} parent=0 // pred_fallthru
    _
  // Predicated region
  $region18: #{light_decoder_forward.5} parent=0 // pred_check
    _
  $region19: #{light_decoder_forward.5} parent=0 // pred_check_branch
    %95 = sbr.rel (0) target = $region21
  $region20: #{light_decoder_forward.5} parent=0 // pred_region
    _
  $region21: #{light_decoder_forward.5} parent=0 // pred_fallthru
    _

// kernel: light_decoder_forward.3
$region0: #{light_decoder_forward.3}
  #allocation0 [shape = 'u32[]', space=smem, size = 0x4, offset = 0x4, fixed_abs, tag = 'smem constant byte address 0x4 - core index']
  #allocation1 [shape = 'u32[144,128]{1,0:T(1,128)}', space=vmem, size = 0x12000, scoped, tag = 'internal scratch']
  %s0 = inlined_call_operand.vmem [shape: f32[128,4], index: 0, kind: input, shape index: {}]
  %s1 = inlined_call_operand.vmem [shape: f32[128,4], index: 1, kind: input, shape index: {}]
  %s2 = inlined_call_operand.vmem [shape: bf16[4,32], index: 2, kind: input, shape index: {}]
  %s3 = inlined_call_operand.vmem [shape: bf16[4,32], index: 3, kind: input, shape index: {}]
  %s4 = inlined_call_operand.vmem [shape: f32[1,32], index: 4, kind: input, shape index: {}]
  %s5 = inlined_call_operand.vmem [shape: bf16[32,32], index: 5, kind: input, shape index: {}]
  %s6 = inlined_call_operand.vmem [shape: f32[1,32], index: 6, kind: input, shape index: {}]
  %s7 = inlined_call_operand.vmem [shape: bf16[9,32,32], index: 7, kind: input, shape index: {}]
  %s8 = inlined_call_operand.vmem [shape: f32[1,32], index: 8, kind: input, shape index: {}]
  %s9 = inlined_call_operand.vmem [shape: bf16[32,32], index: 9, kind: input, shape index: {}]
  %s10 = inlined_call_operand.vmem [shape: f32[1,32], index: 10, kind: input, shape index: {}]
  %s11 = inlined_call_operand.vmem [shape: bf16[2,64,32], index: 11, kind: output, shape index: {}]
  %s12 = sld [smem:[#allocation0]]
  $region77: #{light_decoder_forward.3} parent=0
    _
  %s14 = ssub.s32 1, %s12
  %s15 = scalar_select 0, %s14, %s12
  loop: start=0, step=1, limit=4
  $region2: #{light_decoder_forward.3} parent=0 // loop_pre_header
    _
  $region3: #{light_decoder_forward.3} parent=0 // loop_header
    %s17 = sphi 0, %s21
    %p18 = scmp.ge.s32.totalorder %s17, 4
    %s27 = sphi 0, %s29
    %s30 = sphi 0, %s27
    %s31 = sphi 0, %s30
    %s47 = sphi 0, %s31
    %s53 = sphi 0, %s55
    %s56 = sphi 0, %s53
    %s57 = sphi 0, %s56
    %s73 = sphi 0, %s57
    %s77 = sphi 0, %s77
    %s79 = sphi 0, %s77
    %s80 = sphi 0, %s79
    %s94 = sphi 0, %s80
    %s98 = sphi 0, %s98
    %s100 = sphi 0, %s98
    %s101 = sphi 0, %s100
    %s115 = sphi 0, %s101
    %s119 = sphi 0, %s119
    %s121 = sphi 0, %s119
    %s122 = sphi 0, %s121
    %s136 = sphi 0, %s122
    %s140 = sphi 0, %s140
    %s142 = sphi 0, %s140
    %s143 = sphi 0, %s142
    %s157 = sphi 0, %s143
    %s161 = sphi 0, %s161
    %s163 = sphi 0, %s161
    %s164 = sphi 0, %s163
    %s178 = sphi 0, %s164
    %s182 = sphi 0, %s182
    %s184 = sphi 0, %s182
    %s185 = sphi 0, %s184
    %s199 = sphi 0, %s185
    %s203 = sphi 0, %s203
    %s205 = sphi 0, %s203
    %s206 = sphi 0, %s205
    %s220 = sphi 0, %s206
    %s224 = sphi 0, %s224
    %s226 = sphi 0, %s224
    %s227 = sphi 0, %s226
    %s241 = sphi 0, %s227
    %s245 = sphi 0, %s245
    %s247 = sphi 0, %s245
    %s248 = sphi 0, %s247
    %s262 = sphi 0, %s248
    %s268 = sphi 0, %s270
    %s271 = sphi 0, %s268
    %s272 = sphi 0, %s271
    %s288 = sphi 0, %s272
  $region4: #{light_decoder_forward.3} parent=0 // loop_header_branch
    %20 = sbr.rel (%p18) target = $region8
  $region5: #{light_decoder_forward.3} parent=0 // loop_body
    %s22 = ssub.s32 %s17, 1
    %s23 = ssub.s32 %s17, 2
    %s24 = sadd.s32 %s17, 1
    %s25 = ssub.s32 %s17, %s24
    %p26 = scmp.eq.s32.totalorder %s25, 0
    %s28 = sadd.s32 %s27, 1
    %s29 = scalar_select %p26, %s27, %s28
    %p32 = pneg %p26
    %p33 = scmp.eq.s32.totalorder %s17, 1
    %p34 = por %p32, %p33
    %p35 = scmp.ne.s32.totalorder %s27, %s30
    %p36 = scmp.eq.s32.totalorder %s17, 0
    %p37 = por %p35, %p36
    %p38 = scmp.ne.s32.totalorder %s27, %s30
    %p39 = scmp.eq.s32.totalorder %s22, 1
    %p40 = por %p38, %p39
    %p41 = scmp.ne.s32.totalorder %s30, %s31
    %p42 = scmp.eq.s32.totalorder %s22, 0
    %p43 = por %p41, %p42
    %p44 = scmp.ne.s32.totalorder %s30, %s31
    %p45 = scmp.eq.s32.totalorder %s23, 1
    %p46 = por %p44, %p45
    %p48 = scmp.ne.s32.totalorder %s31, %s47
    %p49 = scmp.eq.s32.totalorder %s23, 0
    %p50 = por %p48, %p49
    %s51 = ssub.s32 %s17, %s24
    %p52 = scmp.eq.s32.totalorder %s51, 0
    %s54 = sadd.s32 %s53, 1
    %s55 = scalar_select %p52, %s53, %s54
    %p58 = pneg %p52
    %p59 = scmp.eq.s32.totalorder %s17, 1
    %p60 = por %p58, %p59
    %p61 = scmp.ne.s32.totalorder %s53, %s56
    %p62 = scmp.eq.s32.totalorder %s17, 0
    %p63 = por %p61, %p62
    %p64 = scmp.ne.s32.totalorder %s53, %s56
    %p65 = scmp.eq.s32.totalorder %s22, 1
    %p66 = por %p64, %p65
    %p67 = scmp.ne.s32.totalorder %s56, %s57
    %p68 = scmp.eq.s32.totalorder %s22, 0
    %p69 = por %p67, %p68
    %p70 = scmp.ne.s32.totalorder %s56, %s57
    %p71 = scmp.eq.s32.totalorder %s23, 1
    %p72 = por %p70, %p71
    %p74 = scmp.ne.s32.totalorder %s57, %s73
    %p75 = scmp.eq.s32.totalorder %s23, 0
    %p76 = por %p74, %p75
    %s78 = sadd.s32 %s77, 1
    %p81 = scmp.eq.s32.totalorder %s17, 1
    %p82 = scmp.ne.s32.totalorder %s77, %s79
    %p83 = scmp.eq.s32.totalorder %s17, 0
    %p84 = por %p82, %p83
    %p85 = scmp.ne.s32.totalorder %s77, %s79
    %p86 = scmp.eq.s32.totalorder %s22, 1
    %p87 = por %p85, %p86
    %p88 = scmp.ne.s32.totalorder %s79, %s80
    %p89 = scmp.eq.s32.totalorder %s22, 0
    %p90 = por %p88, %p89
    %p91 = scmp.ne.s32.totalorder %s79, %s80
    %p92 = scmp.eq.s32.totalorder %s23, 1
    %p93 = por %p91, %p92
    %p95 = scmp.ne.s32.totalorder %s80, %s94
    %p96 = scmp.eq.s32.totalorder %s23, 0
    %p97 = por %p95, %p96
    %s99 = sadd.s32 %s98, 1
    %p102 = scmp.eq.s32.totalorder %s17, 1
    %p103 = scmp.ne.s32.totalorder %s98, %s100
    %p104 = scmp.eq.s32.totalorder %s17, 0
    %p105 = por %p103, %p104
    %p106 = scmp.ne.s32.totalorder %s98, %s100
    %p107 = scmp.eq.s32.totalorder %s22, 1
    %p108 = por %p106, %p107
    %p109 = scmp.ne.s32.totalorder %s100, %s101
    %p110 = scmp.eq.s32.totalorder %s22, 0
    %p111 = por %p109, %p110
    %p112 = scmp.ne.s32.totalorder %s100, %s101
    %p113 = scmp.eq.s32.totalorder %s23, 1
    %p114 = por %p112, %p113
    %p116 = scmp.ne.s32.totalorder %s101, %s115
    %p117 = scmp.eq.s32.totalorder %s23, 0
    %p118 = por %p116, %p117
    %s120 = sadd.s32 %s119, 1
    %p123 = scmp.eq.s32.totalorder %s17, 1
    %p124 = scmp.ne.s32.totalorder %s119, %s121
    %p125 = scmp.eq.s32.totalorder %s17, 0
    %p126 = por %p124, %p125
    %p127 = scmp.ne.s32.totalorder %s119, %s121
    %p128 = scmp.eq.s32.totalorder %s22, 1
    %p129 = por %p127, %p128
    %p130 = scmp.ne.s32.totalorder %s121, %s122
    %p131 = scmp.eq.s32.totalorder %s22, 0
    %p132 = por %p130, %p131
    %p133 = scmp.ne.s32.totalorder %s121, %s122
    %p134 = scmp.eq.s32.totalorder %s23, 1
    %p135 = por %p133, %p134
    %p137 = scmp.ne.s32.totalorder %s122, %s136
    %p138 = scmp.eq.s32.totalorder %s23, 0
    %p139 = por %p137, %p138
    %s141 = sadd.s32 %s140, 1
    %p144 = scmp.eq.s32.totalorder %s17, 1
    %p145 = scmp.ne.s32.totalorder %s140, %s142
    %p146 = scmp.eq.s32.totalorder %s17, 0
    %p147 = por %p145, %p146
    %p148 = scmp.ne.s32.totalorder %s140, %s142
    %p149 = scmp.eq.s32.totalorder %s22, 1
    %p150 = por %p148, %p149
    %p151 = scmp.ne.s32.totalorder %s142, %s143
    %p152 = scmp.eq.s32.totalorder %s22, 0
    %p153 = por %p151, %p152
    %p154 = scmp.ne.s32.totalorder %s142, %s143
    %p155 = scmp.eq.s32.totalorder %s23, 1
    %p156 = por %p154, %p155
    %p158 = scmp.ne.s32.totalorder %s143, %s157
    %p159 = scmp.eq.s32.totalorder %s23, 0
    %p160 = por %p158, %p159
    %s162 = sadd.s32 %s161, 1
    %p165 = scmp.eq.s32.totalorder %s17, 1
    %p166 = scmp.ne.s32.totalorder %s161, %s163
    %p167 = scmp.eq.s32.totalorder %s17, 0
    %p168 = por %p166, %p167
    %p169 = scmp.ne.s32.totalorder %s161, %s163
    %p170 = scmp.eq.s32.totalorder %s22, 1
    %p171 = por %p169, %p170
    %p172 = scmp.ne.s32.totalorder %s163, %s164
    %p173 = scmp.eq.s32.totalorder %s22, 0
    %p174 = por %p172, %p173
    %p175 = scmp.ne.s32.totalorder %s163, %s164
    %p176 = scmp.eq.s32.totalorder %s23, 1
    %p177 = por %p175, %p176
    %p179 = scmp.ne.s32.totalorder %s164, %s178
    %p180 = scmp.eq.s32.totalorder %s23, 0
    %p181 = por %p179, %p180
    %s183 = sadd.s32 %s182, 1
    %p186 = scmp.eq.s32.totalorder %s17, 1
    %p187 = scmp.ne.s32.totalorder %s182, %s184
    %p188 = scmp.eq.s32.totalorder %s17, 0
    %p189 = por %p187, %p188
    %p190 = scmp.ne.s32.totalorder %s182, %s184
    %p191 = scmp.eq.s32.totalorder %s22, 1
    %p192 = por %p190, %p191
    %p193 = scmp.ne.s32.totalorder %s184, %s185
    %p194 = scmp.eq.s32.totalorder %s22, 0
    %p195 = por %p193, %p194
    %p196 = scmp.ne.s32.totalorder %s184, %s185
    %p197 = scmp.eq.s32.totalorder %s23, 1
    %p198 = por %p196, %p197
    %p200 = scmp.ne.s32.totalorder %s185, %s199
    %p201 = scmp.eq.s32.totalorder %s23, 0
    %p202 = por %p200, %p201
    %s204 = sadd.s32 %s203, 1
    %p207 = scmp.eq.s32.totalorder %s17, 1
    %p208 = scmp.ne.s32.totalorder %s203, %s205
    %p209 = scmp.eq.s32.totalorder %s17, 0
    %p210 = por %p208, %p209
    %p211 = scmp.ne.s32.totalorder %s203, %s205
    %p212 = scmp.eq.s32.totalorder %s22, 1
    %p213 = por %p211, %p212
    %p214 = scmp.ne.s32.totalorder %s205, %s206
    %p215 = scmp.eq.s32.totalorder %s22, 0
    %p216 = por %p214, %p215
    %p217 = scmp.ne.s32.totalorder %s205, %s206
    %p218 = scmp.eq.s32.totalorder %s23, 1
    %p219 = por %p217, %p218
    %p221 = scmp.ne.s32.totalorder %s206, %s220
    %p222 = scmp.eq.s32.totalorder %s23, 0
    %p223 = por %p221, %p222
    %s225 = sadd.s32 %s224, 1
    %p228 = scmp.eq.s32.totalorder %s17, 1
    %p229 = scmp.ne.s32.totalorder %s224, %s226
    %p230 = scmp.eq.s32.totalorder %s17, 0
    %p231 = por %p229, %p230
    %p232 = scmp.ne.s32.totalorder %s224, %s226
    %p233 = scmp.eq.s32.totalorder %s22, 1
    %p234 = por %p232, %p233
    %p235 = scmp.ne.s32.totalorder %s226, %s227
    %p236 = scmp.eq.s32.totalorder %s22, 0
    %p237 = por %p235, %p236
    %p238 = scmp.ne.s32.totalorder %s226, %s227
    %p239 = scmp.eq.s32.totalorder %s23, 1
    %p240 = por %p238, %p239
    %p242 = scmp.ne.s32.totalorder %s227, %s241
    %p243 = scmp.eq.s32.totalorder %s23, 0
    %p244 = por %p242, %p243
    %s246 = sadd.s32 %s245, 1
    %p249 = scmp.eq.s32.totalorder %s17, 1
    %p250 = scmp.ne.s32.totalorder %s245, %s247
    %p251 = scmp.eq.s32.totalorder %s17, 0
    %p252 = por %p250, %p251
    %p253 = scmp.ne.s32.totalorder %s245, %s247
    %p254 = scmp.eq.s32.totalorder %s22, 1
    %p255 = por %p253, %p254
    %p256 = scmp.ne.s32.totalorder %s247, %s248
    %p257 = scmp.eq.s32.totalorder %s22, 0
    %p258 = por %p256, %p257
    %p259 = scmp.ne.s32.totalorder %s247, %s248
    %p260 = scmp.eq.s32.totalorder %s23, 1
    %p261 = por %p259, %p260
    %p263 = scmp.ne.s32.totalorder %s248, %s262
    %p264 = scmp.eq.s32.totalorder %s23, 0
    %p265 = por %p263, %p264
    %s266 = ssub.s32 %s17, %s24
    %p267 = scmp.eq.s32.totalorder %s266, 0
    %s269 = sadd.s32 %s268, 1
    %s270 = scalar_select %p267, %s268, %s269
    %p273 = pneg %p267
    %p274 = scmp.eq.s32.totalorder %s17, 1
    %p275 = por %p273, %p274
    %p276 = scmp.ne.s32.totalorder %s268, %s271
    %p277 = scmp.eq.s32.totalorder %s17, 0
    %p278 = por %p276, %p277
    %p279 = scmp.ne.s32.totalorder %s268, %s271
    %p280 = scmp.eq.s32.totalorder %s22, 1
    %p281 = por %p279, %p280
    %p282 = scmp.ne.s32.totalorder %s271, %s272
    %p283 = scmp.eq.s32.totalorder %s22, 0
    %p284 = por %p282, %p283
    %p285 = scmp.ne.s32.totalorder %s271, %s272
    %p286 = scmp.eq.s32.totalorder %s23, 1
    %p287 = por %p285, %p286
    %p289 = scmp.ne.s32.totalorder %s272, %s288
    %p290 = scmp.eq.s32.totalorder %s23, 0
    %p291 = por %p289, %p290
    %p292 = scmp.le.s32.totalorder 1, %s17
    %p293 = scmp.lt.s32.totalorder %s17, 3
    %p294 = pnand %p292, %p293
    %p295 = pneg %p294
    // Predicated region
    $region9: #{light_decoder_forward.3} parent=5 // pred_check
      _
    $region10: #{light_decoder_forward.3} parent=5 // pred_check_branch
      %297 = sbr.rel (%p294) target = $region12
    $region11: #{light_decoder_forward.3} parent=5 // pred_region
      %s298 = ssub.s32 %s17, 1
      // Predicated region
      $region13: #{light_decoder_forward.3} parent=11 // pred_check
        %p299 = pneg %p90
      $region14: #{light_decoder_forward.3} parent=11 // pred_check_branch
        %301 = sbr.rel (%p299) target = $region16
      $region15: #{light_decoder_forward.3} parent=11 // pred_region
        _
      $region16: #{light_decoder_forward.3} parent=11 // pred_fallthru
        _
      // Predicated region
      $region17: #{light_decoder_forward.3} parent=11 // pred_check
        %p302 = pneg %p111
      $region18: #{light_decoder_forward.3} parent=11 // pred_check_branch
        %304 = sbr.rel (%p302) target = $region20
      $region19: #{light_decoder_forward.3} parent=11 // pred_region
        _
      $region20: #{light_decoder_forward.3} parent=11 // pred_fallthru
        _
      // Predicated region
      $region21: #{light_decoder_forward.3} parent=11 // pred_check
        %p305 = pneg %p132
      $region22: #{light_decoder_forward.3} parent=11 // pred_check_branch
        %307 = sbr.rel (%p305) target = $region24
      $region23: #{light_decoder_forward.3} parent=11 // pred_region
        _
      $region24: #{light_decoder_forward.3} parent=11 // pred_fallthru
        _
      // Predicated region
      $region25: #{light_decoder_forward.3} parent=11 // pred_check
        %p308 = pneg %p153
      $region26: #{light_decoder_forward.3} parent=11 // pred_check_branch
        %310 = sbr.rel (%p308) target = $region28
      $region27: #{light_decoder_forward.3} parent=11 // pred_region
        _
      $region28: #{light_decoder_forward.3} parent=11 // pred_fallthru
        _
      // Predicated region
      $region29: #{light_decoder_forward.3} parent=11 // pred_check
        %p311 = pneg %p174
      $region30: #{light_decoder_forward.3} parent=11 // pred_check_branch
        %313 = sbr.rel (%p311) target = $region32
      $region31: #{light_decoder_forward.3} parent=11 // pred_region
        _
      $region32: #{light_decoder_forward.3} parent=11 // pred_fallthru
        _
      // Predicated region
      $region33: #{light_decoder_forward.3} parent=11 // pred_check
        %p314 = pneg %p195
      $region34: #{light_decoder_forward.3} parent=11 // pred_check_branch
        %316 = sbr.rel (%p314) target = $region36
      $region35: #{light_decoder_forward.3} parent=11 // pred_region
        _
      $region36: #{light_decoder_forward.3} parent=11 // pred_fallthru
        _
      // Predicated region
      $region37: #{light_decoder_forward.3} parent=11 // pred_check
        %p317 = pneg %p216
      $region38: #{light_decoder_forward.3} parent=11 // pred_check_branch
        %319 = sbr.rel (%p317) target = $region40
      $region39: #{light_decoder_forward.3} parent=11 // pred_region
        _
      $region40: #{light_decoder_forward.3} parent=11 // pred_fallthru
        _
      // Predicated region
      $region41: #{light_decoder_forward.3} parent=11 // pred_check
        %p320 = pneg %p237
      $region42: #{light_decoder_forward.3} parent=11 // pred_check_branch
        %322 = sbr.rel (%p320) target = $region44
      $region43: #{light_decoder_forward.3} parent=11 // pred_region
        _
      $region44: #{light_decoder_forward.3} parent=11 // pred_fallthru
        _
      // Predicated region
      $region45: #{light_decoder_forward.3} parent=11 // pred_check
        %p323 = pneg %p258
      $region46: #{light_decoder_forward.3} parent=11 // pred_check_branch
        %325 = sbr.rel (%p323) target = $region48
      $region47: #{light_decoder_forward.3} parent=11 // pred_region
        _
      $region48: #{light_decoder_forward.3} parent=11 // pred_fallthru
        _
    $region12: #{light_decoder_forward.3} parent=5 // pred_fallthru
      _
    %p326 = scmp.lt.s32.totalorder %s17, 2
    // Predicated region
    $region49: #{light_decoder_forward.3} parent=5 // pred_check
      %p327 = pneg %p326
    $region50: #{light_decoder_forward.3} parent=5 // pred_check_branch
      %329 = sbr.rel (%p327) target = $region52
    $region51: #{light_decoder_forward.3} parent=5 // pred_region
      // Predicated region
      $region53: #{light_decoder_forward.3} parent=51 // pred_check
        %p330 = pneg %p37
      $region54: #{light_decoder_forward.3} parent=51 // pred_check_branch
        %332 = sbr.rel (%p330) target = $region56
      $region55: #{light_decoder_forward.3} parent=51 // pred_region
        %s333 = smul.u32 8, %s17
        %p334 = scmp.lt.s32.totalorder %s333, 15
        %s335 = scalar_select %p334, %s333, 15
        %s336 = smul.addr %s335, 8
        %s337 = scalar_lea.vmem %s0, %s336
        %s338 = smul.u32 8, %s17
      $region56: #{light_decoder_forward.3} parent=51 // pred_fallthru
        _
      // Predicated region
      $region57: #{light_decoder_forward.3} parent=51 // pred_check
        %p339 = pneg %p63
      $region58: #{light_decoder_forward.3} parent=51 // pred_check_branch
        %341 = sbr.rel (%p339) target = $region60
      $region59: #{light_decoder_forward.3} parent=51 // pred_region
        %s342 = smul.u32 8, %s17
        %p343 = scmp.lt.s32.totalorder %s342, 15
        %s344 = scalar_select %p343, %s342, 15
        %s345 = smul.addr %s344, 8
        %s346 = scalar_lea.vmem %s1, %s345
        %s347 = smul.u32 8, %s17
      $region60: #{light_decoder_forward.3} parent=51 // pred_fallthru
        _
    $region52: #{light_decoder_forward.3} parent=5 // pred_fallthru
      _
    %p348 = scmp.le.s32.totalorder 1, %s17
    %p349 = scmp.lt.s32.totalorder %s17, 3
    %p350 = pnand %p348, %p349
    %p351 = pneg %p350
    // Predicated region
    $region61: #{light_decoder_forward.3} parent=5 // pred_check
      _
    $region62: #{light_decoder_forward.3} parent=5 // pred_check_branch
      %353 = sbr.rel (%p350) target = $region64
    $region63: #{light_decoder_forward.3} parent=5 // pred_region
      %s354 = ssub.s32 %s17, 1
      %s355 = smul.u32 8, %s22
      %p356 = scmp.lt.s32.totalorder %s355, 15
      %s357 = scalar_select %p356, %s355, 15
      %s358 = smul.addr %s357, 8
      %s359 = scalar_lea.vmem %s0, %s358
      %p360 = pneg %p43
      %p361 = pneg %p40
      %s362 = smul.u32 8, %s22
      %p363 = scmp.lt.s32.totalorder %s362, 15
      %s364 = scalar_select %p363, %s362, 15
      %s365 = smul.addr %s364, 8
      %s366 = scalar_lea.vmem %s1, %s365
      %p367 = pneg %p69
      %p368 = pneg %p66
      %p369 = pneg %p90
      %p370 = pneg %p87
      %p371 = pneg %p111
      %p372 = pneg %p108
      %p373 = pneg %p132
      %p374 = pneg %p129
      %p375 = pneg %p153
      %p376 = pneg %p150
      %p377 = pneg %p174
      %p378 = pneg %p171
      %p379 = pneg %p195
      %p380 = pneg %p192
      %p381 = pneg %p216
      %p382 = pneg %p213
      %p383 = pneg %p237
      %p384 = pneg %p234
      %p385 = pneg %p258
      %p386 = pneg %p255
      %p387 = pneg %p284
      %p388 = pneg %p281
      %p389 = scmp.lt.s32.totalorder %s22, 1
      %s390 = scalar_select %p389, %s22, 1
      %s391 = smul.addr %s390, 8
      %s392 = smul.addr %s391, 4
      %s393 = scalar_lea.vmem %s11, %s392
      %s394 = smul.u32 8, %s22
      %p395 = scmp.lt.s32.totalorder %s394, 15
      %s396 = scalar_select %p395, %s394, 15
      %s397 = smul.addr %s396, 8
      %s398 = scalar_lea.vmem %s0, %s397
      %s399 = smul.u32 8, %s22
      %s400 = smul.u32 8, %s22
      %p401 = scmp.lt.s32.totalorder %s400, 15
      %s402 = scalar_select %p401, %s400, 15
      %s403 = smul.addr %s402, 8
      %s404 = scalar_lea.vmem %s1, %s403
      %s405 = smul.u32 8, %s22
      %p406 = scmp.lt.s32.totalorder %s22, 1
      %s407 = scalar_select %p406, %s22, 1
      %s408 = smul.addr %s407, 8
      %s409 = smul.addr %s408, 4
      %s410 = scalar_lea.vmem %s11, %s409
      %v412 = vld [vmem:[%s398] sm:$0xff]
      %v413 = vld [vmem:[%s398 + $0x8] sm:$0xff]
      %v414 = vld [vmem:[%s398 + $0x10] sm:$0xff]
      %v415 = vld [vmem:[%s398 + $0x18] sm:$0xff]
      %v416 = vld [vmem:[%s398 + $0x20] sm:$0xff]
      %v417 = vld [vmem:[%s398 + $0x28] sm:$0xff]
      %v418 = vld [vmem:[%s398 + $0x30] sm:$0xff]
      %v419 = vld [vmem:[%s398 + $0x38] sm:$0xff]
      %v420 = vld [vmem:[%s404] sm:$0xff]
      %v421 = vld [vmem:[%s404 + $0x8] sm:$0xff]
      %v422 = vld [vmem:[%s404 + $0x10] sm:$0xff]
      %v423 = vld [vmem:[%s404 + $0x18] sm:$0xff]
      %v424 = vld [vmem:[%s404 + $0x20] sm:$0xff]
      %v425 = vld [vmem:[%s404 + $0x28] sm:$0xff]
      %v426 = vld [vmem:[%s404 + $0x30] sm:$0xff]
      %v427 = vld [vmem:[%s404 + $0x38] sm:$0xff]
      %v428 = vmul.f32 %v412, %v420
      %v429 = vmul.f32 %v413, %v421
      %v430 = vmul.f32 %v414, %v422
      %v431 = vmul.f32 %v415, %v423
      %v432 = vmul.f32 %v416, %v424
      %v433 = vmul.f32 %v417, %v425
      %v434 = vmul.f32 %v418, %v426
      %v435 = vmul.f32 %v419, %v427
      %vm436 = vcmask 31744
      %v437 = vsel %vm436, %v428, 0.0
      %438 = vadd.xlane.f32.xlu0 %v437
      %v439 = vpop.xlane.xlu0 %438
      %v440 = vsel %vm436, %v429, 0.0
      %441 = vadd.xlane.f32.xlu0 %v440
      %v442 = vpop.xlane.xlu0 %441
      %v443 = vsel %vm436, %v430, 0.0
      %444 = vadd.xlane.f32.xlu0 %v443
      %v445 = vpop.xlane.xlu0 %444
      %v446 = vsel %vm436, %v431, 0.0
      %447 = vadd.xlane.f32.xlu0 %v446
      %v448 = vpop.xlane.xlu0 %447
      %v449 = vsel %vm436, %v432, 0.0
      %450 = vadd.xlane.f32.xlu0 %v449
      %v451 = vpop.xlane.xlu0 %450
      %v452 = vsel %vm436, %v433, 0.0
      %453 = vadd.xlane.f32.xlu0 %v452
      %v454 = vpop.xlane.xlu0 %453
      %v455 = vsel %vm436, %v434, 0.0
      %456 = vadd.xlane.f32.xlu0 %v455
      %v457 = vpop.xlane.xlu0 %456
      %v458 = vsel %vm436, %v435, 0.0
      %459 = vadd.xlane.f32.xlu0 %v458
      %v460 = vpop.xlane.xlu0 %459
      %v461 = vmul.f32 %v412, %v412
      %v462 = vmul.f32 %v413, %v413
      %v463 = vmul.f32 %v414, %v414
      %v464 = vmul.f32 %v415, %v415
      %v465 = vmul.f32 %v416, %v416
      %v466 = vmul.f32 %v417, %v417
      %v467 = vmul.f32 %v418, %v418
      %v468 = vmul.f32 %v419, %v419
      %v469 = vsel %vm436, %v461, 0.0
      %470 = vadd.xlane.f32.xlu0 %v469
      %v471 = vpop.xlane.xlu0 %470
      %v472 = vsel %vm436, %v462, 0.0
      %473 = vadd.xlane.f32.xlu0 %v472
      %v474 = vpop.xlane.xlu0 %473
      %v475 = vsel %vm436, %v463, 0.0
      %476 = vadd.xlane.f32.xlu0 %v475
      %v477 = vpop.xlane.xlu0 %476
      %v478 = vsel %vm436, %v464, 0.0
      %479 = vadd.xlane.f32.xlu0 %v478
      %v480 = vpop.xlane.xlu0 %479
      %v481 = vsel %vm436, %v465, 0.0
      %482 = vadd.xlane.f32.xlu0 %v481
      %v483 = vpop.xlane.xlu0 %482
      %v484 = vsel %vm436, %v466, 0.0
      %485 = vadd.xlane.f32.xlu0 %v484
      %v486 = vpop.xlane.xlu0 %485
      %v487 = vsel %vm436, %v467, 0.0
      %488 = vadd.xlane.f32.xlu0 %v487
      %v489 = vpop.xlane.xlu0 %488
      %v490 = vsel %vm436, %v468, 0.0
      %491 = vadd.xlane.f32.xlu0 %v490
      %v492 = vpop.xlane.xlu0 %491
      %v493 = vrsqrt.pop %v471
      %v494 = vmul.f32 %v471, %v493
      %vm495 = vcmp.eq.f32.partialorder %v471, inf
      %v496 = vsel %vm495, %v471, %v494
      %vm497 = vcmp.eq.f32.partialorder %v471, 0.0
      %v498 = vand.u32 %v471, 2147483648
      %v499 = vsel %vm497, %v498, %v496
      %v500 = vrsqrt.pop %v474
      %v501 = vmul.f32 %v474, %v500
      %vm502 = vcmp.eq.f32.partialorder %v474, inf
      %v503 = vsel %vm502, %v474, %v501
      %vm504 = vcmp.eq.f32.partialorder %v474, 0.0
      %v505 = vand.u32 %v474, 2147483648
      %v506 = vsel %vm504, %v505, %v503
      %v507 = vrsqrt.pop %v477
      %v508 = vmul.f32 %v477, %v507
      %vm509 = vcmp.eq.f32.partialorder %v477, inf
      %v510 = vsel %vm509, %v477, %v508
      %vm511 = vcmp.eq.f32.partialorder %v477, 0.0
      %v512 = vand.u32 %v477, 2147483648
      %v513 = vsel %vm511, %v512, %v510
      %v514 = vrsqrt.pop %v480
      %v515 = vmul.f32 %v480, %v514
      %vm516 = vcmp.eq.f32.partialorder %v480, inf
      %v517 = vsel %vm516, %v480, %v515
      %vm518 = vcmp.eq.f32.partialorder %v480, 0.0
      %v519 = vand.u32 %v480, 2147483648
      %v520 = vsel %vm518, %v519, %v517
      %v521 = vrsqrt.pop %v483
      %v522 = vmul.f32 %v483, %v521
      %vm523 = vcmp.eq.f32.partialorder %v483, inf
      %v524 = vsel %vm523, %v483, %v522
      %vm525 = vcmp.eq.f32.partialorder %v483, 0.0
      %v526 = vand.u32 %v483, 2147483648
      %v527 = vsel %vm525, %v526, %v524
      %v528 = vrsqrt.pop %v486
      %v529 = vmul.f32 %v486, %v528
      %vm530 = vcmp.eq.f32.partialorder %v486, inf
      %v531 = vsel %vm530, %v486, %v529
      %vm532 = vcmp.eq.f32.partialorder %v486, 0.0
      %v533 = vand.u32 %v486, 2147483648
      %v534 = vsel %vm532, %v533, %v531
      %v535 = vrsqrt.pop %v489
      %v536 = vmul.f32 %v489, %v535
      %vm537 = vcmp.eq.f32.partialorder %v489, inf
      %v538 = vsel %vm537, %v489, %v536
      %vm539 = vcmp.eq.f32.partialorder %v489, 0.0
      %v540 = vand.u32 %v489, 2147483648
      %v541 = vsel %vm539, %v540, %v538
      %v542 = vrsqrt.pop %v492
      %v543 = vmul.f32 %v492, %v542
      %vm544 = vcmp.eq.f32.partialorder %v492, inf
      %v545 = vsel %vm544, %v492, %v543
      %vm546 = vcmp.eq.f32.partialorder %v492, 0.0
      %v547 = vand.u32 %v492, 2147483648
      %v548 = vsel %vm546, %v547, %v545
      %v549 = vmul.f32 %v420, %v420
      %v550 = vmul.f32 %v421, %v421
      %v551 = vmul.f32 %v422, %v422
      %v552 = vmul.f32 %v423, %v423
      %v553 = vmul.f32 %v424, %v424
      %v554 = vmul.f32 %v425, %v425
      %v555 = vmul.f32 %v426, %v426
      %v556 = vmul.f32 %v427, %v427
      %v557 = vsel %vm436, %v549, 0.0
      %558 = vadd.xlane.f32.xlu0 %v557
      %v559 = vpop.xlane.xlu0 %558
      %v560 = vsel %vm436, %v550, 0.0
      %561 = vadd.xlane.f32.xlu0 %v560
      %v562 = vpop.xlane.xlu0 %561
      %v563 = vsel %vm436, %v551, 0.0
      %564 = vadd.xlane.f32.xlu0 %v563
      %v565 = vpop.xlane.xlu0 %564
      %v566 = vsel %vm436, %v552, 0.0
      %567 = vadd.xlane.f32.xlu0 %v566
      %v568 = vpop.xlane.xlu0 %567
      %v569 = vsel %vm436, %v553, 0.0
      %570 = vadd.xlane.f32.xlu0 %v569
      %v571 = vpop.xlane.xlu0 %570
      %v572 = vsel %vm436, %v554, 0.0
      %573 = vadd.xlane.f32.xlu0 %v572
      %v574 = vpop.xlane.xlu0 %573
      %v575 = vsel %vm436, %v555, 0.0
      %576 = vadd.xlane.f32.xlu0 %v575
      %v577 = vpop.xlane.xlu0 %576
      %v578 = vsel %vm436, %v556, 0.0
      %579 = vadd.xlane.f32.xlu0 %v578
      %v580 = vpop.xlane.xlu0 %579
      %v581 = vrsqrt.pop %v559
      %v582 = vmul.f32 %v559, %v581
      %vm583 = vcmp.eq.f32.partialorder %v559, inf
      %v584 = vsel %vm583, %v559, %v582
      %vm585 = vcmp.eq.f32.partialorder %v559, 0.0
      %v586 = vand.u32 %v559, 2147483648
      %v587 = vsel %vm585, %v586, %v584
      %v588 = vrsqrt.pop %v562
      %v589 = vmul.f32 %v562, %v588
      %vm590 = vcmp.eq.f32.partialorder %v562, inf
      %v591 = vsel %vm590, %v562, %v589
      %vm592 = vcmp.eq.f32.partialorder %v562, 0.0
      %v593 = vand.u32 %v562, 2147483648
      %v594 = vsel %vm592, %v593, %v591
      %v595 = vrsqrt.pop %v565
      %v596 = vmul.f32 %v565, %v595
      %vm597 = vcmp.eq.f32.partialorder %v565, inf
      %v598 = vsel %vm597, %v565, %v596
      %vm599 = vcmp.eq.f32.partialorder %v565, 0.0
      %v600 = vand.u32 %v565, 2147483648
      %v601 = vsel %vm599, %v600, %v598
      %v602 = vrsqrt.pop %v568
      %v603 = vmul.f32 %v568, %v602
      %vm604 = vcmp.eq.f32.partialorder %v568, inf
      %v605 = vsel %vm604, %v568, %v603
      %vm606 = vcmp.eq.f32.partialorder %v568, 0.0
      %v607 = vand.u32 %v568, 2147483648
      %v608 = vsel %vm606, %v607, %v605
      %v609 = vrsqrt.pop %v571
      %v610 = vmul.f32 %v571, %v609
      %vm611 = vcmp.eq.f32.partialorder %v571, inf
      %v612 = vsel %vm611, %v571, %v610
      %vm613 = vcmp.eq.f32.partialorder %v571, 0.0
      %v614 = vand.u32 %v571, 2147483648
      %v615 = vsel %vm613, %v614, %v612
      %v616 = vrsqrt.pop %v574
      %v617 = vmul.f32 %v574, %v616
      %vm618 = vcmp.eq.f32.partialorder %v574, inf
      %v619 = vsel %vm618, %v574, %v617
      %vm620 = vcmp.eq.f32.partialorder %v574, 0.0
      %v621 = vand.u32 %v574, 2147483648
      %v622 = vsel %vm620, %v621, %v619
      %v623 = vrsqrt.pop %v577
      %v624 = vmul.f32 %v577, %v623
      %vm625 = vcmp.eq.f32.partialorder %v577, inf
      %v626 = vsel %vm625, %v577, %v624
      %vm627 = vcmp.eq.f32.partialorder %v577, 0.0
      %v628 = vand.u32 %v577, 2147483648
      %v629 = vsel %vm627, %v628, %v626
      %v630 = vrsqrt.pop %v580
      %v631 = vmul.f32 %v580, %v630
      %vm632 = vcmp.eq.f32.partialorder %v580, inf
      %v633 = vsel %vm632, %v580, %v631
      %vm634 = vcmp.eq.f32.partialorder %v580, 0.0
      %v635 = vand.u32 %v580, 2147483648
      %v636 = vsel %vm634, %v635, %v633
      %v637 = vmul.f32 %v499, %v587
      %v638 = vmul.f32 %v506, %v594
      %v639 = vmul.f32 %v513, %v601
      %v640 = vmul.f32 %v520, %v608
      %v641 = vmul.f32 %v527, %v615
      %v642 = vmul.f32 %v534, %v622
      %v643 = vmul.f32 %v541, %v629
      %v644 = vmul.f32 %v548, %v636
      %v645 = vmax.f32 %v637, 1e-08
      %v646 = vmax.f32 %v638, 1e-08
      %v647 = vmax.f32 %v639, 1e-08
      %v648 = vmax.f32 %v640, 1e-08
      %v649 = vmax.f32 %v641, 1e-08
      %v650 = vmax.f32 %v642, 1e-08
      %v651 = vmax.f32 %v643, 1e-08
      %v652 = vmax.f32 %v644, 1e-08
      %v653 = vrcp.pop %v645
      %v654 = vmul.f32 %v439, %v653
      %v655 = vrcp.pop %v646
      %v656 = vmul.f32 %v442, %v655
      %v657 = vrcp.pop %v647
      %v658 = vmul.f32 %v445, %v657
      %v659 = vrcp.pop %v648
      %v660 = vmul.f32 %v448, %v659
      %v661 = vrcp.pop %v649
      %v662 = vmul.f32 %v451, %v661
      %v663 = vrcp.pop %v650
      %v664 = vmul.f32 %v454, %v663
      %v665 = vrcp.pop %v651
      %v666 = vmul.f32 %v457, %v665
      %v667 = vrcp.pop %v652
      %v668 = vmul.f32 %v460, %v667
      %v669 = vadd.f32 %v412, %v654
      %v670 = vadd.f32 %v413, %v656
      %v671 = vadd.f32 %v414, %v658
      %v672 = vadd.f32 %v415, %v660
      %v673 = vadd.f32 %v416, %v662
      %v674 = vadd.f32 %v417, %v664
      %v675 = vadd.f32 %v418, %v666
      %v676 = vadd.f32 %v419, %v668
      %v677 = vpack.c.bf16 %v670, %v669
      %v678 = vpack.c.bf16 %v672, %v671
      %v679 = vpack.c.bf16 %v674, %v673
      %v680 = vpack.c.bf16 %v676, %v675
      %v681 = vld [vmem:[%s2] sm:$0x3]
      %v682 = vadd.f32 %v420, %v654
      %v683 = vadd.f32 %v421, %v656
      %v684 = vadd.f32 %v422, %v658
      %v685 = vadd.f32 %v423, %v660
      %v686 = vadd.f32 %v424, %v662
      %v687 = vadd.f32 %v425, %v664
      %v688 = vadd.f32 %v426, %v666
      %v689 = vadd.f32 %v427, %v668
      %v690 = vpack.c.bf16 %v683, %v682
      %v691 = vpack.c.bf16 %v685, %v684
      %v692 = vpack.c.bf16 %v687, %v686
      %v693 = vpack.c.bf16 %v689, %v688
      %v694 = vld [vmem:[%s3] sm:$0x3]
      %v696 = vsel %vm436, %v690, 0
      %v699 = vsel %vm436, %v691, 0
      %v702 = vsel %vm436, %v692, 0
      %v705 = vsel %vm436, %v693, 0
      %vm707 = vcmask 1041408
      %v709 = vsel %vm707, %v694, 0
      %711 = vmatprep.subr.bf16.mxu0 0
      %712 = vmatpush1.bf16.msra.mxu0 %v709
      %713 = vmatprep.subr.bf16.mxu0 0
      %714 = vmatpush1.bf16.msra.mxu0 0
      %715 = vmatprep.subr.bf16.mxu0 0
      %716 = vmatpush1.bf16.msra.mxu0 0
      %717 = vmatprep.subr.bf16.mxu0 0
      %718 = vmatpush1.bf16.msra.mxu0 0
      %719 = vmatprep.subr.bf16.mxu0 0
      %720 = vmatpush1.bf16.msra.mxu0 0
      %721 = vmatprep.subr.bf16.mxu0 0
      %722 = vmatpush1.bf16.msra.mxu0 0
      %723 = vmatprep.subr.bf16.mxu0 0
      %724 = vmatpush1.bf16.msra.mxu0 0
      %725 = vmatprep.subr.bf16.mxu0 0
      %726 = vmatpush1.bf16.msra.mxu0 0
      %727 = vmatprep.subr.bf16.mxu0 0
      %728 = vmatpush1.bf16.msra.mxu0 0
      %729 = vmatprep.subr.bf16.mxu0 0
      %730 = vmatpush1.bf16.msra.mxu0 0
      %731 = vmatprep.subr.bf16.mxu0 0
      %732 = vmatpush1.bf16.msra.mxu0 0
      %733 = vmatprep.subr.bf16.mxu0 0
      %734 = vmatpush1.bf16.msra.mxu0 0
      %735 = vmatprep.subr.bf16.mxu0 0
      %736 = vmatpush1.bf16.msra.mxu0 0
      %737 = vmatprep.subr.bf16.mxu0 0
      %738 = vmatpush1.bf16.msra.mxu0 0
      %739 = vmatprep.subr.bf16.mxu0 0
      %740 = vmatpush1.bf16.msra.mxu0 0
      %741 = vmatprep.subr.bf16.mxu0 0
      %742 = vmatpush1.bf16.msra.mxu0 0
      %743 = vmatprep.mubr.bf16.mxu0 0
      %744 = vmatmul.mubr.bf16.gmra.mrb[0].mxu0 %v696
      %v745 = vpop.f32.mrb[0].mxu0
      %v746 = vadd.f32 0.0, %v745
      %v747 = vpop.f32.mrb[0].mxu0
      %v748 = vpop.f32.mrb[0].mxu0
      %v749 = vadd.f32 0.0, %v748
      %v750 = vpop.f32.mrb[0].mxu0
      %751 = vmatprep.mubr.bf16.mxu0 0
      %752 = vmatmul.mubr.bf16.gmra.mrb[0].mxu0 %v699
      %v753 = vpop.f32.mrb[0].mxu0
      %v754 = vadd.f32 0.0, %v753
      %v755 = vpop.f32.mrb[0].mxu0
      %v756 = vpop.f32.mrb[0].mxu0
      %v757 = vadd.f32 0.0, %v756
      %v758 = vpop.f32.mrb[0].mxu0
      %759 = vmatprep.mubr.bf16.mxu0 0
      %760 = vmatmul.mubr.bf16.gmra.mrb[0].mxu0 %v702
      %v761 = vpop.f32.mrb[0].mxu0
      %v762 = vadd.f32 0.0, %v761
      %v763 = vpop.f32.mrb[0].mxu0
      %v764 = vpop.f32.mrb[0].mxu0
      %v765 = vadd.f32 0.0, %v764
      %v766 = vpop.f32.mrb[0].mxu0
      %767 = vmatprep.mubr.bf16.mxu0 0
      %768 = vmatmul.mubr.bf16.gmra.mrb[0].mxu0 %v705
      %v769 = vpop.f32.mrb[0].mxu0
      %v770 = vadd.f32 0.0, %v769
      %v771 = vpop.f32.mrb[0].mxu0
      %v772 = vpop.f32.mrb[0].mxu0
      %v773 = vadd.f32 0.0, %v772
      %v774 = vpop.f32.mrb[0].mxu0
      %775 = vdwg.mxu0
      %v777 = vsel %vm436, %v677, 0
      %v780 = vsel %vm436, %v678, 0
      %v783 = vsel %vm436, %v679, 0
      %v786 = vsel %vm436, %v680, 0
      %v789 = vsel %vm707, %v681, 0
      %791 = vmatprep.subr.bf16.mxu0 0
      %792 = vmatpush1.bf16.msra.mxu0 %v789
      %793 = vmatprep.subr.bf16.mxu0 0
      %794 = vmatpush1.bf16.msra.mxu0 0
      %795 = vmatprep.subr.bf16.mxu0 0
      %796 = vmatpush1.bf16.msra.mxu0 0
      %797 = vmatprep.subr.bf16.mxu0 0
      %798 = vmatpush1.bf16.msra.mxu0 0
      %799 = vmatprep.subr.bf16.mxu0 0
      %800 = vmatpush1.bf16.msra.mxu0 0
      %801 = vmatprep.subr.bf16.mxu0 0
      %802 = vmatpush1.bf16.msra.mxu0 0
      %803 = vmatprep.subr.bf16.mxu0 0
      %804 = vmatpush1.bf16.msra.mxu0 0
      %805 = vmatprep.subr.bf16.mxu0 0
      %806 = vmatpush1.bf16.msra.mxu0 0
      %807 = vmatprep.subr.bf16.mxu0 0
      %808 = vmatpush1.bf16.msra.mxu0 0
      %809 = vmatprep.subr.bf16.mxu0 0
      %810 = vmatpush1.bf16.msra.mxu0 0
      %811 = vmatprep.subr.bf16.mxu0 0
      %812 = vmatpush1.bf16.msra.mxu0 0
      %813 = vmatprep.subr.bf16.mxu0 0
      %814 = vmatpush1.bf16.msra.mxu0 0
      %815 = vmatprep.subr.bf16.mxu0 0
      %816 = vmatpush1.bf16.msra.mxu0 0
      %817 = vmatprep.subr.bf16.mxu0 0
      %818 = vmatpush1.bf16.msra.mxu0 0
      %819 = vmatprep.subr.bf16.mxu0 0
      %820 = vmatpush1.bf16.msra.mxu0 0
      %821 = vmatprep.subr.bf16.mxu0 0
      %822 = vmatpush1.bf16.msra.mxu0 0
      %823 = vmatprep.mubr.bf16.mxu0 0
      %824 = vmatmul.mubr.bf16.gmra.mrb[0].mxu0 %v777
      %v825 = vpop.f32.mrb[0].mxu0
      %v826 = vadd.f32 %v746, %v825
      %v827 = vpop.f32.mrb[0].mxu0
      %v828 = vpop.f32.mrb[0].mxu0
      %v829 = vadd.f32 %v749, %v828
      %v830 = vpop.f32.mrb[0].mxu0
      %831 = vmatprep.mubr.bf16.mxu0 0
      %832 = vmatmul.mubr.bf16.gmra.mrb[0].mxu0 %v780
      %v833 = vpop.f32.mrb[0].mxu0
      %v834 = vadd.f32 %v754, %v833
      %v835 = vpop.f32.mrb[0].mxu0
      %v836 = vpop.f32.mrb[0].mxu0
      %v837 = vadd.f32 %v757, %v836
      %v838 = vpop.f32.mrb[0].mxu0
      %839 = vmatprep.mubr.bf16.mxu0 0
      %840 = vmatmul.mubr.bf16.gmra.mrb[0].mxu0 %v783
      %v841 = vpop.f32.mrb[0].mxu0
      %v842 = vadd.f32 %v762, %v841
      %v843 = vpop.f32.mrb[0].mxu0
      %v844 = vpop.f32.mrb[0].mxu0
      %v845 = vadd.f32 %v765, %v844
      %v846 = vpop.f32.mrb[0].mxu0
      %847 = vmatprep.mubr.bf16.mxu0 0
      %848 = vmatmul.mubr.bf16.gmra.mrb[0].mxu0 %v786
      %v849 = vpop.f32.mrb[0].mxu0
      %v850 = vadd.f32 %v770, %v849
      %v851 = vpop.f32.mrb[0].mxu0
      %v852 = vpop.f32.mrb[0].mxu0
      %v853 = vadd.f32 %v773, %v852
      %v854 = vpop.f32.mrb[0].mxu0
      %855 = vdwg.mxu0
      %v856 = vld [vmem:[%s4] sm:$0x1]
      %v858 = vlaneseq
      %v859 = vshrl.u32 %v858, 7
      %v860 = vsub.s32 0, %v859
      %v861 = vrot.slane %v856, %v860
      %v863 = vadd.f32 %v826, %v861
      %v864 = vadd.f32 %v829, %v861
      %v865 = vadd.f32 %v834, %v861
      %v866 = vadd.f32 %v837, %v861
      %v867 = vadd.f32 %v842, %v861
      %v868 = vadd.f32 %v845, %v861
      %v869 = vadd.f32 %v850, %v861
      %v870 = vadd.f32 %v853, %v861
      %v871 = vpack.c.bf16 %v864, %v863
      %v872 = vpack.c.bf16 %v866, %v865
      %v873 = vpack.c.bf16 %v868, %v867
      %v874 = vpack.c.bf16 %v870, %v869
      %v875 = vld [vmem:[%s5] sm:$0xf]
      %v876 = vld [vmem:[%s5 + $0x4] sm:$0xf]
      %v877 = vld [vmem:[%s5 + $0x8] sm:$0xf]
      %v878 = vld [vmem:[%s5 + $0xc] sm:$0xf]
      %v879 = vld [vmem:[%s6] sm:$0x1]
      %v881 = vlaneseq
      %v882 = vshrl.u32 %v881, 7
      %v883 = vsub.s32 0, %v882
      %v884 = vrot.slane %v879, %v883
      %v890 = vunpack.c.l.b16 %v875
      %v891 = vunpack.c.l.b16 %v876
      %v892 = vunpack.c.l.b16 %v877
      %v893 = vunpack.c.l.b16 %v878
      %v894 = vpack.c.b16 %v891, %v890
      %v895 = vpack.c.b16 %v893, %v892
      %vm898 = vcmask 261120
      %v900 = vsel %vm898, %v871, 0
      %v903 = vsel %vm898, %v872, 0
      %v906 = vsel %vm898, %v873, 0
      %v909 = vsel %vm898, %v874, 0
      %911 = vmatprep.subr.bf16.mxu0 0
      %912 = vmatpush1.bf16.msra.mxu0 %v894
      %913 = vmatprep.subr.bf16.mxu0 0
      %914 = vmatpush1.bf16.msra.mxu0 %v895
      %915 = vmatprep.subr.bf16.mxu0 0
      %916 = vmatpush1.bf16.msra.mxu0 0
      %917 = vmatprep.subr.bf16.mxu0 0
      %918 = vmatpush1.bf16.msra.mxu0 0
      %919 = vmatprep.subr.bf16.mxu0 0
      %920 = vmatpush1.bf16.msra.mxu0 0
      %921 = vmatprep.subr.bf16.mxu0 0
      %922 = vmatpush1.bf16.msra.mxu0 0
      %923 = vmatprep.subr.bf16.mxu0 0
      %924 = vmatpush1.bf16.msra.mxu0 0
      %925 = vmatprep.subr.bf16.mxu0 0
      %926 = vmatpush1.bf16.msra.mxu0 0
      %927 = vmatprep.subr.bf16.mxu0 0
      %928 = vmatpush1.bf16.msra.mxu0 0
      %929 = vmatprep.subr.bf16.mxu0 0
      %930 = vmatpush1.bf16.msra.mxu0 0
      %931 = vmatprep.subr.bf16.mxu0 0
      %932 = vmatpush1.bf16.msra.mxu0 0
      %933 = vmatprep.subr.bf16.mxu0 0
      %934 = vmatpush1.bf16.msra.mxu0 0
      %935 = vmatprep.subr.bf16.mxu0 0
      %936 = vmatpush1.bf16.msra.mxu0 0
      %937 = vmatprep.subr.bf16.mxu0 0
      %938 = vmatpush1.bf16.msra.mxu0 0
      %939 = vmatprep.subr.bf16.mxu0 0
      %940 = vmatpush1.bf16.msra.mxu0 0
      %941 = vmatprep.subr.bf16.mxu0 0
      %942 = vmatpush1.bf16.msra.mxu0 0
      %943 = vmatprep.mubr.bf16.mxu0 0
      %944 = vmatmul.mubr.bf16.gmra.mrb[0].mxu0 %v900
      %v945 = vpop.f32.mrb[0].mxu0
      %v946 = vadd.f32 %v884, %v945
      %v947 = vpop.f32.mrb[0].mxu0
      %v948 = vpop.f32.mrb[0].mxu0
      %v949 = vadd.f32 %v884, %v948
      %v950 = vpop.f32.mrb[0].mxu0
      %951 = vmatprep.mubr.bf16.mxu0 0
      %952 = vmatmul.mubr.bf16.gmra.mrb[0].mxu0 %v903
      %v953 = vpop.f32.mrb[0].mxu0
      %v954 = vadd.f32 %v884, %v953
      %v955 = vpop.f32.mrb[0].mxu0
      %v956 = vpop.f32.mrb[0].mxu0
      %v957 = vadd.f32 %v884, %v956
      %v958 = vpop.f32.mrb[0].mxu0
      %959 = vmatprep.mubr.bf16.mxu0 0
      %960 = vmatmul.mubr.bf16.gmra.mrb[0].mxu0 %v906
      %v961 = vpop.f32.mrb[0].mxu0
      %v962 = vadd.f32 %v884, %v961
      %v963 = vpop.f32.mrb[0].mxu0
      %v964 = vpop.f32.mrb[0].mxu0
      %v965 = vadd.f32 %v884, %v964
      %v966 = vpop.f32.mrb[0].mxu0
      %967 = vmatprep.mubr.bf16.mxu0 0
      %968 = vmatmul.mubr.bf16.gmra.mrb[0].mxu0 %v909
      %v969 = vpop.f32.mrb[0].mxu0
      %v970 = vadd.f32 %v884, %v969
      %v971 = vpop.f32.mrb[0].mxu0
      %v972 = vpop.f32.mrb[0].mxu0
      %v973 = vadd.f32 %v884, %v972
      %v974 = vpop.f32.mrb[0].mxu0
      %975 = vdwg.mxu0
      %v976 = vmax.f32 %v946, 0.0
      %v977 = vmax.f32 %v949, 0.0
      %v978 = vmax.f32 %v954, 0.0
      %v979 = vmax.f32 %v957, 0.0
      %v980 = vmax.f32 %v962, 0.0
      %v981 = vmax.f32 %v965, 0.0
      %v982 = vmax.f32 %v970, 0.0
      %v983 = vmax.f32 %v973, 0.0
      %v984 = vlaneseq
      %v985 = vshrl.u32 %v984, 7
      %v986 = vadd.s32 %v985, 8
      %v987 = vadd.s32 %v985, 16
      %v988 = vadd.s32 %v985, 24
      %v989 = vadd.s32 %v985, 32
      %v990 = vadd.s32 %v985, 40
      %v991 = vadd.s32 %v985, 48
      %v992 = vadd.s32 %v985, 56
      %vm993 = vcmp.lt.s32.totalorder %v985, 0
      %v994 = vsub.s32 0, %v985
      %v995 = vsel %vm993, %v994, %v985
      %v996 = vshrl.u32 %v995, 3
      %v997 = vand.u32 %v995, 7
      %v998 = vsub.s32 0, %v997
      %v999 = vsel %vm993, %v998, %v997
      %vm1000 = vcmp.lt.s32.totalorder %v986, 0
      %v1001 = vsub.s32 0, %v986
      %v1002 = vsel %vm1000, %v1001, %v986
      %v1003 = vshrl.u32 %v1002, 3
      %v1004 = vand.u32 %v1002, 7
      %v1005 = vsub.s32 0, %v1004
      %v1006 = vsel %vm1000, %v1005, %v1004
      %vm1007 = vcmp.lt.s32.totalorder %v987, 0
      %v1008 = vsub.s32 0, %v987
      %v1009 = vsel %vm1007, %v1008, %v987
      %v1010 = vshrl.u32 %v1009, 3
      %v1011 = vand.u32 %v1009, 7
      %v1012 = vsub.s32 0, %v1011
      %v1013 = vsel %vm1007, %v1012, %v1011
      %vm1014 = vcmp.lt.s32.totalorder %v988, 0
      %v1015 = vsub.s32 0, %v988
      %v1016 = vsel %vm1014, %v1015, %v988
      %v1017 = vshrl.u32 %v1016, 3
      %v1018 = vand.u32 %v1016, 7
      %v1019 = vsub.s32 0, %v1018
      %v1020 = vsel %vm1014, %v1019, %v1018
      %vm1021 = vcmp.lt.s32.totalorder %v989, 0
      %v1022 = vsub.s32 0, %v989
      %v1023 = vsel %vm1021, %v1022, %v989
      %v1024 = vshrl.u32 %v1023, 3
      %v1025 = vand.u32 %v1023, 7
      %v1026 = vsub.s32 0, %v1025
      %v1027 = vsel %vm1021, %v1026, %v1025
      %vm1028 = vcmp.lt.s32.totalorder %v990, 0
      %v1029 = vsub.s32 0, %v990
      %v1030 = vsel %vm1028, %v1029, %v990
      %v1031 = vshrl.u32 %v1030, 3
      %v1032 = vand.u32 %v1030, 7
      %v1033 = vsub.s32 0, %v1032
      %v1034 = vsel %vm1028, %v1033, %v1032
      %vm1035 = vcmp.lt.s32.totalorder %v991, 0
      %v1036 = vsub.s32 0, %v991
      %v1037 = vsel %vm1035, %v1036, %v991
      %v1038 = vshrl.u32 %v1037, 3
      %v1039 = vand.u32 %v1037, 7
      %v1040 = vsub.s32 0, %v1039
      %v1041 = vsel %vm1035, %v1040, %v1039
      %vm1042 = vcmp.lt.s32.totalorder %v992, 0
      %v1043 = vsub.s32 0, %v992
      %v1044 = vsel %vm1042, %v1043, %v992
      %v1045 = vshrl.u32 %v1044, 3
      %v1046 = vand.u32 %v1044, 7
      %v1047 = vsub.s32 0, %v1046
      %v1048 = vsel %vm1042, %v1047, %v1046
      %vm1049 = vcmp.ne.s32.totalorder %v999, 0
      %vm1050 = vcmp.ne.s32.totalorder %v1006, 0
      %vm1051 = vcmp.ne.s32.totalorder %v1013, 0
      %vm1052 = vcmp.ne.s32.totalorder %v1020, 0
      %vm1053 = vcmp.ne.s32.totalorder %v1027, 0
      %vm1054 = vcmp.ne.s32.totalorder %v1034, 0
      %vm1055 = vcmp.ne.s32.totalorder %v1041, 0
      %vm1056 = vcmp.ne.s32.totalorder %v1048, 0
      %vm1057 = vcmp.lt.s32.totalorder %v999, 0
      %vm1058 = vcmp.lt.s32.totalorder %v1006, 0
      %vm1059 = vcmp.lt.s32.totalorder %v1013, 0
      %vm1060 = vcmp.lt.s32.totalorder %v1020, 0
      %vm1061 = vcmp.lt.s32.totalorder %v1027, 0
      %vm1062 = vcmp.lt.s32.totalorder %v1034, 0
      %vm1063 = vcmp.lt.s32.totalorder %v1041, 0
      %vm1064 = vcmp.lt.s32.totalorder %v1048, 0
      %vm1065 = vmand %vm1057, %vm1049
      %vm1066 = vmand %vm1058, %vm1050
      %vm1067 = vmand %vm1059, %vm1051
      %vm1068 = vmand %vm1060, %vm1052
      %vm1069 = vmand %vm1061, %vm1053
      %vm1070 = vmand %vm1062, %vm1054
      %vm1071 = vmand %vm1063, %vm1055
      %vm1072 = vmand %vm1064, %vm1056
      %v1073 = vadd.s32 %v999, 8
      %v1074 = vadd.s32 %v1006, 8
      %v1075 = vadd.s32 %v1013, 8
      %v1076 = vadd.s32 %v1020, 8
      %v1077 = vadd.s32 %v1027, 8
      %v1078 = vadd.s32 %v1034, 8
      %v1079 = vadd.s32 %v1041, 8
      %v1080 = vadd.s32 %v1048, 8
      %v1081 = vsel %vm1065, %v1073, %v999
      %v1082 = vsel %vm1066, %v1074, %v1006
      %v1083 = vsel %vm1067, %v1075, %v1013
      %v1084 = vsel %vm1068, %v1076, %v1020
      %v1085 = vsel %vm1069, %v1077, %v1027
      %v1086 = vsel %vm1070, %v1078, %v1034
      %v1087 = vsel %vm1071, %v1079, %v1041
      %v1088 = vsel %vm1072, %v1080, %v1048
      %vm1089 = vcmp.eq.s32.totalorder %v1081, 0
      %vm1090 = vcmp.eq.s32.totalorder %v1082, 0
      %vm1091 = vcmp.eq.s32.totalorder %v1083, 0
      %vm1092 = vcmp.eq.s32.totalorder %v1084, 0
      %vm1093 = vcmp.eq.s32.totalorder %v1085, 0
      %vm1094 = vcmp.eq.s32.totalorder %v1086, 0
      %vm1095 = vcmp.eq.s32.totalorder %v1087, 0
      %vm1096 = vcmp.eq.s32.totalorder %v1088, 0
      %vm1105 = vcmask 1040384
      %v1106 = vrot.slane %v976, 7
      %v1107 = vrot.slane %v977, 7
      %v1108 = vsel %vm1105, %v1106, %v1107
      %v1109 = vrot.slane %v978, 7
      %v1110 = vsel %vm1105, %v1107, %v1109
      %v1111 = vrot.slane %v979, 7
      %v1112 = vsel %vm1105, %v1109, %v1111
      %v1113 = vrot.slane %v980, 7
      %v1114 = vsel %vm1105, %v1111, %v1113
      %v1115 = vrot.slane %v981, 7
      %v1116 = vsel %vm1105, %v1113, %v1115
      %v1117 = vrot.slane %v982, 7
      %v1118 = vsel %vm1105, %v1115, %v1117
      %v1119 = vrot.slane %v983, 7
      %v1120 = vsel %vm1105, %v1117, %v1119
      %v1129 = vsel %vm1105, 0.0, %v1106
      %v1130 = vsel %vm1089, 1, 0
      %v1131 = vsel %vm1090, 1, 0
      %v1132 = vsel %vm1091, 1, 0
      %v1133 = vsel %vm1092, 1, 0
      %v1134 = vsel %vm1093, 1, 0
      %v1135 = vsel %vm1094, 1, 0
      %v1136 = vsel %vm1095, 1, 0
      %v1137 = vsel %vm1096, 1, 0
      %vm1138 = vcmp.eq.s32.totalorder %v1130, 1
      %vm1139 = vcmp.eq.s32.totalorder %v1131, 1
      %vm1140 = vcmp.eq.s32.totalorder %v1132, 1
      %vm1141 = vcmp.eq.s32.totalorder %v1133, 1
      %vm1142 = vcmp.eq.s32.totalorder %v1134, 1
      %vm1143 = vcmp.eq.s32.totalorder %v1135, 1
      %vm1144 = vcmp.eq.s32.totalorder %v1136, 1
      %vm1145 = vcmp.eq.s32.totalorder %v1137, 1
      %v1146 = vsel %vm1138, 0.0, %v1129
      %v1147 = vsel %vm1139, 0.0, %v1108
      %v1148 = vsel %vm1140, 0.0, %v1110
      %v1149 = vsel %vm1141, 0.0, %v1112
      %v1150 = vsel %vm1142, 0.0, %v1114
      %v1151 = vsel %vm1143, 0.0, %v1116
      %v1152 = vsel %vm1144, 0.0, %v1118
      %v1153 = vsel %vm1145, 0.0, %v1120
      %vm1154 = vcmp.eq.s32.totalorder %v1081, 7
      %vm1155 = vcmp.eq.s32.totalorder %v1082, 7
      %vm1156 = vcmp.eq.s32.totalorder %v1083, 7
      %vm1157 = vcmp.eq.s32.totalorder %v1084, 7
      %vm1158 = vcmp.eq.s32.totalorder %v1085, 7
      %vm1159 = vcmp.eq.s32.totalorder %v1086, 7
      %vm1160 = vcmp.eq.s32.totalorder %v1087, 7
      %vm1161 = vcmp.eq.s32.totalorder %v1088, 7
      %vm1162 = vcmask 1046528
      %v1163 = vrot.slane %v976, 1
      %v1164 = vrot.slane %v977, 1
      %v1165 = vsel %vm1162, %v1163, %v1164
      %v1166 = vrot.slane %v978, 1
      %v1167 = vsel %vm1162, %v1164, %v1166
      %v1168 = vrot.slane %v979, 1
      %v1169 = vsel %vm1162, %v1166, %v1168
      %v1170 = vrot.slane %v980, 1
      %v1171 = vsel %vm1162, %v1168, %v1170
      %v1172 = vrot.slane %v981, 1
      %v1173 = vsel %vm1162, %v1170, %v1172
      %v1174 = vrot.slane %v982, 1
      %v1175 = vsel %vm1162, %v1172, %v1174
      %v1176 = vrot.slane %v983, 1
      %v1177 = vsel %vm1162, %v1174, %v1176
      %v1186 = vsel %vm1162, %v1176, 0.0
      %v1187 = vsel %vm1154, 1, 0
      %v1188 = vsel %vm1155, 1, 0
      %v1189 = vsel %vm1156, 1, 0
      %v1190 = vsel %vm1157, 1, 0
      %v1191 = vsel %vm1158, 1, 0
      %v1192 = vsel %vm1159, 1, 0
      %v1193 = vsel %vm1160, 1, 0
      %v1194 = vsel %vm1161, 1, 0
      %vm1195 = vcmp.eq.s32.totalorder %v1187, 1
      %vm1196 = vcmp.eq.s32.totalorder %v1188, 1
      %vm1197 = vcmp.eq.s32.totalorder %v1189, 1
      %vm1198 = vcmp.eq.s32.totalorder %v1190, 1
      %vm1199 = vcmp.eq.s32.totalorder %v1191, 1
      %vm1200 = vcmp.eq.s32.totalorder %v1192, 1
      %vm1201 = vcmp.eq.s32.totalorder %v1193, 1
      %vm1202 = vcmp.eq.s32.totalorder %v1194, 1
      %v1203 = vsel %vm1195, 0.0, %v1165
      %v1204 = vsel %vm1196, 0.0, %v1167
      %v1205 = vsel %vm1197, 0.0, %v1169
      %v1206 = vsel %vm1198, 0.0, %v1171
      %v1207 = vsel %vm1199, 0.0, %v1173
      %v1208 = vsel %vm1200, 0.0, %v1175
      %v1209 = vsel %vm1201, 0.0, %v1177
      %v1210 = vsel %vm1202, 0.0, %v1186
      %v1211 = vpack.c.bf16 %v1146, 0.0
      %v1212 = vpack.c.bf16 %v1148, %v1147
      %v1213 = vpack.c.bf16 %v1150, %v1149
      %v1214 = vpack.c.bf16 %v1152, %v1151
      %v1215 = vld [vmem:[%s7] sm:$0xf]
      %v1216 = vld [vmem:[%s7 + $0x4] sm:$0xf]
      %v1217 = vld [vmem:[%s7 + $0x8] sm:$0xf]
      %v1218 = vld [vmem:[%s7 + $0xc] sm:$0xf]
      %v1219 = vpack.c.bf16 %v1147, %v1146
      %v1220 = vpack.c.bf16 %v1149, %v1148
      %v1221 = vpack.c.bf16 %v1151, %v1150
      %v1222 = vpack.c.bf16 %v1153, %v1152
      %s1223 = scalar_lea.vmem %s7, 48
      %v1224 = vld [vmem:[%s1223] sm:$0xf]
      %v1225 = vld [vmem:[%s1223 + $0x4] sm:$0xf]
      %v1226 = vld [vmem:[%s1223 + $0x8] sm:$0xf]
      %v1227 = vld [vmem:[%s1223 + $0xc] sm:$0xf]
      %v1232 = vunpack.c.l.b16 %v1224
      %v1233 = vunpack.c.l.b16 %v1225
      %v1234 = vunpack.c.l.b16 %v1226
      %v1235 = vunpack.c.l.b16 %v1227
      %v1236 = vpack.c.b16 %v1233, %v1232
      %v1237 = vpack.c.b16 %v1235, %v1234
      %v1241 = vsel %vm898, %v1219, 0
      %v1244 = vsel %vm898, %v1220, 0
      %v1247 = vsel %vm898, %v1221, 0
      %v1250 = vsel %vm898, %v1222, 0
      %1252 = vmatprep.subr.bf16.mxu0 0
      %1253 = vmatpush1.bf16.msra.mxu0 %v1236
      %1254 = vmatprep.subr.bf16.mxu0 0
      %1255 = vmatpush1.bf16.msra.mxu0 %v1237
      %1256 = vmatprep.subr.bf16.mxu0 0
      %1257 = vmatpush1.bf16.msra.mxu0 0
      %1258 = vmatprep.subr.bf16.mxu0 0
      %1259 = vmatpush1.bf16.msra.mxu0 0
      %1260 = vmatprep.subr.bf16.mxu0 0
      %1261 = vmatpush1.bf16.msra.mxu0 0
      %1262 = vmatprep.subr.bf16.mxu0 0
      %1263 = vmatpush1.bf16.msra.mxu0 0
      %1264 = vmatprep.subr.bf16.mxu0 0
      %1265 = vmatpush1.bf16.msra.mxu0 0
      %1266 = vmatprep.subr.bf16.mxu0 0
      %1267 = vmatpush1.bf16.msra.mxu0 0
      %1268 = vmatprep.subr.bf16.mxu0 0
      %1269 = vmatpush1.bf16.msra.mxu0 0
      %1270 = vmatprep.subr.bf16.mxu0 0
      %1271 = vmatpush1.bf16.msra.mxu0 0
      %1272 = vmatprep.subr.bf16.mxu0 0
      %1273 = vmatpush1.bf16.msra.mxu0 0
      %1274 = vmatprep.subr.bf16.mxu0 0
      %1275 = vmatpush1.bf16.msra.mxu0 0
      %1276 = vmatprep.subr.bf16.mxu0 0
      %1277 = vmatpush1.bf16.msra.mxu0 0
      %1278 = vmatprep.subr.bf16.mxu0 0
      %1279 = vmatpush1.bf16.msra.mxu0 0
      %1280 = vmatprep.subr.bf16.mxu0 0
      %1281 = vmatpush1.bf16.msra.mxu0 0
      %1282 = vmatprep.subr.bf16.mxu0 0
      %1283 = vmatpush1.bf16.msra.mxu0 0
      %1284 = vmatprep.mubr.bf16.mxu0 0
      %1285 = vmatmul.mubr.bf16.gmra.mrb[0].mxu0 %v1241
      %v1286 = vpop.f32.mrb[0].mxu0
      %v1287 = vadd.f32 0.0, %v1286
      %v1288 = vpop.f32.mrb[0].mxu0
      %v1289 = vpop.f32.mrb[0].mxu0
      %v1290 = vadd.f32 0.0, %v1289
      %v1291 = vpop.f32.mrb[0].mxu0
      %1292 = vmatprep.mubr.bf16.mxu0 0
      %1293 = vmatmul.mubr.bf16.gmra.mrb[0].mxu0 %v1244
      %v1294 = vpop.f32.mrb[0].mxu0
      %v1295 = vadd.f32 0.0, %v1294
      %v1296 = vpop.f32.mrb[0].mxu0
      %v1297 = vpop.f32.mrb[0].mxu0
      %v1298 = vadd.f32 0.0, %v1297
      %v1299 = vpop.f32.mrb[0].mxu0
      %1300 = vmatprep.mubr.bf16.mxu0 0
      %1301 = vmatmul.mubr.bf16.gmra.mrb[0].mxu0 %v1247
      %v1302 = vpop.f32.mrb[0].mxu0
      %v1303 = vadd.f32 0.0, %v1302
      %v1304 = vpop.f32.mrb[0].mxu0
      %v1305 = vpop.f32.mrb[0].mxu0
      %v1306 = vadd.f32 0.0, %v1305
      %v1307 = vpop.f32.mrb[0].mxu0
      %1308 = vmatprep.mubr.bf16.mxu0 0
      %1309 = vmatmul.mubr.bf16.gmra.mrb[0].mxu0 %v1250
      %v1310 = vpop.f32.mrb[0].mxu0
      %v1311 = vadd.f32 0.0, %v1310
      %v1312 = vpop.f32.mrb[0].mxu0
      %v1313 = vpop.f32.mrb[0].mxu0
      %v1314 = vadd.f32 0.0, %v1313
      %v1315 = vpop.f32.mrb[0].mxu0
      %1316 = vdwg.mxu0
      %v1321 = vunpack.c.l.b16 %v1215
      %v1322 = vunpack.c.l.b16 %v1216
      %v1323 = vunpack.c.l.b16 %v1217
      %v1324 = vunpack.c.l.b16 %v1218
      %v1325 = vpack.c.b16 %v1322, %v1321
      %v1326 = vpack.c.b16 %v1324, %v1323
      %v1330 = vsel %vm898, %v1211, 0
      %v1333 = vsel %vm898, %v1212, 0
      %v1336 = vsel %vm898, %v1213, 0
      %v1339 = vsel %vm898, %v1214, 0
      %1341 = vmatprep.subr.bf16.mxu0 0
      %1342 = vmatpush1.bf16.msra.mxu0 %v1325
      %1343 = vmatprep.subr.bf16.mxu0 0
      %1344 = vmatpush1.bf16.msra.mxu0 %v1326
      %1345 = vmatprep.subr.bf16.mxu0 0
      %1346 = vmatpush1.bf16.msra.mxu0 0
      %1347 = vmatprep.subr.bf16.mxu0 0
      %1348 = vmatpush1.bf16.msra.mxu0 0
      %1349 = vmatprep.subr.bf16.mxu0 0
      %1350 = vmatpush1.bf16.msra.mxu0 0
      %1351 = vmatprep.subr.bf16.mxu0 0
      %1352 = vmatpush1.bf16.msra.mxu0 0
      %1353 = vmatprep.subr.bf16.mxu0 0
      %1354 = vmatpush1.bf16.msra.mxu0 0
      %1355 = vmatprep.subr.bf16.mxu0 0
      %1356 = vmatpush1.bf16.msra.mxu0 0
      %1357 = vmatprep.subr.bf16.mxu0 0
      %1358 = vmatpush1.bf16.msra.mxu0 0
      %1359 = vmatprep.subr.bf16.mxu0 0
      %1360 = vmatpush1.bf16.msra.mxu0 0
      %1361 = vmatprep.subr.bf16.mxu0 0
      %1362 = vmatpush1.bf16.msra.mxu0 0
      %1363 = vmatprep.subr.bf16.mxu0 0
      %1364 = vmatpush1.bf16.msra.mxu0 0
      %1365 = vmatprep.subr.bf16.mxu0 0
      %1366 = vmatpush1.bf16.msra.mxu0 0
      %1367 = vmatprep.subr.bf16.mxu0 0
      %1368 = vmatpush1.bf16.msra.mxu0 0
      %1369 = vmatprep.subr.bf16.mxu0 0
      %1370 = vmatpush1.bf16.msra.mxu0 0
      %1371 = vmatprep.subr.bf16.mxu0 0
      %1372 = vmatpush1.bf16.msra.mxu0 0
      %1373 = vmatprep.mubr.bf16.mxu0 0
      %1374 = vmatmul.mubr.bf16.gmra.mrb[0].mxu0 %v1330
      %v1375 = vpop.f32.mrb[0].mxu0
      %v1376 = vadd.f32 %v1287, %v1375
      %v1377 = vpop.f32.mrb[0].mxu0
      %v1378 = vpop.f32.mrb[0].mxu0
      %v1379 = vadd.f32 %v1290, %v1378
      %v1380 = vpop.f32.mrb[0].mxu0
      %1381 = vmatprep.mubr.bf16.mxu0 0
      %1382 = vmatmul.mubr.bf16.gmra.mrb[0].mxu0 %v1333
      %v1383 = vpop.f32.mrb[0].mxu0
      %v1384 = vadd.f32 %v1295, %v1383
      %v1385 = vpop.f32.mrb[0].mxu0
      %v1386 = vpop.f32.mrb[0].mxu0
      %v1387 = vadd.f32 %v1298, %v1386
      %v1388 = vpop.f32.mrb[0].mxu0
      %1389 = vmatprep.mubr.bf16.mxu0 0
      %1390 = vmatmul.mubr.bf16.gmra.mrb[0].mxu0 %v1336
      %v1391 = vpop.f32.mrb[0].mxu0
      %v1392 = vadd.f32 %v1303, %v1391
      %v1393 = vpop.f32.mrb[0].mxu0
      %v1394 = vpop.f32.mrb[0].mxu0
      %v1395 = vadd.f32 %v1306, %v1394
      %v1396 = vpop.f32.mrb[0].mxu0
      %1397 = vmatprep.mubr.bf16.mxu0 0
      %1398 = vmatmul.mubr.bf16.gmra.mrb[0].mxu0 %v1339
      %v1399 = vpop.f32.mrb[0].mxu0
      %v1400 = vadd.f32 %v1311, %v1399
      %v1401 = vpop.f32.mrb[0].mxu0
      %v1402 = vpop.f32.mrb[0].mxu0
      %v1403 = vadd.f32 %v1314, %v1402
      %v1404 = vpop.f32.mrb[0].mxu0
      %1405 = vdwg.mxu0
      %v1406 = vpack.c.bf16 0.0, %v1153
      %s1407 = scalar_lea.vmem %s7, 96
      %v1408 = vld [vmem:[%s1407] sm:$0xf]
      %v1409 = vld [vmem:[%s1407 + $0x4] sm:$0xf]
      %v1410 = vld [vmem:[%s1407 + $0x8] sm:$0xf]
      %v1411 = vld [vmem:[%s1407 + $0xc] sm:$0xf]
      %v1416 = vunpack.c.l.b16 %v1408
      %v1417 = vunpack.c.l.b16 %v1409
      %v1418 = vunpack.c.l.b16 %v1410
      %v1419 = vunpack.c.l.b16 %v1411
      %v1420 = vpack.c.b16 %v1417, %v1416
      %v1421 = vpack.c.b16 %v1419, %v1418
      %v1425 = vsel %vm898, %v1406, 0
      %1427 = vmatprep.subr.bf16.mxu0 0
      %1428 = vmatpush1.bf16.msra.mxu0 %v1420
      %1429 = vmatprep.subr.bf16.mxu0 0
      %1430 = vmatpush1.bf16.msra.mxu0 %v1421
      %1431 = vmatprep.subr.bf16.mxu0 0
      %1432 = vmatpush1.bf16.msra.mxu0 0
      %1433 = vmatprep.subr.bf16.mxu0 0
      %1434 = vmatpush1.bf16.msra.mxu0 0
      %1435 = vmatprep.subr.bf16.mxu0 0
      %1436 = vmatpush1.bf16.msra.mxu0 0
      %1437 = vmatprep.subr.bf16.mxu0 0
      %1438 = vmatpush1.bf16.msra.mxu0 0
      %1439 = vmatprep.subr.bf16.mxu0 0
      %1440 = vmatpush1.bf16.msra.mxu0 0
      %1441 = vmatprep.subr.bf16.mxu0 0
      %1442 = vmatpush1.bf16.msra.mxu0 0
      %1443 = vmatprep.subr.bf16.mxu0 0
      %1444 = vmatpush1.bf16.msra.mxu0 0
      %1445 = vmatprep.subr.bf16.mxu0 0
      %1446 = vmatpush1.bf16.msra.mxu0 0
      %1447 = vmatprep.subr.bf16.mxu0 0
      %1448 = vmatpush1.bf16.msra.mxu0 0
      %1449 = vmatprep.subr.bf16.mxu0 0
      %1450 = vmatpush1.bf16.msra.mxu0 0
      %1451 = vmatprep.subr.bf16.mxu0 0
      %1452 = vmatpush1.bf16.msra.mxu0 0
      %1453 = vmatprep.subr.bf16.mxu0 0
      %1454 = vmatpush1.bf16.msra.mxu0 0
      %1455 = vmatprep.subr.bf16.mxu0 0
      %1456 = vmatpush1.bf16.msra.mxu0 0
      %1457 = vmatprep.subr.bf16.mxu0 0
      %1458 = vmatpush1.bf16.msra.mxu0 0
      %1459 = vmatprep.mubr.bf16.mxu0 0
      %1460 = vmatmul.mubr.bf16.gmra.mrb[0].mxu0 %v1333
      %v1461 = vpop.f32.mrb[0].mxu0
      %v1462 = vadd.f32 0.0, %v1461
      %v1463 = vpop.f32.mrb[0].mxu0
      %v1464 = vpop.f32.mrb[0].mxu0
      %v1465 = vadd.f32 0.0, %v1464
      %v1466 = vpop.f32.mrb[0].mxu0
      %1467 = vmatprep.mubr.bf16.mxu0 0
      %1468 = vmatmul.mubr.bf16.gmra.mrb[0].mxu0 %v1336
      %v1469 = vpop.f32.mrb[0].mxu0
      %v1470 = vadd.f32 0.0, %v1469
      %v1471 = vpop.f32.mrb[0].mxu0
      %v1472 = vpop.f32.mrb[0].mxu0
      %v1473 = vadd.f32 0.0, %v1472
      %v1474 = vpop.f32.mrb[0].mxu0
      %1475 = vmatprep.mubr.bf16.mxu0 0
      %1476 = vmatmul.mubr.bf16.gmra.mrb[0].mxu0 %v1339
      %v1477 = vpop.f32.mrb[0].mxu0
      %v1478 = vadd.f32 0.0, %v1477
      %v1479 = vpop.f32.mrb[0].mxu0
      %v1480 = vpop.f32.mrb[0].mxu0
      %v1481 = vadd.f32 0.0, %v1480
      %v1482 = vpop.f32.mrb[0].mxu0
      %1483 = vmatprep.mubr.bf16.mxu0 0
      %1484 = vmatmul.mubr.bf16.gmra.mrb[0].mxu0 %v1425
      %v1485 = vpop.f32.mrb[0].mxu0
      %v1486 = vadd.f32 0.0, %v1485
      %v1487 = vpop.f32.mrb[0].mxu0
      %v1488 = vpop.f32.mrb[0].mxu0
      %v1489 = vadd.f32 0.0, %v1488
      %v1490 = vpop.f32.mrb[0].mxu0
      %1491 = vdwg.mxu0
      %v1492 = vadd.f32 %v1376, %v1462
      %v1493 = vadd.f32 %v1379, %v1465
      %v1494 = vadd.f32 %v1384, %v1470
      %v1495 = vadd.f32 %v1387, %v1473
      %v1496 = vadd.f32 %v1392, %v1478
      %v1497 = vadd.f32 %v1395, %v1481
      %v1498 = vadd.f32 %v1400, %v1486
      %v1499 = vadd.f32 %v1403, %v1489
      %v1500 = vpack.c.bf16 %v976, 0.0
      %v1501 = vpack.c.bf16 %v978, %v977
      %v1502 = vpack.c.bf16 %v980, %v979
      %v1503 = vpack.c.bf16 %v982, %v981
      %s1504 = scalar_lea.vmem %s7, 16
      %v1505 = vld [vmem:[%s1504] sm:$0xf]
      %v1506 = vld [vmem:[%s1504 + $0x4] sm:$0xf]
      %v1507 = vld [vmem:[%s1504 + $0x8] sm:$0xf]
      %v1508 = vld [vmem:[%s1504 + $0xc] sm:$0xf]
      %v1513 = vunpack.c.l.b16 %v1505
      %v1514 = vunpack.c.l.b16 %v1506
      %v1515 = vunpack.c.l.b16 %v1507
      %v1516 = vunpack.c.l.b16 %v1508
      %v1517 = vpack.c.b16 %v1514, %v1513
      %v1518 = vpack.c.b16 %v1516, %v1515
      %v1522 = vsel %vm898, %v1500, 0
      %v1525 = vsel %vm898, %v1501, 0
      %v1528 = vsel %vm898, %v1502, 0
      %v1531 = vsel %vm898, %v1503, 0
      %1533 = vmatprep.subr.bf16.mxu0 0
      %1534 = vmatpush1.bf16.msra.mxu0 %v1517
      %1535 = vmatprep.subr.bf16.mxu0 0
      %1536 = vmatpush1.bf16.msra.mxu0 %v1518
      %1537 = vmatprep.subr.bf16.mxu0 0
      %1538 = vmatpush1.bf16.msra.mxu0 0
      %1539 = vmatprep.subr.bf16.mxu0 0
      %1540 = vmatpush1.bf16.msra.mxu0 0
      %1541 = vmatprep.subr.bf16.mxu0 0
      %1542 = vmatpush1.bf16.msra.mxu0 0
      %1543 = vmatprep.subr.bf16.mxu0 0
      %1544 = vmatpush1.bf16.msra.mxu0 0
      %1545 = vmatprep.subr.bf16.mxu0 0
      %1546 = vmatpush1.bf16.msra.mxu0 0
      %1547 = vmatprep.subr.bf16.mxu0 0
      %1548 = vmatpush1.bf16.msra.mxu0 0
      %1549 = vmatprep.subr.bf16.mxu0 0
      %1550 = vmatpush1.bf16.msra.mxu0 0
      %1551 = vmatprep.subr.bf16.mxu0 0
      %1552 = vmatpush1.bf16.msra.mxu0 0
      %1553 = vmatprep.subr.bf16.mxu0 0
      %1554 = vmatpush1.bf16.msra.mxu0 0
      %1555 = vmatprep.subr.bf16.mxu0 0
      %1556 = vmatpush1.bf16.msra.mxu0 0
      %1557 = vmatprep.subr.bf16.mxu0 0
      %1558 = vmatpush1.bf16.msra.mxu0 0
      %1559 = vmatprep.subr.bf16.mxu0 0
      %1560 = vmatpush1.bf16.msra.mxu0 0
      %1561 = vmatprep.subr.bf16.mxu0 0
      %1562 = vmatpush1.bf16.msra.mxu0 0
      %1563 = vmatprep.subr.bf16.mxu0 0
      %1564 = vmatpush1.bf16.msra.mxu0 0
      %1565 = vmatprep.mubr.bf16.mxu0 0
      %1566 = vmatmul.mubr.bf16.gmra.mrb[0].mxu0 %v1522
      %v1567 = vpop.f32.mrb[0].mxu0
      %v1568 = vadd.f32 0.0, %v1567
      %v1569 = vpop.f32.mrb[0].mxu0
      %v1570 = vpop.f32.mrb[0].mxu0
      %v1571 = vadd.f32 0.0, %v1570
      %v1572 = vpop.f32.mrb[0].mxu0
      %1573 = vmatprep.mubr.bf16.mxu0 0
      %1574 = vmatmul.mubr.bf16.gmra.mrb[0].mxu0 %v1525
      %v1575 = vpop.f32.mrb[0].mxu0
      %v1576 = vadd.f32 0.0, %v1575
      %v1577 = vpop.f32.mrb[0].mxu0
      %v1578 = vpop.f32.mrb[0].mxu0
      %v1579 = vadd.f32 0.0, %v1578
      %v1580 = vpop.f32.mrb[0].mxu0
      %1581 = vmatprep.mubr.bf16.mxu0 0
      %1582 = vmatmul.mubr.bf16.gmra.mrb[0].mxu0 %v1528
      %v1583 = vpop.f32.mrb[0].mxu0
      %v1584 = vadd.f32 0.0, %v1583
      %v1585 = vpop.f32.mrb[0].mxu0
      %v1586 = vpop.f32.mrb[0].mxu0
      %v1587 = vadd.f32 0.0, %v1586
      %v1588 = vpop.f32.mrb[0].mxu0
      %1589 = vmatprep.mubr.bf16.mxu0 0
      %1590 = vmatmul.mubr.bf16.gmra.mrb[0].mxu0 %v1531
      %v1591 = vpop.f32.mrb[0].mxu0
      %v1592 = vadd.f32 0.0, %v1591
      %v1593 = vpop.f32.mrb[0].mxu0
      %v1594 = vpop.f32.mrb[0].mxu0
      %v1595 = vadd.f32 0.0, %v1594
      %v1596 = vpop.f32.mrb[0].mxu0
      %1597 = vdwg.mxu0
      %v1598 = vadd.f32 %v1492, %v1568
      %v1599 = vadd.f32 %v1493, %v1571
      %v1600 = vadd.f32 %v1494, %v1576
      %v1601 = vadd.f32 %v1495, %v1579
      %v1602 = vadd.f32 %v1496, %v1584
      %v1603 = vadd.f32 %v1497, %v1587
      %v1604 = vadd.f32 %v1498, %v1592
      %v1605 = vadd.f32 %v1499, %v1595
      %v1606 = vpack.c.bf16 %v977, %v976
      %v1607 = vpack.c.bf16 %v979, %v978
      %v1608 = vpack.c.bf16 %v981, %v980
      %v1609 = vpack.c.bf16 %v983, %v982
      %s1610 = scalar_lea.vmem %s7, 64
      %v1611 = vld [vmem:[%s1610] sm:$0xf]
      %v1612 = vld [vmem:[%s1610 + $0x4] sm:$0xf]
      %v1613 = vld [vmem:[%s1610 + $0x8] sm:$0xf]
      %v1614 = vld [vmem:[%s1610 + $0xc] sm:$0xf]
      %v1619 = vunpack.c.l.b16 %v1611
      %v1620 = vunpack.c.l.b16 %v1612
      %v1621 = vunpack.c.l.b16 %v1613
      %v1622 = vunpack.c.l.b16 %v1614
      %v1623 = vpack.c.b16 %v1620, %v1619
      %v1624 = vpack.c.b16 %v1622, %v1621
      %v1628 = vsel %vm898, %v1606, 0
      %v1631 = vsel %vm898, %v1607, 0
      %v1634 = vsel %vm898, %v1608, 0
      %v1637 = vsel %vm898, %v1609, 0
      %1639 = vmatprep.subr.bf16.mxu0 0
      %1640 = vmatpush1.bf16.msra.mxu0 %v1623
      %1641 = vmatprep.subr.bf16.mxu0 0
      %1642 = vmatpush1.bf16.msra.mxu0 %v1624
      %1643 = vmatprep.subr.bf16.mxu0 0
      %1644 = vmatpush1.bf16.msra.mxu0 0
      %1645 = vmatprep.subr.bf16.mxu0 0
      %1646 = vmatpush1.bf16.msra.mxu0 0
      %1647 = vmatprep.subr.bf16.mxu0 0
      %1648 = vmatpush1.bf16.msra.mxu0 0
      %1649 = vmatprep.subr.bf16.mxu0 0
      %1650 = vmatpush1.bf16.msra.mxu0 0
      %1651 = vmatprep.subr.bf16.mxu0 0
      %1652 = vmatpush1.bf16.msra.mxu0 0
      %1653 = vmatprep.subr.bf16.mxu0 0
      %1654 = vmatpush1.bf16.msra.mxu0 0
      %1655 = vmatprep.subr.bf16.mxu0 0
      %1656 = vmatpush1.bf16.msra.mxu0 0
      %1657 = vmatprep.subr.bf16.mxu0 0
      %1658 = vmatpush1.bf16.msra.mxu0 0
      %1659 = vmatprep.subr.bf16.mxu0 0
      %1660 = vmatpush1.bf16.msra.mxu0 0
      %1661 = vmatprep.subr.bf16.mxu0 0
      %1662 = vmatpush1.bf16.msra.mxu0 0
      %1663 = vmatprep.subr.bf16.mxu0 0
      %1664 = vmatpush1.bf16.msra.mxu0 0
      %1665 = vmatprep.subr.bf16.mxu0 0
      %1666 = vmatpush1.bf16.msra.mxu0 0
      %1667 = vmatprep.subr.bf16.mxu0 0
      %1668 = vmatpush1.bf16.msra.mxu0 0
      %1669 = vmatprep.subr.bf16.mxu0 0
      %1670 = vmatpush1.bf16.msra.mxu0 0
      %1671 = vmatprep.mubr.bf16.mxu0 0
      %1672 = vmatmul.mubr.bf16.gmra.mrb[0].mxu0 %v1628
      %v1673 = vpop.f32.mrb[0].mxu0
      %v1674 = vadd.f32 0.0, %v1673
      %v1675 = vpop.f32.mrb[0].mxu0
      %v1676 = vpop.f32.mrb[0].mxu0
      %v1677 = vadd.f32 0.0, %v1676
      %v1678 = vpop.f32.mrb[0].mxu0
      %1679 = vmatprep.mubr.bf16.mxu0 0
      %1680 = vmatmul.mubr.bf16.gmra.mrb[0].mxu0 %v1631
      %v1681 = vpop.f32.mrb[0].mxu0
      %v1682 = vadd.f32 0.0, %v1681
      %v1683 = vpop.f32.mrb[0].mxu0
      %v1684 = vpop.f32.mrb[0].mxu0
      %v1685 = vadd.f32 0.0, %v1684
      %v1686 = vpop.f32.mrb[0].mxu0
      %1687 = vmatprep.mubr.bf16.mxu0 0
      %1688 = vmatmul.mubr.bf16.gmra.mrb[0].mxu0 %v1634
      %v1689 = vpop.f32.mrb[0].mxu0
      %v1690 = vadd.f32 0.0, %v1689
      %v1691 = vpop.f32.mrb[0].mxu0
      %v1692 = vpop.f32.mrb[0].mxu0
      %v1693 = vadd.f32 0.0, %v1692
      %v1694 = vpop.f32.mrb[0].mxu0
      %1695 = vmatprep.mubr.bf16.mxu0 0
      %1696 = vmatmul.mubr.bf16.gmra.mrb[0].mxu0 %v1637
      %v1697 = vpop.f32.mrb[0].mxu0
      %v1698 = vadd.f32 0.0, %v1697
      %v1699 = vpop.f32.mrb[0].mxu0
      %v1700 = vpop.f32.mrb[0].mxu0
      %v1701 = vadd.f32 0.0, %v1700
      %v1702 = vpop.f32.mrb[0].mxu0
      %1703 = vdwg.mxu0
      %v1704 = vadd.f32 %v1598, %v1674
      %v1705 = vadd.f32 %v1599, %v1677
      %v1706 = vadd.f32 %v1600, %v1682
      %v1707 = vadd.f32 %v1601, %v1685
      %v1708 = vadd.f32 %v1602, %v1690
      %v1709 = vadd.f32 %v1603, %v1693
      %v1710 = vadd.f32 %v1604, %v1698
      %v1711 = vadd.f32 %v1605, %v1701
      %v1712 = vpack.c.bf16 0.0, %v983
      %s1713 = scalar_lea.vmem %s7, 112
      %v1714 = vld [vmem:[%s1713] sm:$0xf]
      %v1715 = vld [vmem:[%s1713 + $0x4] sm:$0xf]
      %v1716 = vld [vmem:[%s1713 + $0x8] sm:$0xf]
      %v1717 = vld [vmem:[%s1713 + $0xc] sm:$0xf]
      %v1722 = vunpack.c.l.b16 %v1714
      %v1723 = vunpack.c.l.b16 %v1715
      %v1724 = vunpack.c.l.b16 %v1716
      %v1725 = vunpack.c.l.b16 %v1717
      %v1726 = vpack.c.b16 %v1723, %v1722
      %v1727 = vpack.c.b16 %v1725, %v1724
      %v1731 = vsel %vm898, %v1712, 0
      %1733 = vmatprep.subr.bf16.mxu0 0
      %1734 = vmatpush1.bf16.msra.mxu0 %v1726
      %1735 = vmatprep.subr.bf16.mxu0 0
      %1736 = vmatpush1.bf16.msra.mxu0 %v1727
      %1737 = vmatprep.subr.bf16.mxu0 0
      %1738 = vmatpush1.bf16.msra.mxu0 0
      %1739 = vmatprep.subr.bf16.mxu0 0
      %1740 = vmatpush1.bf16.msra.mxu0 0
      %1741 = vmatprep.subr.bf16.mxu0 0
      %1742 = vmatpush1.bf16.msra.mxu0 0
      %1743 = vmatprep.subr.bf16.mxu0 0
      %1744 = vmatpush1.bf16.msra.mxu0 0
      %1745 = vmatprep.subr.bf16.mxu0 0
      %1746 = vmatpush1.bf16.msra.mxu0 0
      %1747 = vmatprep.subr.bf16.mxu0 0
      %1748 = vmatpush1.bf16.msra.mxu0 0
      %1749 = vmatprep.subr.bf16.mxu0 0
      %1750 = vmatpush1.bf16.msra.mxu0 0
      %1751 = vmatprep.subr.bf16.mxu0 0
      %1752 = vmatpush1.bf16.msra.mxu0 0
      %1753 = vmatprep.subr.bf16.mxu0 0
      %1754 = vmatpush1.bf16.msra.mxu0 0
      %1755 = vmatprep.subr.bf16.mxu0 0
      %1756 = vmatpush1.bf16.msra.mxu0 0
      %1757 = vmatprep.subr.bf16.mxu0 0
      %1758 = vmatpush1.bf16.msra.mxu0 0
      %1759 = vmatprep.subr.bf16.mxu0 0
      %1760 = vmatpush1.bf16.msra.mxu0 0
      %1761 = vmatprep.subr.bf16.mxu0 0
      %1762 = vmatpush1.bf16.msra.mxu0 0
      %1763 = vmatprep.subr.bf16.mxu0 0
      %1764 = vmatpush1.bf16.msra.mxu0 0
      %1765 = vmatprep.mubr.bf16.mxu0 0
      %1766 = vmatmul.mubr.bf16.gmra.mrb[0].mxu0 %v1525
      %v1767 = vpop.f32.mrb[0].mxu0
      %v1768 = vadd.f32 0.0, %v1767
      %v1769 = vpop.f32.mrb[0].mxu0
      %v1770 = vpop.f32.mrb[0].mxu0
      %v1771 = vadd.f32 0.0, %v1770
      %v1772 = vpop.f32.mrb[0].mxu0
      %1773 = vmatprep.mubr.bf16.mxu0 0
      %1774 = vmatmul.mubr.bf16.gmra.mrb[0].mxu0 %v1528
      %v1775 = vpop.f32.mrb[0].mxu0
      %v1776 = vadd.f32 0.0, %v1775
      %v1777 = vpop.f32.mrb[0].mxu0
      %v1778 = vpop.f32.mrb[0].mxu0
      %v1779 = vadd.f32 0.0, %v1778
      %v1780 = vpop.f32.mrb[0].mxu0
      %1781 = vmatprep.mubr.bf16.mxu0 0
      %1782 = vmatmul.mubr.bf16.gmra.mrb[0].mxu0 %v1531
      %v1783 = vpop.f32.mrb[0].mxu0
      %v1784 = vadd.f32 0.0, %v1783
      %v1785 = vpop.f32.mrb[0].mxu0
      %v1786 = vpop.f32.mrb[0].mxu0
      %v1787 = vadd.f32 0.0, %v1786
      %v1788 = vpop.f32.mrb[0].mxu0
      %1789 = vmatprep.mubr.bf16.mxu0 0
      %1790 = vmatmul.mubr.bf16.gmra.mrb[0].mxu0 %v1731
      %v1791 = vpop.f32.mrb[0].mxu0
      %v1792 = vadd.f32 0.0, %v1791
      %v1793 = vpop.f32.mrb[0].mxu0
      %v1794 = vpop.f32.mrb[0].mxu0
      %v1795 = vadd.f32 0.0, %v1794
      %v1796 = vpop.f32.mrb[0].mxu0
      %1797 = vdwg.mxu0
      %v1798 = vadd.f32 %v1704, %v1768
      %v1799 = vadd.f32 %v1705, %v1771
      %v1800 = vadd.f32 %v1706, %v1776
      %v1801 = vadd.f32 %v1707, %v1779
      %v1802 = vadd.f32 %v1708, %v1784
      %v1803 = vadd.f32 %v1709, %v1787
      %v1804 = vadd.f32 %v1710, %v1792
      %v1805 = vadd.f32 %v1711, %v1795
      %v1806 = vpack.c.bf16 %v1203, 0.0
      %v1807 = vpack.c.bf16 %v1205, %v1204
      %v1808 = vpack.c.bf16 %v1207, %v1206
      %v1809 = vpack.c.bf16 %v1209, %v1208
      %s1810 = scalar_lea.vmem %s7, 32
      %v1811 = vld [vmem:[%s1810] sm:$0xf]
      %v1812 = vld [vmem:[%s1810 + $0x4] sm:$0xf]
      %v1813 = vld [vmem:[%s1810 + $0x8] sm:$0xf]
      %v1814 = vld [vmem:[%s1810 + $0xc] sm:$0xf]
      %v1819 = vunpack.c.l.b16 %v1811
      %v1820 = vunpack.c.l.b16 %v1812
      %v1821 = vunpack.c.l.b16 %v1813
      %v1822 = vunpack.c.l.b16 %v1814
      %v1823 = vpack.c.b16 %v1820, %v1819
      %v1824 = vpack.c.b16 %v1822, %v1821
      %v1828 = vsel %vm898, %v1806, 0
      %v1831 = vsel %vm898, %v1807, 0
      %v1834 = vsel %vm898, %v1808, 0
      %v1837 = vsel %vm898, %v1809, 0
      %1839 = vmatprep.subr.bf16.mxu0 0
      %1840 = vmatpush1.bf16.msra.mxu0 %v1823
      %1841 = vmatprep.subr.bf16.mxu0 0
      %1842 = vmatpush1.bf16.msra.mxu0 %v1824
      %1843 = vmatprep.subr.bf16.mxu0 0
      %1844 = vmatpush1.bf16.msra.mxu0 0
      %1845 = vmatprep.subr.bf16.mxu0 0
      %1846 = vmatpush1.bf16.msra.mxu0 0
      %1847 = vmatprep.subr.bf16.mxu0 0
      %1848 = vmatpush1.bf16.msra.mxu0 0
      %1849 = vmatprep.subr.bf16.mxu0 0
      %1850 = vmatpush1.bf16.msra.mxu0 0
      %1851 = vmatprep.subr.bf16.mxu0 0
      %1852 = vmatpush1.bf16.msra.mxu0 0
      %1853 = vmatprep.subr.bf16.mxu0 0
      %1854 = vmatpush1.bf16.msra.mxu0 0
      %1855 = vmatprep.subr.bf16.mxu0 0
      %1856 = vmatpush1.bf16.msra.mxu0 0
      %1857 = vmatprep.subr.bf16.mxu0 0
      %1858 = vmatpush1.bf16.msra.mxu0 0
      %1859 = vmatprep.subr.bf16.mxu0 0
      %1860 = vmatpush1.bf16.msra.mxu0 0
      %1861 = vmatprep.subr.bf16.mxu0 0
      %1862 = vmatpush1.bf16.msra.mxu0 0
      %1863 = vmatprep.subr.bf16.mxu0 0
      %1864 = vmatpush1.bf16.msra.mxu0 0
      %1865 = vmatprep.subr.bf16.mxu0 0
      %1866 = vmatpush1.bf16.msra.mxu0 0
      %1867 = vmatprep.subr.bf16.mxu0 0
      %1868 = vmatpush1.bf16.msra.mxu0 0
      %1869 = vmatprep.subr.bf16.mxu0 0
      %1870 = vmatpush1.bf16.msra.mxu0 0
      %1871 = vmatprep.mubr.bf16.mxu0 0
      %1872 = vmatmul.mubr.bf16.gmra.mrb[0].mxu0 %v1828
      %v1873 = vpop.f32.mrb[0].mxu0
      %v1874 = vadd.f32 0.0, %v1873
      %v1875 = vpop.f32.mrb[0].mxu0
      %v1876 = vpop.f32.mrb[0].mxu0
      %v1877 = vadd.f32 0.0, %v1876
      %v1878 = vpop.f32.mrb[0].mxu0
      %1879 = vmatprep.mubr.bf16.mxu0 0
      %1880 = vmatmul.mubr.bf16.gmra.mrb[0].mxu0 %v1831
      %v1881 = vpop.f32.mrb[0].mxu0
      %v1882 = vadd.f32 0.0, %v1881
      %v1883 = vpop.f32.mrb[0].mxu0
      %v1884 = vpop.f32.mrb[0].mxu0
      %v1885 = vadd.f32 0.0, %v1884
      %v1886 = vpop.f32.mrb[0].mxu0
      %1887 = vmatprep.mubr.bf16.mxu0 0
      %1888 = vmatmul.mubr.bf16.gmra.mrb[0].mxu0 %v1834
      %v1889 = vpop.f32.mrb[0].mxu0
      %v1890 = vadd.f32 0.0, %v1889
      %v1891 = vpop.f32.mrb[0].mxu0
      %v1892 = vpop.f32.mrb[0].mxu0
      %v1893 = vadd.f32 0.0, %v1892
      %v1894 = vpop.f32.mrb[0].mxu0
      %1895 = vmatprep.mubr.bf16.mxu0 0
      %1896 = vmatmul.mubr.bf16.gmra.mrb[0].mxu0 %v1837
      %v1897 = vpop.f32.mrb[0].mxu0
      %v1898 = vadd.f32 0.0, %v1897
      %v1899 = vpop.f32.mrb[0].mxu0
      %v1900 = vpop.f32.mrb[0].mxu0
      %v1901 = vadd.f32 0.0, %v1900
      %v1902 = vpop.f32.mrb[0].mxu0
      %1903 = vdwg.mxu0
      %v1904 = vadd.f32 %v1798, %v1874
      %v1905 = vadd.f32 %v1799, %v1877
      %v1906 = vadd.f32 %v1800, %v1882
      %v1907 = vadd.f32 %v1801, %v1885
      %v1908 = vadd.f32 %v1802, %v1890
      %v1909 = vadd.f32 %v1803, %v1893
      %v1910 = vadd.f32 %v1804, %v1898
      %v1911 = vadd.f32 %v1805, %v1901
      %v1912 = vpack.c.bf16 %v1204, %v1203
      %v1913 = vpack.c.bf16 %v1206, %v1205
      %v1914 = vpack.c.bf16 %v1208, %v1207
      %v1915 = vpack.c.bf16 %v1210, %v1209
      %s1916 = scalar_lea.vmem %s7, 80
      %v1917 = vld [vmem:[%s1916] sm:$0xf]
      %v1918 = vld [vmem:[%s1916 + $0x4] sm:$0xf]
      %v1919 = vld [vmem:[%s1916 + $0x8] sm:$0xf]
      %v1920 = vld [vmem:[%s1916 + $0xc] sm:$0xf]
      %v1925 = vunpack.c.l.b16 %v1917
      %v1926 = vunpack.c.l.b16 %v1918
      %v1927 = vunpack.c.l.b16 %v1919
      %v1928 = vunpack.c.l.b16 %v1920
      %v1929 = vpack.c.b16 %v1926, %v1925
      %v1930 = vpack.c.b16 %v1928, %v1927
      %v1934 = vsel %vm898, %v1912, 0
      %v1937 = vsel %vm898, %v1913, 0
      %v1940 = vsel %vm898, %v1914, 0
      %v1943 = vsel %vm898, %v1915, 0
      %1945 = vmatprep.subr.bf16.mxu0 0
      %1946 = vmatpush1.bf16.msra.mxu0 %v1929
      %1947 = vmatprep.subr.bf16.mxu0 0
      %1948 = vmatpush1.bf16.msra.mxu0 %v1930
      %1949 = vmatprep.subr.bf16.mxu0 0
      %1950 = vmatpush1.bf16.msra.mxu0 0
      %1951 = vmatprep.subr.bf16.mxu0 0
      %1952 = vmatpush1.bf16.msra.mxu0 0
      %1953 = vmatprep.subr.bf16.mxu0 0
      %1954 = vmatpush1.bf16.msra.mxu0 0
      %1955 = vmatprep.subr.bf16.mxu0 0
      %1956 = vmatpush1.bf16.msra.mxu0 0
      %1957 = vmatprep.subr.bf16.mxu0 0
      %1958 = vmatpush1.bf16.msra.mxu0 0
      %1959 = vmatprep.subr.bf16.mxu0 0
      %1960 = vmatpush1.bf16.msra.mxu0 0
      %1961 = vmatprep.subr.bf16.mxu0 0
      %1962 = vmatpush1.bf16.msra.mxu0 0
      %1963 = vmatprep.subr.bf16.mxu0 0
      %1964 = vmatpush1.bf16.msra.mxu0 0
      %1965 = vmatprep.subr.bf16.mxu0 0
      %1966 = vmatpush1.bf16.msra.mxu0 0
      %1967 = vmatprep.subr.bf16.mxu0 0
      %1968 = vmatpush1.bf16.msra.mxu0 0
      %1969 = vmatprep.subr.bf16.mxu0 0
      %1970 = vmatpush1.bf16.msra.mxu0 0
      %1971 = vmatprep.subr.bf16.mxu0 0
      %1972 = vmatpush1.bf16.msra.mxu0 0
      %1973 = vmatprep.subr.bf16.mxu0 0
      %1974 = vmatpush1.bf16.msra.mxu0 0
      %1975 = vmatprep.subr.bf16.mxu0 0
      %1976 = vmatpush1.bf16.msra.mxu0 0
      %1977 = vmatprep.mubr.bf16.mxu0 0
      %1978 = vmatmul.mubr.bf16.gmra.mrb[0].mxu0 %v1934
      %v1979 = vpop.f32.mrb[0].mxu0
      %v1980 = vadd.f32 0.0, %v1979
      %v1981 = vpop.f32.mrb[0].mxu0
      %v1982 = vpop.f32.mrb[0].mxu0
      %v1983 = vadd.f32 0.0, %v1982
      %v1984 = vpop.f32.mrb[0].mxu0
      %1985 = vmatprep.mubr.bf16.mxu0 0
      %1986 = vmatmul.mubr.bf16.gmra.mrb[0].mxu0 %v1937
      %v1987 = vpop.f32.mrb[0].mxu0
      %v1988 = vadd.f32 0.0, %v1987
      %v1989 = vpop.f32.mrb[0].mxu0
      %v1990 = vpop.f32.mrb[0].mxu0
      %v1991 = vadd.f32 0.0, %v1990
      %v1992 = vpop.f32.mrb[0].mxu0
      %1993 = vmatprep.mubr.bf16.mxu0 0
      %1994 = vmatmul.mubr.bf16.gmra.mrb[0].mxu0 %v1940
      %v1995 = vpop.f32.mrb[0].mxu0
      %v1996 = vadd.f32 0.0, %v1995
      %v1997 = vpop.f32.mrb[0].mxu0
      %v1998 = vpop.f32.mrb[0].mxu0
      %v1999 = vadd.f32 0.0, %v1998
      %v2000 = vpop.f32.mrb[0].mxu0
      %2001 = vmatprep.mubr.bf16.mxu0 0
      %2002 = vmatmul.mubr.bf16.gmra.mrb[0].mxu0 %v1943
      %v2003 = vpop.f32.mrb[0].mxu0
      %v2004 = vadd.f32 0.0, %v2003
      %v2005 = vpop.f32.mrb[0].mxu0
      %v2006 = vpop.f32.mrb[0].mxu0
      %v2007 = vadd.f32 0.0, %v2006
      %v2008 = vpop.f32.mrb[0].mxu0
      %2009 = vdwg.mxu0
      %v2010 = vadd.f32 %v1904, %v1980
      %v2011 = vadd.f32 %v1905, %v1983
      %v2012 = vadd.f32 %v1906, %v1988
      %v2013 = vadd.f32 %v1907, %v1991
      %v2014 = vadd.f32 %v1908, %v1996
      %v2015 = vadd.f32 %v1909, %v1999
      %v2016 = vadd.f32 %v1910, %v2004
      %v2017 = vadd.f32 %v1911, %v2007
      %v2018 = vpack.c.bf16 0.0, %v1210
      %s2019 = scalar_lea.vmem %s7, 128
      %v2020 = vld [vmem:[%s2019] sm:$0xf]
      %v2021 = vld [vmem:[%s2019 + $0x4] sm:$0xf]
      %v2022 = vld [vmem:[%s2019 + $0x8] sm:$0xf]
      %v2023 = vld [vmem:[%s2019 + $0xc] sm:$0xf]
      %v2028 = vunpack.c.l.b16 %v2020
      %v2029 = vunpack.c.l.b16 %v2021
      %v2030 = vunpack.c.l.b16 %v2022
      %v2031 = vunpack.c.l.b16 %v2023
      %v2032 = vpack.c.b16 %v2029, %v2028
      %v2033 = vpack.c.b16 %v2031, %v2030
      %v2037 = vsel %vm898, %v2018, 0
      %2039 = vmatprep.subr.bf16.mxu0 0
      %2040 = vmatpush1.bf16.msra.mxu0 %v2032
      %2041 = vmatprep.subr.bf16.mxu0 0
      %2042 = vmatpush1.bf16.msra.mxu0 %v2033
      %2043 = vmatprep.subr.bf16.mxu0 0
      %2044 = vmatpush1.bf16.msra.mxu0 0
      %2045 = vmatprep.subr.bf16.mxu0 0
      %2046 = vmatpush1.bf16.msra.mxu0 0
      %2047 = vmatprep.subr.bf16.mxu0 0
      %2048 = vmatpush1.bf16.msra.mxu0 0
      %2049 = vmatprep.subr.bf16.mxu0 0
      %2050 = vmatpush1.bf16.msra.mxu0 0
      %2051 = vmatprep.subr.bf16.mxu0 0
      %2052 = vmatpush1.bf16.msra.mxu0 0
      %2053 = vmatprep.subr.bf16.mxu0 0
      %2054 = vmatpush1.bf16.msra.mxu0 0
      %2055 = vmatprep.subr.bf16.mxu0 0
      %2056 = vmatpush1.bf16.msra.mxu0 0
      %2057 = vmatprep.subr.bf16.mxu0 0
      %2058 = vmatpush1.bf16.msra.mxu0 0
      %2059 = vmatprep.subr.bf16.mxu0 0
      %2060 = vmatpush1.bf16.msra.mxu0 0
      %2061 = vmatprep.subr.bf16.mxu0 0
      %2062 = vmatpush1.bf16.msra.mxu0 0
      %2063 = vmatprep.subr.bf16.mxu0 0
      %2064 = vmatpush1.bf16.msra.mxu0 0
      %2065 = vmatprep.subr.bf16.mxu0 0
      %2066 = vmatpush1.bf16.msra.mxu0 0
      %2067 = vmatprep.subr.bf16.mxu0 0
      %2068 = vmatpush1.bf16.msra.mxu0 0
      %2069 = vmatprep.subr.bf16.mxu0 0
      %2070 = vmatpush1.bf16.msra.mxu0 0
      %2071 = vmatprep.mubr.bf16.mxu0 0
      %2072 = vmatmul.mubr.bf16.gmra.mrb[0].mxu0 %v1831
      %v2073 = vpop.f32.mrb[0].mxu0
      %v2074 = vadd.f32 0.0, %v2073
      %v2075 = vpop.f32.mrb[0].mxu0
      %v2076 = vpop.f32.mrb[0].mxu0
      %v2077 = vadd.f32 0.0, %v2076
      %v2078 = vpop.f32.mrb[0].mxu0
      %2079 = vmatprep.mubr.bf16.mxu0 0
      %2080 = vmatmul.mubr.bf16.gmra.mrb[0].mxu0 %v1834
      %v2081 = vpop.f32.mrb[0].mxu0
      %v2082 = vadd.f32 0.0, %v2081
      %v2083 = vpop.f32.mrb[0].mxu0
      %v2084 = vpop.f32.mrb[0].mxu0
      %v2085 = vadd.f32 0.0, %v2084
      %v2086 = vpop.f32.mrb[0].mxu0
      %2087 = vmatprep.mubr.bf16.mxu0 0
      %2088 = vmatmul.mubr.bf16.gmra.mrb[0].mxu0 %v1837
      %v2089 = vpop.f32.mrb[0].mxu0
      %v2090 = vadd.f32 0.0, %v2089
      %v2091 = vpop.f32.mrb[0].mxu0
      %v2092 = vpop.f32.mrb[0].mxu0
      %v2093 = vadd.f32 0.0, %v2092
      %v2094 = vpop.f32.mrb[0].mxu0
      %2095 = vmatprep.mubr.bf16.mxu0 0
      %2096 = vmatmul.mubr.bf16.gmra.mrb[0].mxu0 %v2037
      %v2097 = vpop.f32.mrb[0].mxu0
      %v2098 = vadd.f32 0.0, %v2097
      %v2099 = vpop.f32.mrb[0].mxu0
      %v2100 = vpop.f32.mrb[0].mxu0
      %v2101 = vadd.f32 0.0, %v2100
      %v2102 = vpop.f32.mrb[0].mxu0
      %2103 = vdwg.mxu0
      %v2104 = vadd.f32 %v2010, %v2074
      %v2105 = vadd.f32 %v2011, %v2077
      %v2106 = vadd.f32 %v2012, %v2082
      %v2107 = vadd.f32 %v2013, %v2085
      %v2108 = vadd.f32 %v2014, %v2090
      %v2109 = vadd.f32 %v2015, %v2093
      %v2110 = vadd.f32 %v2016, %v2098
      %v2111 = vadd.f32 %v2017, %v2101
      %v2112 = vld [vmem:[%s8] sm:$0x1]
      %v2114 = vlaneseq
      %v2115 = vshrl.u32 %v2114, 7
      %v2116 = vsub.s32 0, %v2115
      %v2117 = vrot.slane %v2112, %v2116
      %v2119 = vadd.f32 %v2104, %v2117
      %v2120 = vadd.f32 %v2105, %v2117
      %v2121 = vadd.f32 %v2106, %v2117
      %v2122 = vadd.f32 %v2107, %v2117
      %v2123 = vadd.f32 %v2108, %v2117
      %v2124 = vadd.f32 %v2109, %v2117
      %v2125 = vadd.f32 %v2110, %v2117
      %v2126 = vadd.f32 %v2111, %v2117
      %v2127 = vmax.f32 %v2119, 0.0
      %v2128 = vmax.f32 %v2120, 0.0
      %v2129 = vmax.f32 %v2121, 0.0
      %v2130 = vmax.f32 %v2122, 0.0
      %v2131 = vmax.f32 %v2123, 0.0
      %v2132 = vmax.f32 %v2124, 0.0
      %v2133 = vmax.f32 %v2125, 0.0
      %v2134 = vmax.f32 %v2126, 0.0
      %v2135 = vpack.c.bf16 %v2128, %v2127
      %v2136 = vpack.c.bf16 %v2130, %v2129
      %v2137 = vpack.c.bf16 %v2132, %v2131
      %v2138 = vpack.c.bf16 %v2134, %v2133
      %v2139 = vld [vmem:[%s9] sm:$0xf]
      %v2140 = vld [vmem:[%s9 + $0x4] sm:$0xf]
      %v2141 = vld [vmem:[%s9 + $0x8] sm:$0xf]
      %v2142 = vld [vmem:[%s9 + $0xc] sm:$0xf]
      %v2143 = vld [vmem:[%s10] sm:$0x1]
      %v2145 = vlaneseq
      %v2146 = vshrl.u32 %v2145, 7
      %v2147 = vsub.s32 0, %v2146
      %v2148 = vrot.slane %v2143, %v2147
      %v2154 = vunpack.c.l.b16 %v2139
      %v2155 = vunpack.c.l.b16 %v2140
      %v2156 = vunpack.c.l.b16 %v2141
      %v2157 = vunpack.c.l.b16 %v2142
      %v2158 = vpack.c.b16 %v2155, %v2154
      %v2159 = vpack.c.b16 %v2157, %v2156
      %v2163 = vsel %vm898, %v2135, 0
      %v2166 = vsel %vm898, %v2136, 0
      %v2169 = vsel %vm898, %v2137, 0
      %v2172 = vsel %vm898, %v2138, 0
      %2174 = vmatprep.subr.bf16.mxu0 0
      %2175 = vmatpush1.bf16.msra.mxu0 %v2158
      %2176 = vmatprep.subr.bf16.mxu0 0
      %2177 = vmatpush1.bf16.msra.mxu0 %v2159
      %2178 = vmatprep.subr.bf16.mxu0 0
      %2179 = vmatpush1.bf16.msra.mxu0 0
      %2180 = vmatprep.subr.bf16.mxu0 0
      %2181 = vmatpush1.bf16.msra.mxu0 0
      %2182 = vmatprep.subr.bf16.mxu0 0
      %2183 = vmatpush1.bf16.msra.mxu0 0
      %2184 = vmatprep.subr.bf16.mxu0 0
      %2185 = vmatpush1.bf16.msra.mxu0 0
      %2186 = vmatprep.subr.bf16.mxu0 0
      %2187 = vmatpush1.bf16.msra.mxu0 0
      %2188 = vmatprep.subr.bf16.mxu0 0
      %2189 = vmatpush1.bf16.msra.mxu0 0
      %2190 = vmatprep.subr.bf16.mxu0 0
      %2191 = vmatpush1.bf16.msra.mxu0 0
      %2192 = vmatprep.subr.bf16.mxu0 0
      %2193 = vmatpush1.bf16.msra.mxu0 0
      %2194 = vmatprep.subr.bf16.mxu0 0
      %2195 = vmatpush1.bf16.msra.mxu0 0
      %2196 = vmatprep.subr.bf16.mxu0 0
      %2197 = vmatpush1.bf16.msra.mxu0 0
      %2198 = vmatprep.subr.bf16.mxu0 0
      %2199 = vmatpush1.bf16.msra.mxu0 0
      %2200 = vmatprep.subr.bf16.mxu0 0
      %2201 = vmatpush1.bf16.msra.mxu0 0
      %2202 = vmatprep.subr.bf16.mxu0 0
      %2203 = vmatpush1.bf16.msra.mxu0 0
      %2204 = vmatprep.subr.bf16.mxu0 0
      %2205 = vmatpush1.bf16.msra.mxu0 0
      %2206 = vmatprep.mubr.bf16.mxu0 0
      %2207 = vmatmul.mubr.bf16.gmra.mrb[0].mxu0 %v2163
      %v2208 = vpop.f32.mrb[0].mxu0
      %v2209 = vadd.f32 %v2148, %v2208
      %v2210 = vpop.f32.mrb[0].mxu0
      %v2211 = vpop.f32.mrb[0].mxu0
      %v2212 = vadd.f32 %v2148, %v2211
      %v2213 = vpop.f32.mrb[0].mxu0
      %2214 = vmatprep.mubr.bf16.mxu0 0
      %2215 = vmatmul.mubr.bf16.gmra.mrb[0].mxu0 %v2166
      %v2216 = vpop.f32.mrb[0].mxu0
      %v2217 = vadd.f32 %v2148, %v2216
      %v2218 = vpop.f32.mrb[0].mxu0
      %v2219 = vpop.f32.mrb[0].mxu0
      %v2220 = vadd.f32 %v2148, %v2219
      %v2221 = vpop.f32.mrb[0].mxu0
      %2222 = vmatprep.mubr.bf16.mxu0 0
      %2223 = vmatmul.mubr.bf16.gmra.mrb[0].mxu0 %v2169
      %v2224 = vpop.f32.mrb[0].mxu0
      %v2225 = vadd.f32 %v2148, %v2224
      %v2226 = vpop.f32.mrb[0].mxu0
      %v2227 = vpop.f32.mrb[0].mxu0
      %v2228 = vadd.f32 %v2148, %v2227
      %v2229 = vpop.f32.mrb[0].mxu0
      %2230 = vmatprep.mubr.bf16.mxu0 0
      %2231 = vmatmul.mubr.bf16.gmra.mrb[0].mxu0 %v2172
      %v2232 = vpop.f32.mrb[0].mxu0
      %v2233 = vadd.f32 %v2148, %v2232
      %v2234 = vpop.f32.mrb[0].mxu0
      %v2235 = vpop.f32.mrb[0].mxu0
      %v2236 = vadd.f32 %v2148, %v2235
      %v2237 = vpop.f32.mrb[0].mxu0
      %2238 = vdwg.mxu0
      %v2239 = vadd.f32 %v2209, %v863
      %v2240 = vadd.f32 %v2212, %v864
      %v2241 = vadd.f32 %v2217, %v865
      %v2242 = vadd.f32 %v2220, %v866
      %v2243 = vadd.f32 %v2225, %v867
      %v2244 = vadd.f32 %v2228, %v868
      %v2245 = vadd.f32 %v2233, %v869
      %v2246 = vadd.f32 %v2236, %v870
      %v2247 = vmax.f32 %v2239, 0.0
      %v2248 = vmax.f32 %v2240, 0.0
      %v2249 = vmax.f32 %v2241, 0.0
      %v2250 = vmax.f32 %v2242, 0.0
      %v2251 = vmax.f32 %v2243, 0.0
      %v2252 = vmax.f32 %v2244, 0.0
      %v2253 = vmax.f32 %v2245, 0.0
      %v2254 = vmax.f32 %v2246, 0.0
      %v2255 = vpack.c.bf16 %v2248, %v2247
      %v2256 = vpack.c.bf16 %v2250, %v2249
      %v2257 = vpack.c.bf16 %v2252, %v2251
      %v2258 = vpack.c.bf16 %v2254, %v2253
      %v2263 = vunpack.c.l.b16 %v2255
      %v2264 = vunpack.c.h.b16 %v2255
      %v2265 = vunpack.c.l.b16 %v2256
      %v2266 = vunpack.c.h.b16 %v2256
      %v2267 = vunpack.c.l.b16 %v2257
      %v2268 = vunpack.c.h.b16 %v2257
      %v2269 = vunpack.c.l.b16 %v2258
      %v2270 = vunpack.c.h.b16 %v2258
      %v2271 = vpack.c.b16 %v2263, %v2263
      %v2272 = vpack.c.b16 %v2264, %v2264
      %v2273 = vpack.c.b16 %v2265, %v2265
      %v2274 = vpack.c.b16 %v2266, %v2266
      %v2275 = vpack.c.b16 %v2267, %v2267
      %v2276 = vpack.c.b16 %v2268, %v2268
      %v2277 = vpack.c.b16 %v2269, %v2269
      %v2278 = vpack.c.b16 %v2270, %v2270
      %vm2287 = vcmask 257024
      %2288 = vst.msk [vmem:[%s410] sm:$0xf] %vm2287, %v2271
      %2289 = vst.msk [vmem:[%s410 + $0x4] sm:$0xf] %vm2287, %v2272
      %2290 = vst.msk [vmem:[%s410 + $0x8] sm:$0xf] %vm2287, %v2273
      %2291 = vst.msk [vmem:[%s410 + $0xc] sm:$0xf] %vm2287, %v2274
      %2292 = vst.msk [vmem:[%s410 + $0x10] sm:$0xf] %vm2287, %v2275
      %2293 = vst.msk [vmem:[%s410 + $0x14] sm:$0xf] %vm2287, %v2276
      %2294 = vst.msk [vmem:[%s410 + $0x18] sm:$0xf] %vm2287, %v2277
      %2295 = vst.msk [vmem:[%s410 + $0x1c] sm:$0xf] %vm2287, %v2278
      %p2296 = scmp.lt.s32.totalorder %s22, 1
      %s2297 = scalar_select %p2296, %s22, 1
      %s2298 = smul.addr %s2297, 8
      %s2299 = smul.addr %s2298, 4
      %s2300 = scalar_lea.vmem %s11, %s2299
      // Predicated region
      $region65: #{light_decoder_forward.3} parent=63 // pred_check
        %p2301 = pneg %p281
      $region66: #{light_decoder_forward.3} parent=63 // pred_check_branch
        %2303 = sbr.rel (%p2301) target = $region68
      $region67: #{light_decoder_forward.3} parent=63 // pred_region
        _
      $region68: #{light_decoder_forward.3} parent=63 // pred_fallthru
        _
    $region64: #{light_decoder_forward.3} parent=5 // pred_fallthru
      _
    %p2304 = scmp.le.s32.totalorder 2, %s17
    // Predicated region
    $region69: #{light_decoder_forward.3} parent=5 // pred_check
      %p2305 = pneg %p2304
    $region70: #{light_decoder_forward.3} parent=5 // pred_check_branch
      %2307 = sbr.rel (%p2305) target = $region72
    $region71: #{light_decoder_forward.3} parent=5 // pred_region
      %s2308 = ssub.s32 %s17, 2
      // Predicated region
      $region73: #{light_decoder_forward.3} parent=71 // pred_check
        %p2309 = pneg %p287
      $region74: #{light_decoder_forward.3} parent=71 // pred_check_branch
        %2311 = sbr.rel (%p2309) target = $region76
      $region75: #{light_decoder_forward.3} parent=71 // pred_region
        %p2312 = scmp.lt.s32.totalorder %s23, 1
        %s2313 = scalar_select %p2312, %s23, 1
        %s2314 = smul.addr %s2313, 8
        %s2315 = smul.addr %s2314, 4
        %s2316 = scalar_lea.vmem %s11, %s2315
      $region76: #{light_decoder_forward.3} parent=71 // pred_fallthru
        _
    $region72: #{light_decoder_forward.3} parent=5 // pred_fallthru
      _
  $region6: #{light_decoder_forward.3} parent=0 // loop_footer
    %s21 = sadd.s32 1, %s17
  $region7: #{light_decoder_forward.3} parent=0 // loop_footer_branch
    %16 = sbr.rel target = $region3
  $region8: #{light_decoder_forward.3} parent=0 // loop_exit
    _

// kernel: light_decoder_forward.4
$region0: #{light_decoder_forward.4}
  #allocation0 [shape = 'u32[]', space=smem, size = 0x4, offset = 0x4, fixed_abs, tag = 'smem constant byte address 0x4 - core index']
  #allocation1 [shape = 'u32[144,128]{1,0:T(1,128)}', space=vmem, size = 0x12000, scoped, tag = 'internal scratch']
  %s0 = inlined_call_operand.vmem [shape: f32[2,8,32], index: 0, kind: input, shape index: {}]
  %s1 = inlined_call_operand.vmem [shape: bf16[2,64,32], index: 1, kind: input, shape index: {}]
  %s2 = inlined_call_operand.vmem [shape: f32[2,1,8], index: 2, kind: input, shape index: {}]
  %s3 = inlined_call_operand.vmem [shape: bf16[32,96], index: 3, kind: input, shape index: {}]
  %s4 = inlined_call_operand.vmem [shape: f32[1,96], index: 4, kind: input, shape index: {}]
  %s5 = inlined_call_operand.vmem [shape: bf16[32,32], index: 5, kind: input, shape index: {}]
  %s6 = inlined_call_operand.vmem [shape: f32[1,32], index: 6, kind: input, shape index: {}]
  %s7 = inlined_call_operand.vmem [shape: bf16[32,32], index: 7, kind: input, shape index: {}]
  %s8 = inlined_call_operand.vmem [shape: f32[1,32], index: 8, kind: input, shape index: {}]
  %s9 = inlined_call_operand.vmem [shape: bf16[32,64], index: 9, kind: input, shape index: {}]
  %s10 = inlined_call_operand.vmem [shape: f32[1,64], index: 10, kind: input, shape index: {}]
  %s11 = inlined_call_operand.vmem [shape: bf16[32,32], index: 11, kind: input, shape index: {}]
  %s12 = inlined_call_operand.vmem [shape: f32[1,32], index: 12, kind: input, shape index: {}]
  %s13 = inlined_call_operand.vmem [shape: bf16[32,64], index: 13, kind: input, shape index: {}]
  %s14 = inlined_call_operand.vmem [shape: f32[1,64], index: 14, kind: input, shape index: {}]
  %s15 = inlined_call_operand.vmem [shape: bf16[64,32], index: 15, kind: input, shape index: {}]
  %s16 = inlined_call_operand.vmem [shape: f32[1,32], index: 16, kind: input, shape index: {}]
  %s17 = inlined_call_operand.vmem [shape: f32[3,1,32], index: 17, kind: input, shape index: {}]
  %s18 = inlined_call_operand.vmem [shape: f32[3,1,32], index: 18, kind: input, shape index: {}]
  %s19 = inlined_call_operand.vmem [shape: bf16[2,8,32], index: 19, kind: output, shape index: {}]
  %s20 = sld [smem:[#allocation0]]
  $region116: #{light_decoder_forward.4} parent=0
    _
  %s22 = ssub.s32 1, %s20
  %s23 = scalar_select 0, %s22, %s20
  loop: start=0, step=1, limit=4
  $region2: #{light_decoder_forward.4} parent=0 // loop_pre_header
    _
  $region3: #{light_decoder_forward.4} parent=0 // loop_header
    %s25 = sphi 0, %s29
    %p26 = scmp.ge.s32.totalorder %s25, 4
    %s35 = sphi 0, %s37
    %s38 = sphi 0, %s35
    %s39 = sphi 0, %s38
    %s55 = sphi 0, %s39
    %s61 = sphi 0, %s63
    %s64 = sphi 0, %s61
    %s65 = sphi 0, %s64
    %s81 = sphi 0, %s65
    %s87 = sphi 0, %s89
    %s90 = sphi 0, %s87
    %s91 = sphi 0, %s90
    %s107 = sphi 0, %s91
    %s111 = sphi 0, %s111
    %s113 = sphi 0, %s111
    %s114 = sphi 0, %s113
    %s128 = sphi 0, %s114
    %s132 = sphi 0, %s132
    %s134 = sphi 0, %s132
    %s135 = sphi 0, %s134
    %s149 = sphi 0, %s135
    %s153 = sphi 0, %s153
    %s155 = sphi 0, %s153
    %s156 = sphi 0, %s155
    %s170 = sphi 0, %s156
    %s174 = sphi 0, %s174
    %s176 = sphi 0, %s174
    %s177 = sphi 0, %s176
    %s191 = sphi 0, %s177
    %s195 = sphi 0, %s195
    %s197 = sphi 0, %s195
    %s198 = sphi 0, %s197
    %s212 = sphi 0, %s198
    %s216 = sphi 0, %s216
    %s218 = sphi 0, %s216
    %s219 = sphi 0, %s218
    %s233 = sphi 0, %s219
    %s237 = sphi 0, %s237
    %s239 = sphi 0, %s237
    %s240 = sphi 0, %s239
    %s254 = sphi 0, %s240
    %s258 = sphi 0, %s258
    %s260 = sphi 0, %s258
    %s261 = sphi 0, %s260
    %s275 = sphi 0, %s261
    %s279 = sphi 0, %s279
    %s281 = sphi 0, %s279
    %s282 = sphi 0, %s281
    %s296 = sphi 0, %s282
    %s300 = sphi 0, %s300
    %s302 = sphi 0, %s300
    %s303 = sphi 0, %s302
    %s317 = sphi 0, %s303
    %s321 = sphi 0, %s321
    %s323 = sphi 0, %s321
    %s324 = sphi 0, %s323
    %s338 = sphi 0, %s324
    %s342 = sphi 0, %s342
    %s344 = sphi 0, %s342
    %s345 = sphi 0, %s344
    %s359 = sphi 0, %s345
    %s363 = sphi 0, %s363
    %s365 = sphi 0, %s363
    %s366 = sphi 0, %s365
    %s380 = sphi 0, %s366
    %s384 = sphi 0, %s384
    %s386 = sphi 0, %s384
    %s387 = sphi 0, %s386
    %s401 = sphi 0, %s387
    %s405 = sphi 0, %s405
    %s407 = sphi 0, %s405
    %s408 = sphi 0, %s407
    %s422 = sphi 0, %s408
    %s426 = sphi 0, %s426
    %s428 = sphi 0, %s426
    %s429 = sphi 0, %s428
    %s443 = sphi 0, %s429
    %s449 = sphi 0, %s451
    %s452 = sphi 0, %s449
    %s453 = sphi 0, %s452
    %s469 = sphi 0, %s453
  $region4: #{light_decoder_forward.4} parent=0 // loop_header_branch
    %28 = sbr.rel (%p26) target = $region8
  $region5: #{light_decoder_forward.4} parent=0 // loop_body
    %s30 = ssub.s32 %s25, 1
    %s31 = ssub.s32 %s25, 2
    %s32 = sadd.s32 %s25, 1
    %s33 = ssub.s32 %s25, %s32
    %p34 = scmp.eq.s32.totalorder %s33, 0
    %s36 = sadd.s32 %s35, 1
    %s37 = scalar_select %p34, %s35, %s36
    %p40 = pneg %p34
    %p41 = scmp.eq.s32.totalorder %s25, 1
    %p42 = por %p40, %p41
    %p43 = scmp.ne.s32.totalorder %s35, %s38
    %p44 = scmp.eq.s32.totalorder %s25, 0
    %p45 = por %p43, %p44
    %p46 = scmp.ne.s32.totalorder %s35, %s38
    %p47 = scmp.eq.s32.totalorder %s30, 1
    %p48 = por %p46, %p47
    %p49 = scmp.ne.s32.totalorder %s38, %s39
    %p50 = scmp.eq.s32.totalorder %s30, 0
    %p51 = por %p49, %p50
    %p52 = scmp.ne.s32.totalorder %s38, %s39
    %p53 = scmp.eq.s32.totalorder %s31, 1
    %p54 = por %p52, %p53
    %p56 = scmp.ne.s32.totalorder %s39, %s55
    %p57 = scmp.eq.s32.totalorder %s31, 0
    %p58 = por %p56, %p57
    %s59 = ssub.s32 %s25, %s32
    %p60 = scmp.eq.s32.totalorder %s59, 0
    %s62 = sadd.s32 %s61, 1
    %s63 = scalar_select %p60, %s61, %s62
    %p66 = pneg %p60
    %p67 = scmp.eq.s32.totalorder %s25, 1
    %p68 = por %p66, %p67
    %p69 = scmp.ne.s32.totalorder %s61, %s64
    %p70 = scmp.eq.s32.totalorder %s25, 0
    %p71 = por %p69, %p70
    %p72 = scmp.ne.s32.totalorder %s61, %s64
    %p73 = scmp.eq.s32.totalorder %s30, 1
    %p74 = por %p72, %p73
    %p75 = scmp.ne.s32.totalorder %s64, %s65
    %p76 = scmp.eq.s32.totalorder %s30, 0
    %p77 = por %p75, %p76
    %p78 = scmp.ne.s32.totalorder %s64, %s65
    %p79 = scmp.eq.s32.totalorder %s31, 1
    %p80 = por %p78, %p79
    %p82 = scmp.ne.s32.totalorder %s65, %s81
    %p83 = scmp.eq.s32.totalorder %s31, 0
    %p84 = por %p82, %p83
    %s85 = ssub.s32 %s25, %s32
    %p86 = scmp.eq.s32.totalorder %s85, 0
    %s88 = sadd.s32 %s87, 1
    %s89 = scalar_select %p86, %s87, %s88
    %p92 = pneg %p86
    %p93 = scmp.eq.s32.totalorder %s25, 1
    %p94 = por %p92, %p93
    %p95 = scmp.ne.s32.totalorder %s87, %s90
    %p96 = scmp.eq.s32.totalorder %s25, 0
    %p97 = por %p95, %p96
    %p98 = scmp.ne.s32.totalorder %s87, %s90
    %p99 = scmp.eq.s32.totalorder %s30, 1
    %p100 = por %p98, %p99
    %p101 = scmp.ne.s32.totalorder %s90, %s91
    %p102 = scmp.eq.s32.totalorder %s30, 0
    %p103 = por %p101, %p102
    %p104 = scmp.ne.s32.totalorder %s90, %s91
    %p105 = scmp.eq.s32.totalorder %s31, 1
    %p106 = por %p104, %p105
    %p108 = scmp.ne.s32.totalorder %s91, %s107
    %p109 = scmp.eq.s32.totalorder %s31, 0
    %p110 = por %p108, %p109
    %s112 = sadd.s32 %s111, 1
    %p115 = scmp.eq.s32.totalorder %s25, 1
    %p116 = scmp.ne.s32.totalorder %s111, %s113
    %p117 = scmp.eq.s32.totalorder %s25, 0
    %p118 = por %p116, %p117
    %p119 = scmp.ne.s32.totalorder %s111, %s113
    %p120 = scmp.eq.s32.totalorder %s30, 1
    %p121 = por %p119, %p120
    %p122 = scmp.ne.s32.totalorder %s113, %s114
    %p123 = scmp.eq.s32.totalorder %s30, 0
    %p124 = por %p122, %p123
    %p125 = scmp.ne.s32.totalorder %s113, %s114
    %p126 = scmp.eq.s32.totalorder %s31, 1
    %p127 = por %p125, %p126
    %p129 = scmp.ne.s32.totalorder %s114, %s128
    %p130 = scmp.eq.s32.totalorder %s31, 0
    %p131 = por %p129, %p130
    %s133 = sadd.s32 %s132, 1
    %p136 = scmp.eq.s32.totalorder %s25, 1
    %p137 = scmp.ne.s32.totalorder %s132, %s134
    %p138 = scmp.eq.s32.totalorder %s25, 0
    %p139 = por %p137, %p138
    %p140 = scmp.ne.s32.totalorder %s132, %s134
    %p141 = scmp.eq.s32.totalorder %s30, 1
    %p142 = por %p140, %p141
    %p143 = scmp.ne.s32.totalorder %s134, %s135
    %p144 = scmp.eq.s32.totalorder %s30, 0
    %p145 = por %p143, %p144
    %p146 = scmp.ne.s32.totalorder %s134, %s135
    %p147 = scmp.eq.s32.totalorder %s31, 1
    %p148 = por %p146, %p147
    %p150 = scmp.ne.s32.totalorder %s135, %s149
    %p151 = scmp.eq.s32.totalorder %s31, 0
    %p152 = por %p150, %p151
    %s154 = sadd.s32 %s153, 1
    %p157 = scmp.eq.s32.totalorder %s25, 1
    %p158 = scmp.ne.s32.totalorder %s153, %s155
    %p159 = scmp.eq.s32.totalorder %s25, 0
    %p160 = por %p158, %p159
    %p161 = scmp.ne.s32.totalorder %s153, %s155
    %p162 = scmp.eq.s32.totalorder %s30, 1
    %p163 = por %p161, %p162
    %p164 = scmp.ne.s32.totalorder %s155, %s156
    %p165 = scmp.eq.s32.totalorder %s30, 0
    %p166 = por %p164, %p165
    %p167 = scmp.ne.s32.totalorder %s155, %s156
    %p168 = scmp.eq.s32.totalorder %s31, 1
    %p169 = por %p167, %p168
    %p171 = scmp.ne.s32.totalorder %s156, %s170
    %p172 = scmp.eq.s32.totalorder %s31, 0
    %p173 = por %p171, %p172
    %s175 = sadd.s32 %s174, 1
    %p178 = scmp.eq.s32.totalorder %s25, 1
    %p179 = scmp.ne.s32.totalorder %s174, %s176
    %p180 = scmp.eq.s32.totalorder %s25, 0
    %p181 = por %p179, %p180
    %p182 = scmp.ne.s32.totalorder %s174, %s176
    %p183 = scmp.eq.s32.totalorder %s30, 1
    %p184 = por %p182, %p183
    %p185 = scmp.ne.s32.totalorder %s176, %s177
    %p186 = scmp.eq.s32.totalorder %s30, 0
    %p187 = por %p185, %p186
    %p188 = scmp.ne.s32.totalorder %s176, %s177
    %p189 = scmp.eq.s32.totalorder %s31, 1
    %p190 = por %p188, %p189
    %p192 = scmp.ne.s32.totalorder %s177, %s191
    %p193 = scmp.eq.s32.totalorder %s31, 0
    %p194 = por %p192, %p193
    %s196 = sadd.s32 %s195, 1
    %p199 = scmp.eq.s32.totalorder %s25, 1
    %p200 = scmp.ne.s32.totalorder %s195, %s197
    %p201 = scmp.eq.s32.totalorder %s25, 0
    %p202 = por %p200, %p201
    %p203 = scmp.ne.s32.totalorder %s195, %s197
    %p204 = scmp.eq.s32.totalorder %s30, 1
    %p205 = por %p203, %p204
    %p206 = scmp.ne.s32.totalorder %s197, %s198
    %p207 = scmp.eq.s32.totalorder %s30, 0
    %p208 = por %p206, %p207
    %p209 = scmp.ne.s32.totalorder %s197, %s198
    %p210 = scmp.eq.s32.totalorder %s31, 1
    %p211 = por %p209, %p210
    %p213 = scmp.ne.s32.totalorder %s198, %s212
    %p214 = scmp.eq.s32.totalorder %s31, 0
    %p215 = por %p213, %p214
    %s217 = sadd.s32 %s216, 1
    %p220 = scmp.eq.s32.totalorder %s25, 1
    %p221 = scmp.ne.s32.totalorder %s216, %s218
    %p222 = scmp.eq.s32.totalorder %s25, 0
    %p223 = por %p221, %p222
    %p224 = scmp.ne.s32.totalorder %s216, %s218
    %p225 = scmp.eq.s32.totalorder %s30, 1
    %p226 = por %p224, %p225
    %p227 = scmp.ne.s32.totalorder %s218, %s219
    %p228 = scmp.eq.s32.totalorder %s30, 0
    %p229 = por %p227, %p228
    %p230 = scmp.ne.s32.totalorder %s218, %s219
    %p231 = scmp.eq.s32.totalorder %s31, 1
    %p232 = por %p230, %p231
    %p234 = scmp.ne.s32.totalorder %s219, %s233
    %p235 = scmp.eq.s32.totalorder %s31, 0
    %p236 = por %p234, %p235
    %s238 = sadd.s32 %s237, 1
    %p241 = scmp.eq.s32.totalorder %s25, 1
    %p242 = scmp.ne.s32.totalorder %s237, %s239
    %p243 = scmp.eq.s32.totalorder %s25, 0
    %p244 = por %p242, %p243
    %p245 = scmp.ne.s32.totalorder %s237, %s239
    %p246 = scmp.eq.s32.totalorder %s30, 1
    %p247 = por %p245, %p246
    %p248 = scmp.ne.s32.totalorder %s239, %s240
    %p249 = scmp.eq.s32.totalorder %s30, 0
    %p250 = por %p248, %p249
    %p251 = scmp.ne.s32.totalorder %s239, %s240
    %p252 = scmp.eq.s32.totalorder %s31, 1
    %p253 = por %p251, %p252
    %p255 = scmp.ne.s32.totalorder %s240, %s254
    %p256 = scmp.eq.s32.totalorder %s31, 0
    %p257 = por %p255, %p256
    %s259 = sadd.s32 %s258, 1
    %p262 = scmp.eq.s32.totalorder %s25, 1
    %p263 = scmp.ne.s32.totalorder %s258, %s260
    %p264 = scmp.eq.s32.totalorder %s25, 0
    %p265 = por %p263, %p264
    %p266 = scmp.ne.s32.totalorder %s258, %s260
    %p267 = scmp.eq.s32.totalorder %s30, 1
    %p268 = por %p266, %p267
    %p269 = scmp.ne.s32.totalorder %s260, %s261
    %p270 = scmp.eq.s32.totalorder %s30, 0
    %p271 = por %p269, %p270
    %p272 = scmp.ne.s32.totalorder %s260, %s261
    %p273 = scmp.eq.s32.totalorder %s31, 1
    %p274 = por %p272, %p273
    %p276 = scmp.ne.s32.totalorder %s261, %s275
    %p277 = scmp.eq.s32.totalorder %s31, 0
    %p278 = por %p276, %p277
    %s280 = sadd.s32 %s279, 1
    %p283 = scmp.eq.s32.totalorder %s25, 1
    %p284 = scmp.ne.s32.totalorder %s279, %s281
    %p285 = scmp.eq.s32.totalorder %s25, 0
    %p286 = por %p284, %p285
    %p287 = scmp.ne.s32.totalorder %s279, %s281
    %p288 = scmp.eq.s32.totalorder %s30, 1
    %p289 = por %p287, %p288
    %p290 = scmp.ne.s32.totalorder %s281, %s282
    %p291 = scmp.eq.s32.totalorder %s30, 0
    %p292 = por %p290, %p291
    %p293 = scmp.ne.s32.totalorder %s281, %s282
    %p294 = scmp.eq.s32.totalorder %s31, 1
    %p295 = por %p293, %p294
    %p297 = scmp.ne.s32.totalorder %s282, %s296
    %p298 = scmp.eq.s32.totalorder %s31, 0
    %p299 = por %p297, %p298
    %s301 = sadd.s32 %s300, 1
    %p304 = scmp.eq.s32.totalorder %s25, 1
    %p305 = scmp.ne.s32.totalorder %s300, %s302
    %p306 = scmp.eq.s32.totalorder %s25, 0
    %p307 = por %p305, %p306
    %p308 = scmp.ne.s32.totalorder %s300, %s302
    %p309 = scmp.eq.s32.totalorder %s30, 1
    %p310 = por %p308, %p309
    %p311 = scmp.ne.s32.totalorder %s302, %s303
    %p312 = scmp.eq.s32.totalorder %s30, 0
    %p313 = por %p311, %p312
    %p314 = scmp.ne.s32.totalorder %s302, %s303
    %p315 = scmp.eq.s32.totalorder %s31, 1
    %p316 = por %p314, %p315
    %p318 = scmp.ne.s32.totalorder %s303, %s317
    %p319 = scmp.eq.s32.totalorder %s31, 0
    %p320 = por %p318, %p319
    %s322 = sadd.s32 %s321, 1
    %p325 = scmp.eq.s32.totalorder %s25, 1
    %p326 = scmp.ne.s32.totalorder %s321, %s323
    %p327 = scmp.eq.s32.totalorder %s25, 0
    %p328 = por %p326, %p327
    %p329 = scmp.ne.s32.totalorder %s321, %s323
    %p330 = scmp.eq.s32.totalorder %s30, 1
    %p331 = por %p329, %p330
    %p332 = scmp.ne.s32.totalorder %s323, %s324
    %p333 = scmp.eq.s32.totalorder %s30, 0
    %p334 = por %p332, %p333
    %p335 = scmp.ne.s32.totalorder %s323, %s324
    %p336 = scmp.eq.s32.totalorder %s31, 1
    %p337 = por %p335, %p336
    %p339 = scmp.ne.s32.totalorder %s324, %s338
    %p340 = scmp.eq.s32.totalorder %s31, 0
    %p341 = por %p339, %p340
    %s343 = sadd.s32 %s342, 1
    %p346 = scmp.eq.s32.totalorder %s25, 1
    %p347 = scmp.ne.s32.totalorder %s342, %s344
    %p348 = scmp.eq.s32.totalorder %s25, 0
    %p349 = por %p347, %p348
    %p350 = scmp.ne.s32.totalorder %s342, %s344
    %p351 = scmp.eq.s32.totalorder %s30, 1
    %p352 = por %p350, %p351
    %p353 = scmp.ne.s32.totalorder %s344, %s345
    %p354 = scmp.eq.s32.totalorder %s30, 0
    %p355 = por %p353, %p354
    %p356 = scmp.ne.s32.totalorder %s344, %s345
    %p357 = scmp.eq.s32.totalorder %s31, 1
    %p358 = por %p356, %p357
    %p360 = scmp.ne.s32.totalorder %s345, %s359
    %p361 = scmp.eq.s32.totalorder %s31, 0
    %p362 = por %p360, %p361
    %s364 = sadd.s32 %s363, 1
    %p367 = scmp.eq.s32.totalorder %s25, 1
    %p368 = scmp.ne.s32.totalorder %s363, %s365
    %p369 = scmp.eq.s32.totalorder %s25, 0
    %p370 = por %p368, %p369
    %p371 = scmp.ne.s32.totalorder %s363, %s365
    %p372 = scmp.eq.s32.totalorder %s30, 1
    %p373 = por %p371, %p372
    %p374 = scmp.ne.s32.totalorder %s365, %s366
    %p375 = scmp.eq.s32.totalorder %s30, 0
    %p376 = por %p374, %p375
    %p377 = scmp.ne.s32.totalorder %s365, %s366
    %p378 = scmp.eq.s32.totalorder %s31, 1
    %p379 = por %p377, %p378
    %p381 = scmp.ne.s32.totalorder %s366, %s380
    %p382 = scmp.eq.s32.totalorder %s31, 0
    %p383 = por %p381, %p382
    %s385 = sadd.s32 %s384, 1
    %p388 = scmp.eq.s32.totalorder %s25, 1
    %p389 = scmp.ne.s32.totalorder %s384, %s386
    %p390 = scmp.eq.s32.totalorder %s25, 0
    %p391 = por %p389, %p390
    %p392 = scmp.ne.s32.totalorder %s384, %s386
    %p393 = scmp.eq.s32.totalorder %s30, 1
    %p394 = por %p392, %p393
    %p395 = scmp.ne.s32.totalorder %s386, %s387
    %p396 = scmp.eq.s32.totalorder %s30, 0
    %p397 = por %p395, %p396
    %p398 = scmp.ne.s32.totalorder %s386, %s387
    %p399 = scmp.eq.s32.totalorder %s31, 1
    %p400 = por %p398, %p399
    %p402 = scmp.ne.s32.totalorder %s387, %s401
    %p403 = scmp.eq.s32.totalorder %s31, 0
    %p404 = por %p402, %p403
    %s406 = sadd.s32 %s405, 1
    %p409 = scmp.eq.s32.totalorder %s25, 1
    %p410 = scmp.ne.s32.totalorder %s405, %s407
    %p411 = scmp.eq.s32.totalorder %s25, 0
    %p412 = por %p410, %p411
    %p413 = scmp.ne.s32.totalorder %s405, %s407
    %p414 = scmp.eq.s32.totalorder %s30, 1
    %p415 = por %p413, %p414
    %p416 = scmp.ne.s32.totalorder %s407, %s408
    %p417 = scmp.eq.s32.totalorder %s30, 0
    %p418 = por %p416, %p417
    %p419 = scmp.ne.s32.totalorder %s407, %s408
    %p420 = scmp.eq.s32.totalorder %s31, 1
    %p421 = por %p419, %p420
    %p423 = scmp.ne.s32.totalorder %s408, %s422
    %p424 = scmp.eq.s32.totalorder %s31, 0
    %p425 = por %p423, %p424
    %s427 = sadd.s32 %s426, 1
    %p430 = scmp.eq.s32.totalorder %s25, 1
    %p431 = scmp.ne.s32.totalorder %s426, %s428
    %p432 = scmp.eq.s32.totalorder %s25, 0
    %p433 = por %p431, %p432
    %p434 = scmp.ne.s32.totalorder %s426, %s428
    %p435 = scmp.eq.s32.totalorder %s30, 1
    %p436 = por %p434, %p435
    %p437 = scmp.ne.s32.totalorder %s428, %s429
    %p438 = scmp.eq.s32.totalorder %s30, 0
    %p439 = por %p437, %p438
    %p440 = scmp.ne.s32.totalorder %s428, %s429
    %p441 = scmp.eq.s32.totalorder %s31, 1
    %p442 = por %p440, %p441
    %p444 = scmp.ne.s32.totalorder %s429, %s443
    %p445 = scmp.eq.s32.totalorder %s31, 0
    %p446 = por %p444, %p445
    %s447 = ssub.s32 %s25, %s32
    %p448 = scmp.eq.s32.totalorder %s447, 0
    %s450 = sadd.s32 %s449, 1
    %s451 = scalar_select %p448, %s449, %s450
    %p454 = pneg %p448
    %p455 = scmp.eq.s32.totalorder %s25, 1
    %p456 = por %p454, %p455
    %p457 = scmp.ne.s32.totalorder %s449, %s452
    %p458 = scmp.eq.s32.totalorder %s25, 0
    %p459 = por %p457, %p458
    %p460 = scmp.ne.s32.totalorder %s449, %s452
    %p461 = scmp.eq.s32.totalorder %s30, 1
    %p462 = por %p460, %p461
    %p463 = scmp.ne.s32.totalorder %s452, %s453
    %p464 = scmp.eq.s32.totalorder %s30, 0
    %p465 = por %p463, %p464
    %p466 = scmp.ne.s32.totalorder %s452, %s453
    %p467 = scmp.eq.s32.totalorder %s31, 1
    %p468 = por %p466, %p467
    %p470 = scmp.ne.s32.totalorder %s453, %s469
    %p471 = scmp.eq.s32.totalorder %s31, 0
    %p472 = por %p470, %p471
    %p473 = scmp.le.s32.totalorder 1, %s25
    %p474 = scmp.lt.s32.totalorder %s25, 3
    %p475 = pnand %p473, %p474
    %p476 = pneg %p475
    // Predicated region
    $region9: #{light_decoder_forward.4} parent=5 // pred_check
      _
    $region10: #{light_decoder_forward.4} parent=5 // pred_check_branch
      %478 = sbr.rel (%p475) target = $region12
    $region11: #{light_decoder_forward.4} parent=5 // pred_region
      %s479 = ssub.s32 %s25, 1
      // Predicated region
      $region13: #{light_decoder_forward.4} parent=11 // pred_check
        %p480 = pneg %p124
      $region14: #{light_decoder_forward.4} parent=11 // pred_check_branch
        %482 = sbr.rel (%p480) target = $region16
      $region15: #{light_decoder_forward.4} parent=11 // pred_region
        _
      $region16: #{light_decoder_forward.4} parent=11 // pred_fallthru
        _
      // Predicated region
      $region17: #{light_decoder_forward.4} parent=11 // pred_check
        %p483 = pneg %p145
      $region18: #{light_decoder_forward.4} parent=11 // pred_check_branch
        %485 = sbr.rel (%p483) target = $region20
      $region19: #{light_decoder_forward.4} parent=11 // pred_region
        _
      $region20: #{light_decoder_forward.4} parent=11 // pred_fallthru
        _
      // Predicated region
      $region21: #{light_decoder_forward.4} parent=11 // pred_check
        %p486 = pneg %p166
      $region22: #{light_decoder_forward.4} parent=11 // pred_check_branch
        %488 = sbr.rel (%p486) target = $region24
      $region23: #{light_decoder_forward.4} parent=11 // pred_region
        _
      $region24: #{light_decoder_forward.4} parent=11 // pred_fallthru
        _
      // Predicated region
      $region25: #{light_decoder_forward.4} parent=11 // pred_check
        %p489 = pneg %p187
      $region26: #{light_decoder_forward.4} parent=11 // pred_check_branch
        %491 = sbr.rel (%p489) target = $region28
      $region27: #{light_decoder_forward.4} parent=11 // pred_region
        _
      $region28: #{light_decoder_forward.4} parent=11 // pred_fallthru
        _
      // Predicated region
      $region29: #{light_decoder_forward.4} parent=11 // pred_check
        %p492 = pneg %p208
      $region30: #{light_decoder_forward.4} parent=11 // pred_check_branch
        %494 = sbr.rel (%p492) target = $region32
      $region31: #{light_decoder_forward.4} parent=11 // pred_region
        _
      $region32: #{light_decoder_forward.4} parent=11 // pred_fallthru
        _
      // Predicated region
      $region33: #{light_decoder_forward.4} parent=11 // pred_check
        %p495 = pneg %p229
      $region34: #{light_decoder_forward.4} parent=11 // pred_check_branch
        %497 = sbr.rel (%p495) target = $region36
      $region35: #{light_decoder_forward.4} parent=11 // pred_region
        _
      $region36: #{light_decoder_forward.4} parent=11 // pred_fallthru
        _
      // Predicated region
      $region37: #{light_decoder_forward.4} parent=11 // pred_check
        %p498 = pneg %p250
      $region38: #{light_decoder_forward.4} parent=11 // pred_check_branch
        %500 = sbr.rel (%p498) target = $region40
      $region39: #{light_decoder_forward.4} parent=11 // pred_region
        _
      $region40: #{light_decoder_forward.4} parent=11 // pred_fallthru
        _
      // Predicated region
      $region41: #{light_decoder_forward.4} parent=11 // pred_check
        %p501 = pneg %p271
      $region42: #{light_decoder_forward.4} parent=11 // pred_check_branch
        %503 = sbr.rel (%p501) target = $region44
      $region43: #{light_decoder_forward.4} parent=11 // pred_region
        _
      $region44: #{light_decoder_forward.4} parent=11 // pred_fallthru
        _
      // Predicated region
      $region45: #{light_decoder_forward.4} parent=11 // pred_check
        %p504 = pneg %p292
      $region46: #{light_decoder_forward.4} parent=11 // pred_check_branch
        %506 = sbr.rel (%p504) target = $region48
      $region47: #{light_decoder_forward.4} parent=11 // pred_region
        _
      $region48: #{light_decoder_forward.4} parent=11 // pred_fallthru
        _
      // Predicated region
      $region49: #{light_decoder_forward.4} parent=11 // pred_check
        %p507 = pneg %p313
      $region50: #{light_decoder_forward.4} parent=11 // pred_check_branch
        %509 = sbr.rel (%p507) target = $region52
      $region51: #{light_decoder_forward.4} parent=11 // pred_region
        _
      $region52: #{light_decoder_forward.4} parent=11 // pred_fallthru
        _
      // Predicated region
      $region53: #{light_decoder_forward.4} parent=11 // pred_check
        %p510 = pneg %p334
      $region54: #{light_decoder_forward.4} parent=11 // pred_check_branch
        %512 = sbr.rel (%p510) target = $region56
      $region55: #{light_decoder_forward.4} parent=11 // pred_region
        _
      $region56: #{light_decoder_forward.4} parent=11 // pred_fallthru
        _
      // Predicated region
      $region57: #{light_decoder_forward.4} parent=11 // pred_check
        %p513 = pneg %p355
      $region58: #{light_decoder_forward.4} parent=11 // pred_check_branch
        %515 = sbr.rel (%p513) target = $region60
      $region59: #{light_decoder_forward.4} parent=11 // pred_region
        _
      $region60: #{light_decoder_forward.4} parent=11 // pred_fallthru
        _
      // Predicated region
      $region61: #{light_decoder_forward.4} parent=11 // pred_check
        %p516 = pneg %p376
      $region62: #{light_decoder_forward.4} parent=11 // pred_check_branch
        %518 = sbr.rel (%p516) target = $region64
      $region63: #{light_decoder_forward.4} parent=11 // pred_region
        _
      $region64: #{light_decoder_forward.4} parent=11 // pred_fallthru
        _
      // Predicated region
      $region65: #{light_decoder_forward.4} parent=11 // pred_check
        %p519 = pneg %p397
      $region66: #{light_decoder_forward.4} parent=11 // pred_check_branch
        %521 = sbr.rel (%p519) target = $region68
      $region67: #{light_decoder_forward.4} parent=11 // pred_region
        _
      $region68: #{light_decoder_forward.4} parent=11 // pred_fallthru
        _
      // Predicated region
      $region69: #{light_decoder_forward.4} parent=11 // pred_check
        %p522 = pneg %p418
      $region70: #{light_decoder_forward.4} parent=11 // pred_check_branch
        %524 = sbr.rel (%p522) target = $region72
      $region71: #{light_decoder_forward.4} parent=11 // pred_region
        _
      $region72: #{light_decoder_forward.4} parent=11 // pred_fallthru
        _
      // Predicated region
      $region73: #{light_decoder_forward.4} parent=11 // pred_check
        %p525 = pneg %p439
      $region74: #{light_decoder_forward.4} parent=11 // pred_check_branch
        %527 = sbr.rel (%p525) target = $region76
      $region75: #{light_decoder_forward.4} parent=11 // pred_region
        _
      $region76: #{light_decoder_forward.4} parent=11 // pred_fallthru
        _
    $region12: #{light_decoder_forward.4} parent=5 // pred_fallthru
      _
    %p528 = scmp.lt.s32.totalorder %s25, 2
    // Predicated region
    $region77: #{light_decoder_forward.4} parent=5 // pred_check
      %p529 = pneg %p528
    $region78: #{light_decoder_forward.4} parent=5 // pred_check_branch
      %531 = sbr.rel (%p529) target = $region80
    $region79: #{light_decoder_forward.4} parent=5 // pred_region
      // Predicated region
      $region81: #{light_decoder_forward.4} parent=79 // pred_check
        %p532 = pneg %p45
      $region82: #{light_decoder_forward.4} parent=79 // pred_check_branch
        %534 = sbr.rel (%p532) target = $region84
      $region83: #{light_decoder_forward.4} parent=79 // pred_region
        %p535 = scmp.lt.s32.totalorder %s25, 1
        %s536 = scalar_select %p535, %s25, 1
        %s537 = smul.addr %s536, 8
        %s538 = scalar_lea.vmem %s0, %s537
      $region84: #{light_decoder_forward.4} parent=79 // pred_fallthru
        _
      // Predicated region
      $region85: #{light_decoder_forward.4} parent=79 // pred_check
        %p539 = pneg %p71
      $region86: #{light_decoder_forward.4} parent=79 // pred_check_branch
        %541 = sbr.rel (%p539) target = $region88
      $region87: #{light_decoder_forward.4} parent=79 // pred_region
        %p542 = scmp.lt.s32.totalorder %s25, 1
        %s543 = scalar_select %p542, %s25, 1
        %s544 = smul.addr %s543, 8
        %s545 = smul.addr %s544, 4
        %s546 = scalar_lea.vmem %s1, %s545
      $region88: #{light_decoder_forward.4} parent=79 // pred_fallthru
        _
      // Predicated region
      $region89: #{light_decoder_forward.4} parent=79 // pred_check
        %p547 = pneg %p97
      $region90: #{light_decoder_forward.4} parent=79 // pred_check_branch
        %549 = sbr.rel (%p547) target = $region92
      $region91: #{light_decoder_forward.4} parent=79 // pred_region
        %p550 = scmp.lt.s32.totalorder %s25, 1
        %s551 = scalar_select %p550, %s25, 1
        %s552 = scalar_lea.vmem %s2, %s551
      $region92: #{light_decoder_forward.4} parent=79 // pred_fallthru
        _
    $region80: #{light_decoder_forward.4} parent=5 // pred_fallthru
      _
    %p553 = scmp.le.s32.totalorder 1, %s25
    %p554 = scmp.lt.s32.totalorder %s25, 3
    %p555 = pnand %p553, %p554
    %p556 = pneg %p555
    // Predicated region
    $region93: #{light_decoder_forward.4} parent=5 // pred_check
      _
    $region94: #{light_decoder_forward.4} parent=5 // pred_check_branch
      %558 = sbr.rel (%p555) target = $region96
    $region95: #{light_decoder_forward.4} parent=5 // pred_region
      %s559 = ssub.s32 %s25, 1
      %p560 = scmp.lt.s32.totalorder %s30, 1
      %s561 = scalar_select %p560, %s30, 1
      %s562 = smul.addr %s561, 8
      %s563 = scalar_lea.vmem %s0, %s562
      %p564 = pneg %p51
      %p565 = pneg %p48
      %p566 = scmp.lt.s32.totalorder %s30, 1
      %s567 = scalar_select %p566, %s30, 1
      %s568 = smul.addr %s567, 8
      %s569 = smul.addr %s568, 4
      %s570 = scalar_lea.vmem %s1, %s569
      %p571 = pneg %p77
      %p572 = pneg %p74
      %p573 = scmp.lt.s32.totalorder %s30, 1
      %s574 = scalar_select %p573, %s30, 1
      %s575 = scalar_lea.vmem %s2, %s574
      %p576 = pneg %p103
      %p577 = pneg %p100
      %p578 = pneg %p124
      %p579 = pneg %p121
      %p580 = pneg %p145
      %p581 = pneg %p142
      %p582 = pneg %p166
      %p583 = pneg %p163
      %p584 = pneg %p187
      %p585 = pneg %p184
      %p586 = pneg %p208
      %p587 = pneg %p205
      %p588 = pneg %p229
      %p589 = pneg %p226
      %p590 = pneg %p250
      %p591 = pneg %p247
      %p592 = pneg %p271
      %p593 = pneg %p268
      %p594 = pneg %p292
      %p595 = pneg %p289
      %p596 = pneg %p313
      %p597 = pneg %p310
      %p598 = pneg %p334
      %p599 = pneg %p331
      %p600 = pneg %p355
      %p601 = pneg %p352
      %p602 = pneg %p376
      %p603 = pneg %p373
      %p604 = pneg %p397
      %p605 = pneg %p394
      %p606 = pneg %p418
      %p607 = pneg %p415
      %p608 = pneg %p439
      %p609 = pneg %p436
      %p610 = pneg %p465
      %p611 = pneg %p462
      %p612 = scmp.lt.s32.totalorder %s30, 1
      %s613 = scalar_select %p612, %s30, 1
      %s614 = smul.addr %s613, 4
      %s615 = scalar_lea.vmem %s19, %s614
      %p616 = scmp.lt.s32.totalorder %s30, 1
      %s617 = scalar_select %p616, %s30, 1
      %s618 = smul.addr %s617, 8
      %s619 = scalar_lea.vmem %s0, %s618
      %p620 = scmp.lt.s32.totalorder %s30, 1
      %s621 = scalar_select %p620, %s30, 1
      %s622 = smul.addr %s621, 8
      %s623 = smul.addr %s622, 4
      %s624 = scalar_lea.vmem %s1, %s623
      %p625 = scmp.lt.s32.totalorder %s30, 1
      %s626 = scalar_select %p625, %s30, 1
      %s627 = scalar_lea.vmem %s2, %s626
      %p628 = scmp.lt.s32.totalorder %s30, 1
      %s629 = scalar_select %p628, %s30, 1
      %s630 = smul.addr %s629, 4
      %s631 = scalar_lea.vmem %s19, %s630
      %v633 = vld [vmem:[%s619] sm:$0xff]
      %v634 = vld [vmem:[%s624] sm:$0xf]
      %v635 = vld [vmem:[%s624 + $0x4] sm:$0xf]
      %v636 = vld [vmem:[%s624 + $0x8] sm:$0xf]
      %v637 = vld [vmem:[%s624 + $0xc] sm:$0xf]
      %v638 = vld [vmem:[%s624 + $0x10] sm:$0xf]
      %v639 = vld [vmem:[%s624 + $0x14] sm:$0xf]
      %v640 = vld [vmem:[%s624 + $0x18] sm:$0xf]
      %v641 = vld [vmem:[%s624 + $0x1c] sm:$0xf]
      %v642 = vld [vmem:[%s627] sm:$0x1]
      %v643 = vlaneseq
      %v644 = vshrl.u32 %v643, 7
      %v645 = vlaneseq
      %v646 = vand.u32 %v645, 127
      %vm647 = vcmp.gt.s32.totalorder %v646, %v644
      %v648 = vsel %vm647, -1e+30, 0.0
      %v650 = vlaneseq
      %v651 = vshrl.u32 %v650, 7
      %v652 = vsub.s32 0, %v651
      %v653 = vrot.slane %v642, %v652
      %v655 = vadd.f32 %v648, %v653
      %v656 = vld [vmem:[%s9] sm:$0xf]
      %v657 = vld [vmem:[%s9 + $0x4] sm:$0xf]
      %v658 = vld [vmem:[%s9 + $0x8] sm:$0xf]
      %v659 = vld [vmem:[%s9 + $0xc] sm:$0xf]
      %v660 = vld [vmem:[%s10] sm:$0x1]
      %v662 = vlaneseq
      %v663 = vshrl.u32 %v662, 7
      %v664 = vsub.s32 0, %v663
      %v665 = vrot.slane %v660, %v664
      %v675 = vunpack.c.l.b16 %v634
      %v676 = vunpack.c.l.b16 %v635
      %v677 = vunpack.c.l.b16 %v636
      %v678 = vunpack.c.l.b16 %v637
      %v679 = vunpack.c.l.b16 %v638
      %v680 = vunpack.c.l.b16 %v639
      %v681 = vunpack.c.l.b16 %v640
      %v682 = vunpack.c.l.b16 %v641
      %v683 = vpack.c.b16 %v676, %v675
      %v684 = vpack.c.b16 %v678, %v677
      %v685 = vpack.c.b16 %v680, %v679
      %v686 = vpack.c.b16 %v682, %v681
      %v691 = vunpack.c.l.b16 %v656
      %v692 = vunpack.c.l.b16 %v657
      %v693 = vunpack.c.l.b16 %v658
      %v694 = vunpack.c.l.b16 %v659
      %v695 = vpack.c.b16 %v692, %v691
      %v696 = vpack.c.b16 %v694, %v693
      %vm699 = vcmask 261120
      %v701 = vsel %vm699, %v683, 0
      %v704 = vsel %vm699, %v684, 0
      %v707 = vsel %vm699, %v685, 0
      %v710 = vsel %vm699, %v686, 0
      %712 = vmatprep.subr.bf16.mxu0 0
      %713 = vmatpush1.bf16.msra.mxu0 %v695
      %714 = vmatprep.subr.bf16.mxu0 0
      %715 = vmatpush1.bf16.msra.mxu0 %v696
      %716 = vmatprep.subr.bf16.mxu0 0
      %717 = vmatpush1.bf16.msra.mxu0 0
      %718 = vmatprep.subr.bf16.mxu0 0
      %719 = vmatpush1.bf16.msra.mxu0 0
      %720 = vmatprep.subr.bf16.mxu0 0
      %721 = vmatpush1.bf16.msra.mxu0 0
      %722 = vmatprep.subr.bf16.mxu0 0
      %723 = vmatpush1.bf16.msra.mxu0 0
      %724 = vmatprep.subr.bf16.mxu0 0
      %725 = vmatpush1.bf16.msra.mxu0 0
      %726 = vmatprep.subr.bf16.mxu0 0
      %727 = vmatpush1.bf16.msra.mxu0 0
      %728 = vmatprep.subr.bf16.mxu0 0
      %729 = vmatpush1.bf16.msra.mxu0 0
      %730 = vmatprep.subr.bf16.mxu0 0
      %731 = vmatpush1.bf16.msra.mxu0 0
      %732 = vmatprep.subr.bf16.mxu0 0
      %733 = vmatpush1.bf16.msra.mxu0 0
      %734 = vmatprep.subr.bf16.mxu0 0
      %735 = vmatpush1.bf16.msra.mxu0 0
      %736 = vmatprep.subr.bf16.mxu0 0
      %737 = vmatpush1.bf16.msra.mxu0 0
      %738 = vmatprep.subr.bf16.mxu0 0
      %739 = vmatpush1.bf16.msra.mxu0 0
      %740 = vmatprep.subr.bf16.mxu0 0
      %741 = vmatpush1.bf16.msra.mxu0 0
      %742 = vmatprep.subr.bf16.mxu0 0
      %743 = vmatpush1.bf16.msra.mxu0 0
      %744 = vmatprep.mubr.bf16.mxu0 0
      %745 = vmatmul.mubr.bf16.gmra.mrb[0].mxu0 %v701
      %v746 = vpop.f32.mrb[0].mxu0
      %v747 = vadd.f32 %v665, %v746
      %v748 = vpop.f32.mrb[0].mxu0
      %v749 = vpop.f32.mrb[0].mxu0
      %v750 = vadd.f32 %v665, %v749
      %v751 = vpop.f32.mrb[0].mxu0
      %752 = vmatprep.mubr.bf16.mxu0 0
      %753 = vmatmul.mubr.bf16.gmra.mrb[0].mxu0 %v704
      %v754 = vpop.f32.mrb[0].mxu0
      %v755 = vadd.f32 %v665, %v754
      %v756 = vpop.f32.mrb[0].mxu0
      %v757 = vpop.f32.mrb[0].mxu0
      %v758 = vadd.f32 %v665, %v757
      %v759 = vpop.f32.mrb[0].mxu0
      %760 = vmatprep.mubr.bf16.mxu0 0
      %761 = vmatmul.mubr.bf16.gmra.mrb[0].mxu0 %v707
      %v762 = vpop.f32.mrb[0].mxu0
      %v763 = vadd.f32 %v665, %v762
      %v764 = vpop.f32.mrb[0].mxu0
      %v765 = vpop.f32.mrb[0].mxu0
      %v766 = vadd.f32 %v665, %v765
      %v767 = vpop.f32.mrb[0].mxu0
      %768 = vmatprep.mubr.bf16.mxu0 0
      %769 = vmatmul.mubr.bf16.gmra.mrb[0].mxu0 %v710
      %v770 = vpop.f32.mrb[0].mxu0
      %v771 = vadd.f32 %v665, %v770
      %v772 = vpop.f32.mrb[0].mxu0
      %v773 = vpop.f32.mrb[0].mxu0
      %v774 = vadd.f32 %v665, %v773
      %v775 = vpop.f32.mrb[0].mxu0
      %776 = vdwg.mxu0
      %v777 = vpack.c.bf16 %v750, %v747
      %v778 = vpack.c.bf16 %v758, %v755
      %v779 = vpack.c.bf16 %v766, %v763
      %v780 = vpack.c.bf16 %v774, %v771
      loop: start=0, step=1, limit=2
      $region97: #{light_decoder_forward.4} parent=95 // loop_pre_header
        _
      $region98: #{light_decoder_forward.4} parent=95 // loop_header
        %s782 = sphi 0, %s786
        %p783 = scmp.ge.s32.totalorder %s782, 2
        %v787 = vphi %v633, %v2320
      $region99: #{light_decoder_forward.4} parent=95 // loop_header_branch
        %785 = sbr.rel (%p783) target = $region103
      $region100: #{light_decoder_forward.4} parent=95 // loop_body
        %v788 = vpack.c.bf16 %v787, %v787
        %v789 = vld [vmem:[%s3] sm:$0xf]
        %v790 = vld [vmem:[%s3 + $0x4] sm:$0xf]
        %v791 = vld [vmem:[%s3 + $0x8] sm:$0xf]
        %v792 = vld [vmem:[%s3 + $0xc] sm:$0xf]
        %v793 = vld [vmem:[%s4] sm:$0x1]
        %v795 = vlaneseq
        %v796 = vshrl.u32 %v795, 7
        %v797 = vsub.s32 0, %v796
        %v798 = vrot.slane %v793, %v797
        %v804 = vunpack.c.l.b16 %v789
        %v805 = vunpack.c.l.b16 %v790
        %v806 = vunpack.c.l.b16 %v791
        %v807 = vunpack.c.l.b16 %v792
        %v808 = vpack.c.b16 %v805, %v804
        %v809 = vpack.c.b16 %v807, %v806
        %v813 = vsel %vm699, %v788, 0
        %815 = vmatprep.subr.bf16.mxu0 0
        %816 = vmatpush1.bf16.msra.mxu0 %v808
        %817 = vmatprep.subr.bf16.mxu0 0
        %818 = vmatpush1.bf16.msra.mxu0 %v809
        %819 = vmatprep.subr.bf16.mxu0 0
        %820 = vmatpush1.bf16.msra.mxu0 0
        %821 = vmatprep.subr.bf16.mxu0 0
        %822 = vmatpush1.bf16.msra.mxu0 0
        %823 = vmatprep.subr.bf16.mxu0 0
        %824 = vmatpush1.bf16.msra.mxu0 0
        %825 = vmatprep.subr.bf16.mxu0 0
        %826 = vmatpush1.bf16.msra.mxu0 0
        %827 = vmatprep.subr.bf16.mxu0 0
        %828 = vmatpush1.bf16.msra.mxu0 0
        %829 = vmatprep.subr.bf16.mxu0 0
        %830 = vmatpush1.bf16.msra.mxu0 0
        %831 = vmatprep.subr.bf16.mxu0 0
        %832 = vmatpush1.bf16.msra.mxu0 0
        %833 = vmatprep.subr.bf16.mxu0 0
        %834 = vmatpush1.bf16.msra.mxu0 0
        %835 = vmatprep.subr.bf16.mxu0 0
        %836 = vmatpush1.bf16.msra.mxu0 0
        %837 = vmatprep.subr.bf16.mxu0 0
        %838 = vmatpush1.bf16.msra.mxu0 0
        %839 = vmatprep.subr.bf16.mxu0 0
        %840 = vmatpush1.bf16.msra.mxu0 0
        %841 = vmatprep.subr.bf16.mxu0 0
        %842 = vmatpush1.bf16.msra.mxu0 0
        %843 = vmatprep.subr.bf16.mxu0 0
        %844 = vmatpush1.bf16.msra.mxu0 0
        %845 = vmatprep.subr.bf16.mxu0 0
        %846 = vmatpush1.bf16.msra.mxu0 0
        %847 = vmatprep.mubr.bf16.mxu0 0
        %848 = vmatmul.mubr.bf16.gmra.mrb[0].mxu0 %v813
        %v849 = vpop.f32.mrb[0].mxu0
        %v850 = vadd.f32 %v798, %v849
        %v851 = vpop.f32.mrb[0].mxu0
        %v852 = vpop.f32.mrb[0].mxu0
        %v853 = vpop.f32.mrb[0].mxu0
        %854 = vdwg.mxu0
        %v855 = vpack.c.bf16 %v850, %v850
        %857 = vrot.lane.b32.xlu0 %v855, 96
        %v858 = vpop.permute.xlu0 %857
        %vm859 = vcmask 64512
        %v861 = vsel %vm859, %v855, 0
        %v864 = vsel %vm859, %v858, 0
        %866 = vmatprep.subr.bf16.mxu0 0
        %867 = vmatpush1.bf16.xpose.msra.mxu0 %v864
        %868 = vmatprep.subr.bf16.mxu0 0
        %869 = vmatpush1.bf16.xpose.msra.mxu0 0
        %870 = vmatprep.subr.bf16.mxu0 0
        %871 = vmatpush1.bf16.xpose.msra.mxu0 0
        %872 = vmatprep.subr.bf16.mxu0 0
        %873 = vmatpush1.bf16.xpose.msra.mxu0 0
        %874 = vmatprep.subr.bf16.mxu0 0
        %875 = vmatpush1.bf16.xpose.msra.mxu0 0
        %876 = vmatprep.subr.bf16.mxu0 0
        %877 = vmatpush1.bf16.xpose.msra.mxu0 0
        %878 = vmatprep.subr.bf16.mxu0 0
        %879 = vmatpush1.bf16.xpose.msra.mxu0 0
        %880 = vmatprep.subr.bf16.mxu0 0
        %881 = vmatpush1.bf16.xpose.msra.mxu0 0
        %882 = vmatprep.subr.bf16.mxu0 0
        %883 = vmatpush1.bf16.xpose.msra.mxu0 0
        %884 = vmatprep.subr.bf16.mxu0 0
        %885 = vmatpush1.bf16.xpose.msra.mxu0 0
        %886 = vmatprep.subr.bf16.mxu0 0
        %887 = vmatpush1.bf16.xpose.msra.mxu0 0
        %888 = vmatprep.subr.bf16.mxu0 0
        %889 = vmatpush1.bf16.xpose.msra.mxu0 0
        %890 = vmatprep.subr.bf16.mxu0 0
        %891 = vmatpush1.bf16.xpose.msra.mxu0 0
        %892 = vmatprep.subr.bf16.mxu0 0
        %893 = vmatpush1.bf16.xpose.msra.mxu0 0
        %894 = vmatprep.subr.bf16.mxu0 0
        %895 = vmatpush1.bf16.xpose.msra.mxu0 0
        %896 = vmatprep.subr.bf16.mxu0 0
        %897 = vmatpush1.bf16.xpose.msra.mxu0 0
        %898 = vmatprep.mubr.bf16.mxu0 0
        %899 = vmatmul.mubr.bf16.gmra.mrb[0].mxu0 %v861
        %v900 = vpop.f32.mrb[0].mxu0
        %v901 = vadd.f32 0.0, %v900
        %v902 = vpop.f32.mrb[0].mxu0
        %v903 = vpop.f32.mrb[0].mxu0
        %v904 = vpop.f32.mrb[0].mxu0
        %905 = vdwg.mxu0
        %v906 = vmul.f32 %v901, 0.35355338
        %v907 = vadd.f32 %v906, %v655
        %v908 = vsel %vm859, %v907, -inf
        %909 = vmax.xlane.f32.xlu0 %v908
        %v910 = vpop.xlane.xlu0 %909
        %v911 = vsub.f32 %v907, %v910
        %v912 = vmul.f32 %v911, 1.442695
        %v913 = vpow.pop %v912
        %v914 = vsel %vm859, %v913, 0.0
        %915 = vadd.xlane.f32.xlu0 %v914
        %v916 = vpop.xlane.xlu0 %915
        %v917 = vpack.c.bf16 %v913, %v913
        %918 = vrot.lane.b32.xlu0 %v855, 64
        %v919 = vpop.permute.xlu0 %918
        %v921 = vsel %vm859, %v917, 0
        %vm923 = vcmask 1043456
        %v925 = vsel %vm923, %v919, 0
        %927 = vmatprep.subr.bf16.mxu0 0
        %928 = vmatpush1.bf16.msra.mxu0 %v925
        %929 = vmatprep.subr.bf16.mxu0 0
        %930 = vmatpush1.bf16.msra.mxu0 0
        %931 = vmatprep.subr.bf16.mxu0 0
        %932 = vmatpush1.bf16.msra.mxu0 0
        %933 = vmatprep.subr.bf16.mxu0 0
        %934 = vmatpush1.bf16.msra.mxu0 0
        %935 = vmatprep.subr.bf16.mxu0 0
        %936 = vmatpush1.bf16.msra.mxu0 0
        %937 = vmatprep.subr.bf16.mxu0 0
        %938 = vmatpush1.bf16.msra.mxu0 0
        %939 = vmatprep.subr.bf16.mxu0 0
        %940 = vmatpush1.bf16.msra.mxu0 0
        %941 = vmatprep.subr.bf16.mxu0 0
        %942 = vmatpush1.bf16.msra.mxu0 0
        %943 = vmatprep.subr.bf16.mxu0 0
        %944 = vmatpush1.bf16.msra.mxu0 0
        %945 = vmatprep.subr.bf16.mxu0 0
        %946 = vmatpush1.bf16.msra.mxu0 0
        %947 = vmatprep.subr.bf16.mxu0 0
        %948 = vmatpush1.bf16.msra.mxu0 0
        %949 = vmatprep.subr.bf16.mxu0 0
        %950 = vmatpush1.bf16.msra.mxu0 0
        %951 = vmatprep.subr.bf16.mxu0 0
        %952 = vmatpush1.bf16.msra.mxu0 0
        %953 = vmatprep.subr.bf16.mxu0 0
        %954 = vmatpush1.bf16.msra.mxu0 0
        %955 = vmatprep.subr.bf16.mxu0 0
        %956 = vmatpush1.bf16.msra.mxu0 0
        %957 = vmatprep.subr.bf16.mxu0 0
        %958 = vmatpush1.bf16.msra.mxu0 0
        %959 = vmatprep.mubr.bf16.mxu0 0
        %960 = vmatmul.mubr.bf16.gmra.mrb[0].mxu0 %v921
        %v961 = vpop.f32.mrb[0].mxu0
        %v962 = vadd.f32 0.0, %v961
        %v963 = vpop.f32.mrb[0].mxu0
        %v964 = vpop.f32.mrb[0].mxu0
        %v965 = vpop.f32.mrb[0].mxu0
        %966 = vdwg.mxu0
        %v967 = vrcp.pop %v916
        %v968 = vmul.f32 1.0, %v967
        %v969 = vmul.f32 %v962, %v968
        %970 = vrot.lane.b32.xlu0 %v855, 120
        %v971 = vpop.permute.xlu0 %970
        %972 = vrot.lane.b32.xlu0 %v855, 88
        %v973 = vpop.permute.xlu0 %972
        %v975 = vsel %vm859, %v971, 0
        %v978 = vsel %vm859, %v973, 0
        %980 = vmatprep.subr.bf16.mxu0 0
        %981 = vmatpush1.bf16.xpose.msra.mxu0 %v978
        %982 = vmatprep.subr.bf16.mxu0 0
        %983 = vmatpush1.bf16.xpose.msra.mxu0 0
        %984 = vmatprep.subr.bf16.mxu0 0
        %985 = vmatpush1.bf16.xpose.msra.mxu0 0
        %986 = vmatprep.subr.bf16.mxu0 0
        %987 = vmatpush1.bf16.xpose.msra.mxu0 0
        %988 = vmatprep.subr.bf16.mxu0 0
        %989 = vmatpush1.bf16.xpose.msra.mxu0 0
        %990 = vmatprep.subr.bf16.mxu0 0
        %991 = vmatpush1.bf16.xpose.msra.mxu0 0
        %992 = vmatprep.subr.bf16.mxu0 0
        %993 = vmatpush1.bf16.xpose.msra.mxu0 0
        %994 = vmatprep.subr.bf16.mxu0 0
        %995 = vmatpush1.bf16.xpose.msra.mxu0 0
        %996 = vmatprep.subr.bf16.mxu0 0
        %997 = vmatpush1.bf16.xpose.msra.mxu0 0
        %998 = vmatprep.subr.bf16.mxu0 0
        %999 = vmatpush1.bf16.xpose.msra.mxu0 0
        %1000 = vmatprep.subr.bf16.mxu0 0
        %1001 = vmatpush1.bf16.xpose.msra.mxu0 0
        %1002 = vmatprep.subr.bf16.mxu0 0
        %1003 = vmatpush1.bf16.xpose.msra.mxu0 0
        %1004 = vmatprep.subr.bf16.mxu0 0
        %1005 = vmatpush1.bf16.xpose.msra.mxu0 0
        %1006 = vmatprep.subr.bf16.mxu0 0
        %1007 = vmatpush1.bf16.xpose.msra.mxu0 0
        %1008 = vmatprep.subr.bf16.mxu0 0
        %1009 = vmatpush1.bf16.xpose.msra.mxu0 0
        %1010 = vmatprep.subr.bf16.mxu0 0
        %1011 = vmatpush1.bf16.xpose.msra.mxu0 0
        %1012 = vmatprep.mubr.bf16.mxu0 0
        %1013 = vmatmul.mubr.bf16.gmra.mrb[0].mxu0 %v975
        %v1014 = vpop.f32.mrb[0].mxu0
        %v1015 = vadd.f32 0.0, %v1014
        %v1016 = vpop.f32.mrb[0].mxu0
        %v1017 = vpop.f32.mrb[0].mxu0
        %v1018 = vpop.f32.mrb[0].mxu0
        %1019 = vdwg.mxu0
        %v1020 = vmul.f32 %v1015, 0.35355338
        %v1021 = vadd.f32 %v1020, %v655
        %v1022 = vsel %vm859, %v1021, -inf
        %1023 = vmax.xlane.f32.xlu0 %v1022
        %v1024 = vpop.xlane.xlu0 %1023
        %v1025 = vsub.f32 %v1021, %v1024
        %v1026 = vmul.f32 %v1025, 1.442695
        %v1027 = vpow.pop %v1026
        %v1028 = vsel %vm859, %v1027, 0.0
        %1029 = vadd.xlane.f32.xlu0 %v1028
        %v1030 = vpop.xlane.xlu0 %1029
        %v1031 = vpack.c.bf16 %v1027, %v1027
        %1032 = vrot.lane.b32.xlu0 %v855, 56
        %v1033 = vpop.permute.xlu0 %1032
        %v1035 = vsel %vm859, %v1031, 0
        %v1038 = vsel %vm923, %v1033, 0
        %1040 = vmatprep.subr.bf16.mxu0 0
        %1041 = vmatpush1.bf16.msra.mxu0 %v1038
        %1042 = vmatprep.subr.bf16.mxu0 0
        %1043 = vmatpush1.bf16.msra.mxu0 0
        %1044 = vmatprep.subr.bf16.mxu0 0
        %1045 = vmatpush1.bf16.msra.mxu0 0
        %1046 = vmatprep.subr.bf16.mxu0 0
        %1047 = vmatpush1.bf16.msra.mxu0 0
        %1048 = vmatprep.subr.bf16.mxu0 0
        %1049 = vmatpush1.bf16.msra.mxu0 0
        %1050 = vmatprep.subr.bf16.mxu0 0
        %1051 = vmatpush1.bf16.msra.mxu0 0
        %1052 = vmatprep.subr.bf16.mxu0 0
        %1053 = vmatpush1.bf16.msra.mxu0 0
        %1054 = vmatprep.subr.bf16.mxu0 0
        %1055 = vmatpush1.bf16.msra.mxu0 0
        %1056 = vmatprep.subr.bf16.mxu0 0
        %1057 = vmatpush1.bf16.msra.mxu0 0
        %1058 = vmatprep.subr.bf16.mxu0 0
        %1059 = vmatpush1.bf16.msra.mxu0 0
        %1060 = vmatprep.subr.bf16.mxu0 0
        %1061 = vmatpush1.bf16.msra.mxu0 0
        %1062 = vmatprep.subr.bf16.mxu0 0
        %1063 = vmatpush1.bf16.msra.mxu0 0
        %1064 = vmatprep.subr.bf16.mxu0 0
        %1065 = vmatpush1.bf16.msra.mxu0 0
        %1066 = vmatprep.subr.bf16.mxu0 0
        %1067 = vmatpush1.bf16.msra.mxu0 0
        %1068 = vmatprep.subr.bf16.mxu0 0
        %1069 = vmatpush1.bf16.msra.mxu0 0
        %1070 = vmatprep.subr.bf16.mxu0 0
        %1071 = vmatpush1.bf16.msra.mxu0 0
        %1072 = vmatprep.mubr.bf16.mxu0 0
        %1073 = vmatmul.mubr.bf16.gmra.mrb[0].mxu0 %v1035
        %v1074 = vpop.f32.mrb[0].mxu0
        %v1075 = vadd.f32 0.0, %v1074
        %v1076 = vpop.f32.mrb[0].mxu0
        %v1077 = vpop.f32.mrb[0].mxu0
        %v1078 = vpop.f32.mrb[0].mxu0
        %1079 = vdwg.mxu0
        %v1080 = vrcp.pop %v1030
        %v1081 = vmul.f32 1.0, %v1080
        %v1082 = vmul.f32 %v1075, %v1081
        %1083 = vrot.lane.b32.xlu0 %v855, 112
        %v1084 = vpop.permute.xlu0 %1083
        %1085 = vrot.lane.b32.xlu0 %v855, 80
        %v1086 = vpop.permute.xlu0 %1085
        %v1088 = vsel %vm859, %v1084, 0
        %v1091 = vsel %vm859, %v1086, 0
        %1093 = vmatprep.subr.bf16.mxu0 0
        %1094 = vmatpush1.bf16.xpose.msra.mxu0 %v1091
        %1095 = vmatprep.subr.bf16.mxu0 0
        %1096 = vmatpush1.bf16.xpose.msra.mxu0 0
        %1097 = vmatprep.subr.bf16.mxu0 0
        %1098 = vmatpush1.bf16.xpose.msra.mxu0 0
        %1099 = vmatprep.subr.bf16.mxu0 0
        %1100 = vmatpush1.bf16.xpose.msra.mxu0 0
        %1101 = vmatprep.subr.bf16.mxu0 0
        %1102 = vmatpush1.bf16.xpose.msra.mxu0 0
        %1103 = vmatprep.subr.bf16.mxu0 0
        %1104 = vmatpush1.bf16.xpose.msra.mxu0 0
        %1105 = vmatprep.subr.bf16.mxu0 0
        %1106 = vmatpush1.bf16.xpose.msra.mxu0 0
        %1107 = vmatprep.subr.bf16.mxu0 0
        %1108 = vmatpush1.bf16.xpose.msra.mxu0 0
        %1109 = vmatprep.subr.bf16.mxu0 0
        %1110 = vmatpush1.bf16.xpose.msra.mxu0 0
        %1111 = vmatprep.subr.bf16.mxu0 0
        %1112 = vmatpush1.bf16.xpose.msra.mxu0 0
        %1113 = vmatprep.subr.bf16.mxu0 0
        %1114 = vmatpush1.bf16.xpose.msra.mxu0 0
        %1115 = vmatprep.subr.bf16.mxu0 0
        %1116 = vmatpush1.bf16.xpose.msra.mxu0 0
        %1117 = vmatprep.subr.bf16.mxu0 0
        %1118 = vmatpush1.bf16.xpose.msra.mxu0 0
        %1119 = vmatprep.subr.bf16.mxu0 0
        %1120 = vmatpush1.bf16.xpose.msra.mxu0 0
        %1121 = vmatprep.subr.bf16.mxu0 0
        %1122 = vmatpush1.bf16.xpose.msra.mxu0 0
        %1123 = vmatprep.subr.bf16.mxu0 0
        %1124 = vmatpush1.bf16.xpose.msra.mxu0 0
        %1125 = vmatprep.mubr.bf16.mxu0 0
        %1126 = vmatmul.mubr.bf16.gmra.mrb[0].mxu0 %v1088
        %v1127 = vpop.f32.mrb[0].mxu0
        %v1128 = vadd.f32 0.0, %v1127
        %v1129 = vpop.f32.mrb[0].mxu0
        %v1130 = vpop.f32.mrb[0].mxu0
        %v1131 = vpop.f32.mrb[0].mxu0
        %1132 = vdwg.mxu0
        %v1133 = vmul.f32 %v1128, 0.35355338
        %v1134 = vadd.f32 %v1133, %v655
        %v1135 = vsel %vm859, %v1134, -inf
        %1136 = vmax.xlane.f32.xlu0 %v1135
        %v1137 = vpop.xlane.xlu0 %1136
        %v1138 = vsub.f32 %v1134, %v1137
        %v1139 = vmul.f32 %v1138, 1.442695
        %v1140 = vpow.pop %v1139
        %v1141 = vsel %vm859, %v1140, 0.0
        %1142 = vadd.xlane.f32.xlu0 %v1141
        %v1143 = vpop.xlane.xlu0 %1142
        %v1144 = vpack.c.bf16 %v1140, %v1140
        %1145 = vrot.lane.b32.xlu0 %v855, 48
        %v1146 = vpop.permute.xlu0 %1145
        %v1148 = vsel %vm859, %v1144, 0
        %v1151 = vsel %vm923, %v1146, 0
        %1153 = vmatprep.subr.bf16.mxu0 0
        %1154 = vmatpush1.bf16.msra.mxu0 %v1151
        %1155 = vmatprep.subr.bf16.mxu0 0
        %1156 = vmatpush1.bf16.msra.mxu0 0
        %1157 = vmatprep.subr.bf16.mxu0 0
        %1158 = vmatpush1.bf16.msra.mxu0 0
        %1159 = vmatprep.subr.bf16.mxu0 0
        %1160 = vmatpush1.bf16.msra.mxu0 0
        %1161 = vmatprep.subr.bf16.mxu0 0
        %1162 = vmatpush1.bf16.msra.mxu0 0
        %1163 = vmatprep.subr.bf16.mxu0 0
        %1164 = vmatpush1.bf16.msra.mxu0 0
        %1165 = vmatprep.subr.bf16.mxu0 0
        %1166 = vmatpush1.bf16.msra.mxu0 0
        %1167 = vmatprep.subr.bf16.mxu0 0
        %1168 = vmatpush1.bf16.msra.mxu0 0
        %1169 = vmatprep.subr.bf16.mxu0 0
        %1170 = vmatpush1.bf16.msra.mxu0 0
        %1171 = vmatprep.subr.bf16.mxu0 0
        %1172 = vmatpush1.bf16.msra.mxu0 0
        %1173 = vmatprep.subr.bf16.mxu0 0
        %1174 = vmatpush1.bf16.msra.mxu0 0
        %1175 = vmatprep.subr.bf16.mxu0 0
        %1176 = vmatpush1.bf16.msra.mxu0 0
        %1177 = vmatprep.subr.bf16.mxu0 0
        %1178 = vmatpush1.bf16.msra.mxu0 0
        %1179 = vmatprep.subr.bf16.mxu0 0
        %1180 = vmatpush1.bf16.msra.mxu0 0
        %1181 = vmatprep.subr.bf16.mxu0 0
        %1182 = vmatpush1.bf16.msra.mxu0 0
        %1183 = vmatprep.subr.bf16.mxu0 0
        %1184 = vmatpush1.bf16.msra.mxu0 0
        %1185 = vmatprep.mubr.bf16.mxu0 0
        %1186 = vmatmul.mubr.bf16.gmra.mrb[0].mxu0 %v1148
        %v1187 = vpop.f32.mrb[0].mxu0
        %v1188 = vadd.f32 0.0, %v1187
        %v1189 = vpop.f32.mrb[0].mxu0
        %v1190 = vpop.f32.mrb[0].mxu0
        %v1191 = vpop.f32.mrb[0].mxu0
        %1192 = vdwg.mxu0
        %v1193 = vrcp.pop %v1143
        %v1194 = vmul.f32 1.0, %v1193
        %v1195 = vmul.f32 %v1188, %v1194
        %1196 = vrot.lane.b32.xlu0 %v855, 104
        %v1197 = vpop.permute.xlu0 %1196
        %1198 = vrot.lane.b32.xlu0 %v855, 72
        %v1199 = vpop.permute.xlu0 %1198
        %v1201 = vsel %vm859, %v1197, 0
        %v1204 = vsel %vm859, %v1199, 0
        %1206 = vmatprep.subr.bf16.mxu0 0
        %1207 = vmatpush1.bf16.xpose.msra.mxu0 %v1204
        %1208 = vmatprep.subr.bf16.mxu0 0
        %1209 = vmatpush1.bf16.xpose.msra.mxu0 0
        %1210 = vmatprep.subr.bf16.mxu0 0
        %1211 = vmatpush1.bf16.xpose.msra.mxu0 0
        %1212 = vmatprep.subr.bf16.mxu0 0
        %1213 = vmatpush1.bf16.xpose.msra.mxu0 0
        %1214 = vmatprep.subr.bf16.mxu0 0
        %1215 = vmatpush1.bf16.xpose.msra.mxu0 0
        %1216 = vmatprep.subr.bf16.mxu0 0
        %1217 = vmatpush1.bf16.xpose.msra.mxu0 0
        %1218 = vmatprep.subr.bf16.mxu0 0
        %1219 = vmatpush1.bf16.xpose.msra.mxu0 0
        %1220 = vmatprep.subr.bf16.mxu0 0
        %1221 = vmatpush1.bf16.xpose.msra.mxu0 0
        %1222 = vmatprep.subr.bf16.mxu0 0
        %1223 = vmatpush1.bf16.xpose.msra.mxu0 0
        %1224 = vmatprep.subr.bf16.mxu0 0
        %1225 = vmatpush1.bf16.xpose.msra.mxu0 0
        %1226 = vmatprep.subr.bf16.mxu0 0
        %1227 = vmatpush1.bf16.xpose.msra.mxu0 0
        %1228 = vmatprep.subr.bf16.mxu0 0
        %1229 = vmatpush1.bf16.xpose.msra.mxu0 0
        %1230 = vmatprep.subr.bf16.mxu0 0
        %1231 = vmatpush1.bf16.xpose.msra.mxu0 0
        %1232 = vmatprep.subr.bf16.mxu0 0
        %1233 = vmatpush1.bf16.xpose.msra.mxu0 0
        %1234 = vmatprep.subr.bf16.mxu0 0
        %1235 = vmatpush1.bf16.xpose.msra.mxu0 0
        %1236 = vmatprep.subr.bf16.mxu0 0
        %1237 = vmatpush1.bf16.xpose.msra.mxu0 0
        %1238 = vmatprep.mubr.bf16.mxu0 0
        %1239 = vmatmul.mubr.bf16.gmra.mrb[0].mxu0 %v1201
        %v1240 = vpop.f32.mrb[0].mxu0
        %v1241 = vadd.f32 0.0, %v1240
        %v1242 = vpop.f32.mrb[0].mxu0
        %v1243 = vpop.f32.mrb[0].mxu0
        %v1244 = vpop.f32.mrb[0].mxu0
        %1245 = vdwg.mxu0
        %v1246 = vmul.f32 %v1241, 0.35355338
        %v1247 = vadd.f32 %v1246, %v655
        %v1248 = vsel %vm859, %v1247, -inf
        %1249 = vmax.xlane.f32.xlu0 %v1248
        %v1250 = vpop.xlane.xlu0 %1249
        %v1251 = vsub.f32 %v1247, %v1250
        %v1252 = vmul.f32 %v1251, 1.442695
        %v1253 = vpow.pop %v1252
        %v1254 = vsel %vm859, %v1253, 0.0
        %1255 = vadd.xlane.f32.xlu0 %v1254
        %v1256 = vpop.xlane.xlu0 %1255
        %v1257 = vpack.c.bf16 %v1253, %v1253
        %1258 = vrot.lane.b32.xlu0 %v855, 40
        %v1259 = vpop.permute.xlu0 %1258
        %v1261 = vsel %vm859, %v1257, 0
        %v1264 = vsel %vm923, %v1259, 0
        %1266 = vmatprep.subr.bf16.mxu0 0
        %1267 = vmatpush1.bf16.msra.mxu0 %v1264
        %1268 = vmatprep.subr.bf16.mxu0 0
        %1269 = vmatpush1.bf16.msra.mxu0 0
        %1270 = vmatprep.subr.bf16.mxu0 0
        %1271 = vmatpush1.bf16.msra.mxu0 0
        %1272 = vmatprep.subr.bf16.mxu0 0
        %1273 = vmatpush1.bf16.msra.mxu0 0
        %1274 = vmatprep.subr.bf16.mxu0 0
        %1275 = vmatpush1.bf16.msra.mxu0 0
        %1276 = vmatprep.subr.bf16.mxu0 0
        %1277 = vmatpush1.bf16.msra.mxu0 0
        %1278 = vmatprep.subr.bf16.mxu0 0
        %1279 = vmatpush1.bf16.msra.mxu0 0
        %1280 = vmatprep.subr.bf16.mxu0 0
        %1281 = vmatpush1.bf16.msra.mxu0 0
        %1282 = vmatprep.subr.bf16.mxu0 0
        %1283 = vmatpush1.bf16.msra.mxu0 0
        %1284 = vmatprep.subr.bf16.mxu0 0
        %1285 = vmatpush1.bf16.msra.mxu0 0
        %1286 = vmatprep.subr.bf16.mxu0 0
        %1287 = vmatpush1.bf16.msra.mxu0 0
        %1288 = vmatprep.subr.bf16.mxu0 0
        %1289 = vmatpush1.bf16.msra.mxu0 0
        %1290 = vmatprep.subr.bf16.mxu0 0
        %1291 = vmatpush1.bf16.msra.mxu0 0
        %1292 = vmatprep.subr.bf16.mxu0 0
        %1293 = vmatpush1.bf16.msra.mxu0 0
        %1294 = vmatprep.subr.bf16.mxu0 0
        %1295 = vmatpush1.bf16.msra.mxu0 0
        %1296 = vmatprep.subr.bf16.mxu0 0
        %1297 = vmatpush1.bf16.msra.mxu0 0
        %1298 = vmatprep.mubr.bf16.mxu0 0
        %1299 = vmatmul.mubr.bf16.gmra.mrb[0].mxu0 %v1261
        %v1300 = vpop.f32.mrb[0].mxu0
        %v1301 = vadd.f32 0.0, %v1300
        %v1302 = vpop.f32.mrb[0].mxu0
        %v1303 = vpop.f32.mrb[0].mxu0
        %v1304 = vpop.f32.mrb[0].mxu0
        %1305 = vdwg.mxu0
        %v1306 = vrcp.pop %v1256
        %v1307 = vmul.f32 1.0, %v1306
        %v1308 = vmul.f32 %v1301, %v1307
        %1310 = vrot.lane.b32.xlu0 %v1082, 8
        %v1311 = vpop.permute.xlu0 %1310
        %1314 = vrot.lane.b32.xlu0 %v1195, 16
        %v1315 = vpop.permute.xlu0 %1314
        %1318 = vrot.lane.b32.xlu0 %v1308, 24
        %v1319 = vpop.permute.xlu0 %1318
        %v1321 = vsel %vm859, %v969, %v1311
        %vm1322 = vcmask 130048
        %v1323 = vsel %vm1322, %v1321, %v1315
        %vm1324 = vcmask 195584
        %v1325 = vsel %vm1324, %v1323, %v1319
        %v1326 = vpack.c.bf16 %v1325, %v1325
        %v1327 = vld [vmem:[%s5] sm:$0xf]
        %v1328 = vld [vmem:[%s5 + $0x4] sm:$0xf]
        %v1329 = vld [vmem:[%s5 + $0x8] sm:$0xf]
        %v1330 = vld [vmem:[%s5 + $0xc] sm:$0xf]
        %v1331 = vld [vmem:[%s6] sm:$0x1]
        %v1333 = vlaneseq
        %v1334 = vshrl.u32 %v1333, 7
        %v1335 = vsub.s32 0, %v1334
        %v1336 = vrot.slane %v1331, %v1335
        %v1342 = vunpack.c.l.b16 %v1327
        %v1343 = vunpack.c.l.b16 %v1328
        %v1344 = vunpack.c.l.b16 %v1329
        %v1345 = vunpack.c.l.b16 %v1330
        %v1346 = vpack.c.b16 %v1343, %v1342
        %v1347 = vpack.c.b16 %v1345, %v1344
        %v1351 = vsel %vm699, %v1326, 0
        %1353 = vmatprep.subr.bf16.mxu0 0
        %1354 = vmatpush1.bf16.msra.mxu0 %v1346
        %1355 = vmatprep.subr.bf16.mxu0 0
        %1356 = vmatpush1.bf16.msra.mxu0 %v1347
        %1357 = vmatprep.subr.bf16.mxu0 0
        %1358 = vmatpush1.bf16.msra.mxu0 0
        %1359 = vmatprep.subr.bf16.mxu0 0
        %1360 = vmatpush1.bf16.msra.mxu0 0
        %1361 = vmatprep.subr.bf16.mxu0 0
        %1362 = vmatpush1.bf16.msra.mxu0 0
        %1363 = vmatprep.subr.bf16.mxu0 0
        %1364 = vmatpush1.bf16.msra.mxu0 0
        %1365 = vmatprep.subr.bf16.mxu0 0
        %1366 = vmatpush1.bf16.msra.mxu0 0
        %1367 = vmatprep.subr.bf16.mxu0 0
        %1368 = vmatpush1.bf16.msra.mxu0 0
        %1369 = vmatprep.subr.bf16.mxu0 0
        %1370 = vmatpush1.bf16.msra.mxu0 0
        %1371 = vmatprep.subr.bf16.mxu0 0
        %1372 = vmatpush1.bf16.msra.mxu0 0
        %1373 = vmatprep.subr.bf16.mxu0 0
        %1374 = vmatpush1.bf16.msra.mxu0 0
        %1375 = vmatprep.subr.bf16.mxu0 0
        %1376 = vmatpush1.bf16.msra.mxu0 0
        %1377 = vmatprep.subr.bf16.mxu0 0
        %1378 = vmatpush1.bf16.msra.mxu0 0
        %1379 = vmatprep.subr.bf16.mxu0 0
        %1380 = vmatpush1.bf16.msra.mxu0 0
        %1381 = vmatprep.subr.bf16.mxu0 0
        %1382 = vmatpush1.bf16.msra.mxu0 0
        %1383 = vmatprep.subr.bf16.mxu0 0
        %1384 = vmatpush1.bf16.msra.mxu0 0
        %1385 = vmatprep.mubr.bf16.mxu0 0
        %1386 = vmatmul.mubr.bf16.gmra.mrb[0].mxu0 %v1351
        %v1387 = vpop.f32.mrb[0].mxu0
        %v1388 = vadd.f32 %v1336, %v1387
        %v1389 = vpop.f32.mrb[0].mxu0
        %v1390 = vpop.f32.mrb[0].mxu0
        %v1391 = vpop.f32.mrb[0].mxu0
        %1392 = vdwg.mxu0
        %v1393 = vadd.f32 %v787, %v1388
        %v1394 = vsel %vm699, %v1393, 0.0
        %1395 = vadd.xlane.f32.xlu0 %v1394
        %v1396 = vpop.xlane.xlu0 %1395
        %v1397 = vrcp.pop 32.0
        %v1398 = vmul.f32 %v1396, %v1397
        %v1399 = vsub.f32 %v1393, %v1398
        %v1400 = vmul.f32 %v1399, %v1399
        %v1401 = vsel %vm699, %v1400, 0.0
        %1402 = vadd.xlane.f32.xlu0 %v1401
        %v1403 = vpop.xlane.xlu0 %1402
        %v1404 = vmul.f32 %v1403, %v1397
        %v1405 = vadd.f32 %v1404, 1e-05
        %v1406 = vrsqrt.pop %v1405
        %v1407 = vmul.f32 %v1399, %v1406
        %v1408 = vld [vmem:[%s17] sm:$0x1]
        %v1410 = vlaneseq
        %v1411 = vshrl.u32 %v1410, 7
        %v1412 = vsub.s32 0, %v1411
        %v1413 = vrot.slane %v1408, %v1412
        %v1415 = vmul.f32 %v1407, %v1413
        %v1416 = vld [vmem:[%s18] sm:$0x1]
        %v1418 = vlaneseq
        %v1419 = vshrl.u32 %v1418, 7
        %v1420 = vsub.s32 0, %v1419
        %v1421 = vrot.slane %v1416, %v1420
        %v1423 = vadd.f32 %v1415, %v1421
        %v1424 = vpack.c.bf16 %v1423, %v1423
        %v1425 = vld [vmem:[%s7] sm:$0xf]
        %v1426 = vld [vmem:[%s7 + $0x4] sm:$0xf]
        %v1427 = vld [vmem:[%s7 + $0x8] sm:$0xf]
        %v1428 = vld [vmem:[%s7 + $0xc] sm:$0xf]
        %v1429 = vld [vmem:[%s8] sm:$0x1]
        %v1431 = vlaneseq
        %v1432 = vshrl.u32 %v1431, 7
        %v1433 = vsub.s32 0, %v1432
        %v1434 = vrot.slane %v1429, %v1433
        %v1440 = vunpack.c.l.b16 %v1425
        %v1441 = vunpack.c.l.b16 %v1426
        %v1442 = vunpack.c.l.b16 %v1427
        %v1443 = vunpack.c.l.b16 %v1428
        %v1444 = vpack.c.b16 %v1441, %v1440
        %v1445 = vpack.c.b16 %v1443, %v1442
        %v1449 = vsel %vm699, %v1424, 0
        %1451 = vmatprep.subr.bf16.mxu0 0
        %1452 = vmatpush1.bf16.msra.mxu0 %v1444
        %1453 = vmatprep.subr.bf16.mxu0 0
        %1454 = vmatpush1.bf16.msra.mxu0 %v1445
        %1455 = vmatprep.subr.bf16.mxu0 0
        %1456 = vmatpush1.bf16.msra.mxu0 0
        %1457 = vmatprep.subr.bf16.mxu0 0
        %1458 = vmatpush1.bf16.msra.mxu0 0
        %1459 = vmatprep.subr.bf16.mxu0 0
        %1460 = vmatpush1.bf16.msra.mxu0 0
        %1461 = vmatprep.subr.bf16.mxu0 0
        %1462 = vmatpush1.bf16.msra.mxu0 0
        %1463 = vmatprep.subr.bf16.mxu0 0
        %1464 = vmatpush1.bf16.msra.mxu0 0
        %1465 = vmatprep.subr.bf16.mxu0 0
        %1466 = vmatpush1.bf16.msra.mxu0 0
        %1467 = vmatprep.subr.bf16.mxu0 0
        %1468 = vmatpush1.bf16.msra.mxu0 0
        %1469 = vmatprep.subr.bf16.mxu0 0
        %1470 = vmatpush1.bf16.msra.mxu0 0
        %1471 = vmatprep.subr.bf16.mxu0 0
        %1472 = vmatpush1.bf16.msra.mxu0 0
        %1473 = vmatprep.subr.bf16.mxu0 0
        %1474 = vmatpush1.bf16.msra.mxu0 0
        %1475 = vmatprep.subr.bf16.mxu0 0
        %1476 = vmatpush1.bf16.msra.mxu0 0
        %1477 = vmatprep.subr.bf16.mxu0 0
        %1478 = vmatpush1.bf16.msra.mxu0 0
        %1479 = vmatprep.subr.bf16.mxu0 0
        %1480 = vmatpush1.bf16.msra.mxu0 0
        %1481 = vmatprep.subr.bf16.mxu0 0
        %1482 = vmatpush1.bf16.msra.mxu0 0
        %1483 = vmatprep.mubr.bf16.mxu0 0
        %1484 = vmatmul.mubr.bf16.gmra.mrb[0].mxu0 %v1449
        %v1485 = vpop.f32.mrb[0].mxu0
        %v1486 = vadd.f32 %v1434, %v1485
        %v1487 = vpop.f32.mrb[0].mxu0
        %v1488 = vpop.f32.mrb[0].mxu0
        %v1489 = vpop.f32.mrb[0].mxu0
        %1490 = vdwg.mxu0
        %v1491 = vpack.c.bf16 %v1486, %v1486
        %v1493 = vsel %vm859, %v1491, 0
        %v1496 = vsel %vm859, %v777, 0
        %v1499 = vsel %vm859, %v778, 0
        %v1502 = vsel %vm859, %v779, 0
        %v1505 = vsel %vm859, %v780, 0
        %1507 = vmatprep.subr.bf16.mxu0 0
        %1508 = vmatpush1.bf16.xpose.msra.mxu0 %v1496
        %1509 = vmatprep.subr.bf16.mxu0 0
        %1510 = vmatpush1.bf16.xpose.msra.mxu0 %v1499
        %1511 = vmatprep.subr.bf16.mxu0 0
        %1512 = vmatpush1.bf16.xpose.msra.mxu0 %v1502
        %1513 = vmatprep.subr.bf16.mxu0 0
        %1514 = vmatpush1.bf16.xpose.msra.mxu0 %v1505
        %1515 = vmatprep.subr.bf16.mxu0 0
        %1516 = vmatpush1.bf16.xpose.msra.mxu0 0
        %1517 = vmatprep.subr.bf16.mxu0 0
        %1518 = vmatpush1.bf16.xpose.msra.mxu0 0
        %1519 = vmatprep.subr.bf16.mxu0 0
        %1520 = vmatpush1.bf16.xpose.msra.mxu0 0
        %1521 = vmatprep.subr.bf16.mxu0 0
        %1522 = vmatpush1.bf16.xpose.msra.mxu0 0
        %1523 = vmatprep.subr.bf16.mxu0 0
        %1524 = vmatpush1.bf16.xpose.msra.mxu0 0
        %1525 = vmatprep.subr.bf16.mxu0 0
        %1526 = vmatpush1.bf16.xpose.msra.mxu0 0
        %1527 = vmatprep.subr.bf16.mxu0 0
        %1528 = vmatpush1.bf16.xpose.msra.mxu0 0
        %1529 = vmatprep.subr.bf16.mxu0 0
        %1530 = vmatpush1.bf16.xpose.msra.mxu0 0
        %1531 = vmatprep.subr.bf16.mxu0 0
        %1532 = vmatpush1.bf16.xpose.msra.mxu0 0
        %1533 = vmatprep.subr.bf16.mxu0 0
        %1534 = vmatpush1.bf16.xpose.msra.mxu0 0
        %1535 = vmatprep.subr.bf16.mxu0 0
        %1536 = vmatpush1.bf16.xpose.msra.mxu0 0
        %1537 = vmatprep.subr.bf16.mxu0 0
        %1538 = vmatpush1.bf16.xpose.msra.mxu0 0
        %1539 = vmatprep.mubr.bf16.mxu0 0
        %1540 = vmatmul.mubr.bf16.gmra.mrb[0].mxu0 %v1493
        %v1541 = vpop.f32.mrb[0].mxu0
        %v1542 = vadd.f32 0.0, %v1541
        %v1543 = vpop.f32.mrb[0].mxu0
        %v1544 = vpop.f32.mrb[0].mxu0
        %v1545 = vpop.f32.mrb[0].mxu0
        %1546 = vdwg.mxu0
        %v1547 = vmul.f32 %v1542, 0.35355338
        %vm1548 = vcmask 523264
        %v1549 = vsel %vm1548, %v1547, -inf
        %1550 = vmax.xlane.f32.xlu0 %v1549
        %v1551 = vpop.xlane.xlu0 %1550
        %v1552 = vsub.f32 %v1547, %v1551
        %v1553 = vmul.f32 %v1552, 1.442695
        %v1554 = vpow.pop %v1553
        %v1555 = vsel %vm1548, %v1554, 0.0
        %1556 = vadd.xlane.f32.xlu0 %v1555
        %v1557 = vpop.xlane.xlu0 %1556
        %v1558 = vpack.c.bf16 %v1554, %v1554
        %1563 = vrot.lane.b32.xlu0 %v777, 96
        %v1564 = vpop.permute.xlu0 %1563
        %1565 = vrot.lane.b32.xlu0 %v778, 96
        %v1566 = vpop.permute.xlu0 %1565
        %1567 = vrot.lane.b32.xlu0 %v779, 96
        %v1568 = vpop.permute.xlu0 %1567
        %1569 = vrot.lane.b32.xlu0 %v780, 96
        %v1570 = vpop.permute.xlu0 %1569
        %v1576 = vsel %vm1548, %v1558, 0
        %1578 = vmatprep.subr.bf16.mxu0 0
        %1579 = vmatpush1.bf16.msra.mxu0 %v1564
        %1580 = vmatprep.subr.bf16.mxu0 0
        %1581 = vmatpush1.bf16.msra.mxu0 %v1566
        %1582 = vmatprep.subr.bf16.mxu0 0
        %1583 = vmatpush1.bf16.msra.mxu0 %v1568
        %1584 = vmatprep.subr.bf16.mxu0 0
        %1585 = vmatpush1.bf16.msra.mxu0 %v1570
        %1586 = vmatprep.subr.bf16.mxu0 0
        %1587 = vmatpush1.bf16.msra.mxu0 0
        %1588 = vmatprep.subr.bf16.mxu0 0
        %1589 = vmatpush1.bf16.msra.mxu0 0
        %1590 = vmatprep.subr.bf16.mxu0 0
        %1591 = vmatpush1.bf16.msra.mxu0 0
        %1592 = vmatprep.subr.bf16.mxu0 0
        %1593 = vmatpush1.bf16.msra.mxu0 0
        %1594 = vmatprep.subr.bf16.mxu0 0
        %1595 = vmatpush1.bf16.msra.mxu0 0
        %1596 = vmatprep.subr.bf16.mxu0 0
        %1597 = vmatpush1.bf16.msra.mxu0 0
        %1598 = vmatprep.subr.bf16.mxu0 0
        %1599 = vmatpush1.bf16.msra.mxu0 0
        %1600 = vmatprep.subr.bf16.mxu0 0
        %1601 = vmatpush1.bf16.msra.mxu0 0
        %1602 = vmatprep.subr.bf16.mxu0 0
        %1603 = vmatpush1.bf16.msra.mxu0 0
        %1604 = vmatprep.subr.bf16.mxu0 0
        %1605 = vmatpush1.bf16.msra.mxu0 0
        %1606 = vmatprep.subr.bf16.mxu0 0
        %1607 = vmatpush1.bf16.msra.mxu0 0
        %1608 = vmatprep.subr.bf16.mxu0 0
        %1609 = vmatpush1.bf16.msra.mxu0 0
        %1610 = vmatprep.mubr.bf16.mxu0 0
        %1611 = vmatmul.mubr.bf16.gmra.mrb[0].mxu0 %v1576
        %v1612 = vpop.f32.mrb[0].mxu0
        %v1613 = vadd.f32 0.0, %v1612
        %v1614 = vpop.f32.mrb[0].mxu0
        %v1615 = vpop.f32.mrb[0].mxu0
        %v1616 = vpop.f32.mrb[0].mxu0
        %1617 = vdwg.mxu0
        %v1618 = vrcp.pop %v1557
        %v1619 = vmul.f32 1.0, %v1618
        %v1620 = vmul.f32 %v1613, %v1619
        %1622 = vrot.lane.b32.xlu0 %v1491, 120
        %v1623 = vpop.permute.xlu0 %1622
        %1624 = vrot.lane.b32.xlu0 %v777, 120
        %v1625 = vpop.permute.xlu0 %1624
        %1626 = vrot.lane.b32.xlu0 %v778, 120
        %v1627 = vpop.permute.xlu0 %1626
        %1628 = vrot.lane.b32.xlu0 %v779, 120
        %v1629 = vpop.permute.xlu0 %1628
        %1630 = vrot.lane.b32.xlu0 %v780, 120
        %v1631 = vpop.permute.xlu0 %1630
        %v1633 = vsel %vm859, %v1623, 0
        %v1636 = vsel %vm859, %v1625, 0
        %v1639 = vsel %vm859, %v1627, 0
        %v1642 = vsel %vm859, %v1629, 0
        %v1645 = vsel %vm859, %v1631, 0
        %1647 = vmatprep.subr.bf16.mxu0 0
        %1648 = vmatpush1.bf16.xpose.msra.mxu0 %v1636
        %1649 = vmatprep.subr.bf16.mxu0 0
        %1650 = vmatpush1.bf16.xpose.msra.mxu0 %v1639
        %1651 = vmatprep.subr.bf16.mxu0 0
        %1652 = vmatpush1.bf16.xpose.msra.mxu0 %v1642
        %1653 = vmatprep.subr.bf16.mxu0 0
        %1654 = vmatpush1.bf16.xpose.msra.mxu0 %v1645
        %1655 = vmatprep.subr.bf16.mxu0 0
        %1656 = vmatpush1.bf16.xpose.msra.mxu0 0
        %1657 = vmatprep.subr.bf16.mxu0 0
        %1658 = vmatpush1.bf16.xpose.msra.mxu0 0
        %1659 = vmatprep.subr.bf16.mxu0 0
        %1660 = vmatpush1.bf16.xpose.msra.mxu0 0
        %1661 = vmatprep.subr.bf16.mxu0 0
        %1662 = vmatpush1.bf16.xpose.msra.mxu0 0
        %1663 = vmatprep.subr.bf16.mxu0 0
        %1664 = vmatpush1.bf16.xpose.msra.mxu0 0
        %1665 = vmatprep.subr.bf16.mxu0 0
        %1666 = vmatpush1.bf16.xpose.msra.mxu0 0
        %1667 = vmatprep.subr.bf16.mxu0 0
        %1668 = vmatpush1.bf16.xpose.msra.mxu0 0
        %1669 = vmatprep.subr.bf16.mxu0 0
        %1670 = vmatpush1.bf16.xpose.msra.mxu0 0
        %1671 = vmatprep.subr.bf16.mxu0 0
        %1672 = vmatpush1.bf16.xpose.msra.mxu0 0
        %1673 = vmatprep.subr.bf16.mxu0 0
        %1674 = vmatpush1.bf16.xpose.msra.mxu0 0
        %1675 = vmatprep.subr.bf16.mxu0 0
        %1676 = vmatpush1.bf16.xpose.msra.mxu0 0
        %1677 = vmatprep.subr.bf16.mxu0 0
        %1678 = vmatpush1.bf16.xpose.msra.mxu0 0
        %1679 = vmatprep.mubr.bf16.mxu0 0
        %1680 = vmatmul.mubr.bf16.gmra.mrb[0].mxu0 %v1633
        %v1681 = vpop.f32.mrb[0].mxu0
        %v1682 = vadd.f32 0.0, %v1681
        %v1683 = vpop.f32.mrb[0].mxu0
        %v1684 = vpop.f32.mrb[0].mxu0
        %v1685 = vpop.f32.mrb[0].mxu0
        %1686 = vdwg.mxu0
        %v1687 = vmul.f32 %v1682, 0.35355338
        %v1688 = vsel %vm1548, %v1687, -inf
        %1689 = vmax.xlane.f32.xlu0 %v1688
        %v1690 = vpop.xlane.xlu0 %1689
        %v1691 = vsub.f32 %v1687, %v1690
        %v1692 = vmul.f32 %v1691, 1.442695
        %v1693 = vpow.pop %v1692
        %v1694 = vsel %vm1548, %v1693, 0.0
        %1695 = vadd.xlane.f32.xlu0 %v1694
        %v1696 = vpop.xlane.xlu0 %1695
        %v1697 = vpack.c.bf16 %v1693, %v1693
        %1698 = vrot.lane.b32.xlu0 %v777, 88
        %v1699 = vpop.permute.xlu0 %1698
        %1700 = vrot.lane.b32.xlu0 %v778, 88
        %v1701 = vpop.permute.xlu0 %1700
        %1702 = vrot.lane.b32.xlu0 %v779, 88
        %v1703 = vpop.permute.xlu0 %1702
        %1704 = vrot.lane.b32.xlu0 %v780, 88
        %v1705 = vpop.permute.xlu0 %1704
        %v1711 = vsel %vm1548, %v1697, 0
        %1713 = vmatprep.subr.bf16.mxu0 0
        %1714 = vmatpush1.bf16.msra.mxu0 %v1699
        %1715 = vmatprep.subr.bf16.mxu0 0
        %1716 = vmatpush1.bf16.msra.mxu0 %v1701
        %1717 = vmatprep.subr.bf16.mxu0 0
        %1718 = vmatpush1.bf16.msra.mxu0 %v1703
        %1719 = vmatprep.subr.bf16.mxu0 0
        %1720 = vmatpush1.bf16.msra.mxu0 %v1705
        %1721 = vmatprep.subr.bf16.mxu0 0
        %1722 = vmatpush1.bf16.msra.mxu0 0
        %1723 = vmatprep.subr.bf16.mxu0 0
        %1724 = vmatpush1.bf16.msra.mxu0 0
        %1725 = vmatprep.subr.bf16.mxu0 0
        %1726 = vmatpush1.bf16.msra.mxu0 0
        %1727 = vmatprep.subr.bf16.mxu0 0
        %1728 = vmatpush1.bf16.msra.mxu0 0
        %1729 = vmatprep.subr.bf16.mxu0 0
        %1730 = vmatpush1.bf16.msra.mxu0 0
        %1731 = vmatprep.subr.bf16.mxu0 0
        %1732 = vmatpush1.bf16.msra.mxu0 0
        %1733 = vmatprep.subr.bf16.mxu0 0
        %1734 = vmatpush1.bf16.msra.mxu0 0
        %1735 = vmatprep.subr.bf16.mxu0 0
        %1736 = vmatpush1.bf16.msra.mxu0 0
        %1737 = vmatprep.subr.bf16.mxu0 0
        %1738 = vmatpush1.bf16.msra.mxu0 0
        %1739 = vmatprep.subr.bf16.mxu0 0
        %1740 = vmatpush1.bf16.msra.mxu0 0
        %1741 = vmatprep.subr.bf16.mxu0 0
        %1742 = vmatpush1.bf16.msra.mxu0 0
        %1743 = vmatprep.subr.bf16.mxu0 0
        %1744 = vmatpush1.bf16.msra.mxu0 0
        %1745 = vmatprep.mubr.bf16.mxu0 0
        %1746 = vmatmul.mubr.bf16.gmra.mrb[0].mxu0 %v1711
        %v1747 = vpop.f32.mrb[0].mxu0
        %v1748 = vadd.f32 0.0, %v1747
        %v1749 = vpop.f32.mrb[0].mxu0
        %v1750 = vpop.f32.mrb[0].mxu0
        %v1751 = vpop.f32.mrb[0].mxu0
        %1752 = vdwg.mxu0
        %v1753 = vrcp.pop %v1696
        %v1754 = vmul.f32 1.0, %v1753
        %v1755 = vmul.f32 %v1748, %v1754
        %1756 = vrot.lane.b32.xlu0 %v1491, 112
        %v1757 = vpop.permute.xlu0 %1756
        %1758 = vrot.lane.b32.xlu0 %v777, 112
        %v1759 = vpop.permute.xlu0 %1758
        %1760 = vrot.lane.b32.xlu0 %v778, 112
        %v1761 = vpop.permute.xlu0 %1760
        %1762 = vrot.lane.b32.xlu0 %v779, 112
        %v1763 = vpop.permute.xlu0 %1762
        %1764 = vrot.lane.b32.xlu0 %v780, 112
        %v1765 = vpop.permute.xlu0 %1764
        %v1767 = vsel %vm859, %v1757, 0
        %v1770 = vsel %vm859, %v1759, 0
        %v1773 = vsel %vm859, %v1761, 0
        %v1776 = vsel %vm859, %v1763, 0
        %v1779 = vsel %vm859, %v1765, 0
        %1781 = vmatprep.subr.bf16.mxu0 0
        %1782 = vmatpush1.bf16.xpose.msra.mxu0 %v1770
        %1783 = vmatprep.subr.bf16.mxu0 0
        %1784 = vmatpush1.bf16.xpose.msra.mxu0 %v1773
        %1785 = vmatprep.subr.bf16.mxu0 0
        %1786 = vmatpush1.bf16.xpose.msra.mxu0 %v1776
        %1787 = vmatprep.subr.bf16.mxu0 0
        %1788 = vmatpush1.bf16.xpose.msra.mxu0 %v1779
        %1789 = vmatprep.subr.bf16.mxu0 0
        %1790 = vmatpush1.bf16.xpose.msra.mxu0 0
        %1791 = vmatprep.subr.bf16.mxu0 0
        %1792 = vmatpush1.bf16.xpose.msra.mxu0 0
        %1793 = vmatprep.subr.bf16.mxu0 0
        %1794 = vmatpush1.bf16.xpose.msra.mxu0 0
        %1795 = vmatprep.subr.bf16.mxu0 0
        %1796 = vmatpush1.bf16.xpose.msra.mxu0 0
        %1797 = vmatprep.subr.bf16.mxu0 0
        %1798 = vmatpush1.bf16.xpose.msra.mxu0 0
        %1799 = vmatprep.subr.bf16.mxu0 0
        %1800 = vmatpush1.bf16.xpose.msra.mxu0 0
        %1801 = vmatprep.subr.bf16.mxu0 0
        %1802 = vmatpush1.bf16.xpose.msra.mxu0 0
        %1803 = vmatprep.subr.bf16.mxu0 0
        %1804 = vmatpush1.bf16.xpose.msra.mxu0 0
        %1805 = vmatprep.subr.bf16.mxu0 0
        %1806 = vmatpush1.bf16.xpose.msra.mxu0 0
        %1807 = vmatprep.subr.bf16.mxu0 0
        %1808 = vmatpush1.bf16.xpose.msra.mxu0 0
        %1809 = vmatprep.subr.bf16.mxu0 0
        %1810 = vmatpush1.bf16.xpose.msra.mxu0 0
        %1811 = vmatprep.subr.bf16.mxu0 0
        %1812 = vmatpush1.bf16.xpose.msra.mxu0 0
        %1813 = vmatprep.mubr.bf16.mxu0 0
        %1814 = vmatmul.mubr.bf16.gmra.mrb[0].mxu0 %v1767
        %v1815 = vpop.f32.mrb[0].mxu0
        %v1816 = vadd.f32 0.0, %v1815
        %v1817 = vpop.f32.mrb[0].mxu0
        %v1818 = vpop.f32.mrb[0].mxu0
        %v1819 = vpop.f32.mrb[0].mxu0
        %1820 = vdwg.mxu0
        %v1821 = vmul.f32 %v1816, 0.35355338
        %v1822 = vsel %vm1548, %v1821, -inf
        %1823 = vmax.xlane.f32.xlu0 %v1822
        %v1824 = vpop.xlane.xlu0 %1823
        %v1825 = vsub.f32 %v1821, %v1824
        %v1826 = vmul.f32 %v1825, 1.442695
        %v1827 = vpow.pop %v1826
        %v1828 = vsel %vm1548, %v1827, 0.0
        %1829 = vadd.xlane.f32.xlu0 %v1828
        %v1830 = vpop.xlane.xlu0 %1829
        %v1831 = vpack.c.bf16 %v1827, %v1827
        %1832 = vrot.lane.b32.xlu0 %v777, 80
        %v1833 = vpop.permute.xlu0 %1832
        %1834 = vrot.lane.b32.xlu0 %v778, 80
        %v1835 = vpop.permute.xlu0 %1834
        %1836 = vrot.lane.b32.xlu0 %v779, 80
        %v1837 = vpop.permute.xlu0 %1836
        %1838 = vrot.lane.b32.xlu0 %v780, 80
        %v1839 = vpop.permute.xlu0 %1838
        %v1845 = vsel %vm1548, %v1831, 0
        %1847 = vmatprep.subr.bf16.mxu0 0
        %1848 = vmatpush1.bf16.msra.mxu0 %v1833
        %1849 = vmatprep.subr.bf16.mxu0 0
        %1850 = vmatpush1.bf16.msra.mxu0 %v1835
        %1851 = vmatprep.subr.bf16.mxu0 0
        %1852 = vmatpush1.bf16.msra.mxu0 %v1837
        %1853 = vmatprep.subr.bf16.mxu0 0
        %1854 = vmatpush1.bf16.msra.mxu0 %v1839
        %1855 = vmatprep.subr.bf16.mxu0 0
        %1856 = vmatpush1.bf16.msra.mxu0 0
        %1857 = vmatprep.subr.bf16.mxu0 0
        %1858 = vmatpush1.bf16.msra.mxu0 0
        %1859 = vmatprep.subr.bf16.mxu0 0
        %1860 = vmatpush1.bf16.msra.mxu0 0
        %1861 = vmatprep.subr.bf16.mxu0 0
        %1862 = vmatpush1.bf16.msra.mxu0 0
        %1863 = vmatprep.subr.bf16.mxu0 0
        %1864 = vmatpush1.bf16.msra.mxu0 0
        %1865 = vmatprep.subr.bf16.mxu0 0
        %1866 = vmatpush1.bf16.msra.mxu0 0
        %1867 = vmatprep.subr.bf16.mxu0 0
        %1868 = vmatpush1.bf16.msra.mxu0 0
        %1869 = vmatprep.subr.bf16.mxu0 0
        %1870 = vmatpush1.bf16.msra.mxu0 0
        %1871 = vmatprep.subr.bf16.mxu0 0
        %1872 = vmatpush1.bf16.msra.mxu0 0
        %1873 = vmatprep.subr.bf16.mxu0 0
        %1874 = vmatpush1.bf16.msra.mxu0 0
        %1875 = vmatprep.subr.bf16.mxu0 0
        %1876 = vmatpush1.bf16.msra.mxu0 0
        %1877 = vmatprep.subr.bf16.mxu0 0
        %1878 = vmatpush1.bf16.msra.mxu0 0
        %1879 = vmatprep.mubr.bf16.mxu0 0
        %1880 = vmatmul.mubr.bf16.gmra.mrb[0].mxu0 %v1845
        %v1881 = vpop.f32.mrb[0].mxu0
        %v1882 = vadd.f32 0.0, %v1881
        %v1883 = vpop.f32.mrb[0].mxu0
        %v1884 = vpop.f32.mrb[0].mxu0
        %v1885 = vpop.f32.mrb[0].mxu0
        %1886 = vdwg.mxu0
        %v1887 = vrcp.pop %v1830
        %v1888 = vmul.f32 1.0, %v1887
        %v1889 = vmul.f32 %v1882, %v1888
        %1890 = vrot.lane.b32.xlu0 %v1491, 104
        %v1891 = vpop.permute.xlu0 %1890
        %1892 = vrot.lane.b32.xlu0 %v777, 104
        %v1893 = vpop.permute.xlu0 %1892
        %1894 = vrot.lane.b32.xlu0 %v778, 104
        %v1895 = vpop.permute.xlu0 %1894
        %1896 = vrot.lane.b32.xlu0 %v779, 104
        %v1897 = vpop.permute.xlu0 %1896
        %1898 = vrot.lane.b32.xlu0 %v780, 104
        %v1899 = vpop.permute.xlu0 %1898
        %v1901 = vsel %vm859, %v1891, 0
        %v1904 = vsel %vm859, %v1893, 0
        %v1907 = vsel %vm859, %v1895, 0
        %v1910 = vsel %vm859, %v1897, 0
        %v1913 = vsel %vm859, %v1899, 0
        %1915 = vmatprep.subr.bf16.mxu0 0
        %1916 = vmatpush1.bf16.xpose.msra.mxu0 %v1904
        %1917 = vmatprep.subr.bf16.mxu0 0
        %1918 = vmatpush1.bf16.xpose.msra.mxu0 %v1907
        %1919 = vmatprep.subr.bf16.mxu0 0
        %1920 = vmatpush1.bf16.xpose.msra.mxu0 %v1910
        %1921 = vmatprep.subr.bf16.mxu0 0
        %1922 = vmatpush1.bf16.xpose.msra.mxu0 %v1913
        %1923 = vmatprep.subr.bf16.mxu0 0
        %1924 = vmatpush1.bf16.xpose.msra.mxu0 0
        %1925 = vmatprep.subr.bf16.mxu0 0
        %1926 = vmatpush1.bf16.xpose.msra.mxu0 0
        %1927 = vmatprep.subr.bf16.mxu0 0
        %1928 = vmatpush1.bf16.xpose.msra.mxu0 0
        %1929 = vmatprep.subr.bf16.mxu0 0
        %1930 = vmatpush1.bf16.xpose.msra.mxu0 0
        %1931 = vmatprep.subr.bf16.mxu0 0
        %1932 = vmatpush1.bf16.xpose.msra.mxu0 0
        %1933 = vmatprep.subr.bf16.mxu0 0
        %1934 = vmatpush1.bf16.xpose.msra.mxu0 0
        %1935 = vmatprep.subr.bf16.mxu0 0
        %1936 = vmatpush1.bf16.xpose.msra.mxu0 0
        %1937 = vmatprep.subr.bf16.mxu0 0
        %1938 = vmatpush1.bf16.xpose.msra.mxu0 0
        %1939 = vmatprep.subr.bf16.mxu0 0
        %1940 = vmatpush1.bf16.xpose.msra.mxu0 0
        %1941 = vmatprep.subr.bf16.mxu0 0
        %1942 = vmatpush1.bf16.xpose.msra.mxu0 0
        %1943 = vmatprep.subr.bf16.mxu0 0
        %1944 = vmatpush1.bf16.xpose.msra.mxu0 0
        %1945 = vmatprep.subr.bf16.mxu0 0
        %1946 = vmatpush1.bf16.xpose.msra.mxu0 0
        %1947 = vmatprep.mubr.bf16.mxu0 0
        %1948 = vmatmul.mubr.bf16.gmra.mrb[0].mxu0 %v1901
        %v1949 = vpop.f32.mrb[0].mxu0
        %v1950 = vadd.f32 0.0, %v1949
        %v1951 = vpop.f32.mrb[0].mxu0
        %v1952 = vpop.f32.mrb[0].mxu0
        %v1953 = vpop.f32.mrb[0].mxu0
        %1954 = vdwg.mxu0
        %v1955 = vmul.f32 %v1950, 0.35355338
        %v1956 = vsel %vm1548, %v1955, -inf
        %1957 = vmax.xlane.f32.xlu0 %v1956
        %v1958 = vpop.xlane.xlu0 %1957
        %v1959 = vsub.f32 %v1955, %v1958
        %v1960 = vmul.f32 %v1959, 1.442695
        %v1961 = vpow.pop %v1960
        %v1962 = vsel %vm1548, %v1961, 0.0
        %1963 = vadd.xlane.f32.xlu0 %v1962
        %v1964 = vpop.xlane.xlu0 %1963
        %v1965 = vpack.c.bf16 %v1961, %v1961
        %1966 = vrot.lane.b32.xlu0 %v777, 72
        %v1967 = vpop.permute.xlu0 %1966
        %1968 = vrot.lane.b32.xlu0 %v778, 72
        %v1969 = vpop.permute.xlu0 %1968
        %1970 = vrot.lane.b32.xlu0 %v779, 72
        %v1971 = vpop.permute.xlu0 %1970
        %1972 = vrot.lane.b32.xlu0 %v780, 72
        %v1973 = vpop.permute.xlu0 %1972
        %v1979 = vsel %vm1548, %v1965, 0
        %1981 = vmatprep.subr.bf16.mxu0 0
        %1982 = vmatpush1.bf16.msra.mxu0 %v1967
        %1983 = vmatprep.subr.bf16.mxu0 0
        %1984 = vmatpush1.bf16.msra.mxu0 %v1969
        %1985 = vmatprep.subr.bf16.mxu0 0
        %1986 = vmatpush1.bf16.msra.mxu0 %v1971
        %1987 = vmatprep.subr.bf16.mxu0 0
        %1988 = vmatpush1.bf16.msra.mxu0 %v1973
        %1989 = vmatprep.subr.bf16.mxu0 0
        %1990 = vmatpush1.bf16.msra.mxu0 0
        %1991 = vmatprep.subr.bf16.mxu0 0
        %1992 = vmatpush1.bf16.msra.mxu0 0
        %1993 = vmatprep.subr.bf16.mxu0 0
        %1994 = vmatpush1.bf16.msra.mxu0 0
        %1995 = vmatprep.subr.bf16.mxu0 0
        %1996 = vmatpush1.bf16.msra.mxu0 0
        %1997 = vmatprep.subr.bf16.mxu0 0
        %1998 = vmatpush1.bf16.msra.mxu0 0
        %1999 = vmatprep.subr.bf16.mxu0 0
        %2000 = vmatpush1.bf16.msra.mxu0 0
        %2001 = vmatprep.subr.bf16.mxu0 0
        %2002 = vmatpush1.bf16.msra.mxu0 0
        %2003 = vmatprep.subr.bf16.mxu0 0
        %2004 = vmatpush1.bf16.msra.mxu0 0
        %2005 = vmatprep.subr.bf16.mxu0 0
        %2006 = vmatpush1.bf16.msra.mxu0 0
        %2007 = vmatprep.subr.bf16.mxu0 0
        %2008 = vmatpush1.bf16.msra.mxu0 0
        %2009 = vmatprep.subr.bf16.mxu0 0
        %2010 = vmatpush1.bf16.msra.mxu0 0
        %2011 = vmatprep.subr.bf16.mxu0 0
        %2012 = vmatpush1.bf16.msra.mxu0 0
        %2013 = vmatprep.mubr.bf16.mxu0 0
        %2014 = vmatmul.mubr.bf16.gmra.mrb[0].mxu0 %v1979
        %v2015 = vpop.f32.mrb[0].mxu0
        %v2016 = vadd.f32 0.0, %v2015
        %v2017 = vpop.f32.mrb[0].mxu0
        %v2018 = vpop.f32.mrb[0].mxu0
        %v2019 = vpop.f32.mrb[0].mxu0
        %2020 = vdwg.mxu0
        %v2021 = vrcp.pop %v1964
        %v2022 = vmul.f32 1.0, %v2021
        %v2023 = vmul.f32 %v2016, %v2022
        %2025 = vrot.lane.b32.xlu0 %v1755, 8
        %v2026 = vpop.permute.xlu0 %2025
        %2029 = vrot.lane.b32.xlu0 %v1889, 16
        %v2030 = vpop.permute.xlu0 %2029
        %2033 = vrot.lane.b32.xlu0 %v2023, 24
        %v2034 = vpop.permute.xlu0 %2033
        %v2036 = vsel %vm859, %v1620, %v2026
        %v2037 = vsel %vm1322, %v2036, %v2030
        %v2038 = vsel %vm1324, %v2037, %v2034
        %v2039 = vpack.c.bf16 %v2038, %v2038
        %v2040 = vld [vmem:[%s11] sm:$0xf]
        %v2041 = vld [vmem:[%s11 + $0x4] sm:$0xf]
        %v2042 = vld [vmem:[%s11 + $0x8] sm:$0xf]
        %v2043 = vld [vmem:[%s11 + $0xc] sm:$0xf]
        %v2044 = vld [vmem:[%s12] sm:$0x1]
        %v2046 = vlaneseq
        %v2047 = vshrl.u32 %v2046, 7
        %v2048 = vsub.s32 0, %v2047
        %v2049 = vrot.slane %v2044, %v2048
        %v2055 = vunpack.c.l.b16 %v2040
        %v2056 = vunpack.c.l.b16 %v2041
        %v2057 = vunpack.c.l.b16 %v2042
        %v2058 = vunpack.c.l.b16 %v2043
        %v2059 = vpack.c.b16 %v2056, %v2055
        %v2060 = vpack.c.b16 %v2058, %v2057
        %v2064 = vsel %vm699, %v2039, 0
        %2066 = vmatprep.subr.bf16.mxu0 0
        %2067 = vmatpush1.bf16.msra.mxu0 %v2059
        %2068 = vmatprep.subr.bf16.mxu0 0
        %2069 = vmatpush1.bf16.msra.mxu0 %v2060
        %2070 = vmatprep.subr.bf16.mxu0 0
        %2071 = vmatpush1.bf16.msra.mxu0 0
        %2072 = vmatprep.subr.bf16.mxu0 0
        %2073 = vmatpush1.bf16.msra.mxu0 0
        %2074 = vmatprep.subr.bf16.mxu0 0
        %2075 = vmatpush1.bf16.msra.mxu0 0
        %2076 = vmatprep.subr.bf16.mxu0 0
        %2077 = vmatpush1.bf16.msra.mxu0 0
        %2078 = vmatprep.subr.bf16.mxu0 0
        %2079 = vmatpush1.bf16.msra.mxu0 0
        %2080 = vmatprep.subr.bf16.mxu0 0
        %2081 = vmatpush1.bf16.msra.mxu0 0
        %2082 = vmatprep.subr.bf16.mxu0 0
        %2083 = vmatpush1.bf16.msra.mxu0 0
        %2084 = vmatprep.subr.bf16.mxu0 0
        %2085 = vmatpush1.bf16.msra.mxu0 0
        %2086 = vmatprep.subr.bf16.mxu0 0
        %2087 = vmatpush1.bf16.msra.mxu0 0
        %2088 = vmatprep.subr.bf16.mxu0 0
        %2089 = vmatpush1.bf16.msra.mxu0 0
        %2090 = vmatprep.subr.bf16.mxu0 0
        %2091 = vmatpush1.bf16.msra.mxu0 0
        %2092 = vmatprep.subr.bf16.mxu0 0
        %2093 = vmatpush1.bf16.msra.mxu0 0
        %2094 = vmatprep.subr.bf16.mxu0 0
        %2095 = vmatpush1.bf16.msra.mxu0 0
        %2096 = vmatprep.subr.bf16.mxu0 0
        %2097 = vmatpush1.bf16.msra.mxu0 0
        %2098 = vmatprep.mubr.bf16.mxu0 0
        %2099 = vmatmul.mubr.bf16.gmra.mrb[0].mxu0 %v2064
        %v2100 = vpop.f32.mrb[0].mxu0
        %v2101 = vadd.f32 %v2049, %v2100
        %v2102 = vpop.f32.mrb[0].mxu0
        %v2103 = vpop.f32.mrb[0].mxu0
        %v2104 = vpop.f32.mrb[0].mxu0
        %2105 = vdwg.mxu0
        %v2106 = vadd.f32 %v1423, %v2101
        %v2107 = vsel %vm699, %v2106, 0.0
        %2108 = vadd.xlane.f32.xlu0 %v2107
        %v2109 = vpop.xlane.xlu0 %2108
        %v2110 = vmul.f32 %v2109, %v1397
        %v2111 = vsub.f32 %v2106, %v2110
        %v2112 = vmul.f32 %v2111, %v2111
        %v2113 = vsel %vm699, %v2112, 0.0
        %2114 = vadd.xlane.f32.xlu0 %v2113
        %v2115 = vpop.xlane.xlu0 %2114
        %v2116 = vmul.f32 %v2115, %v1397
        %v2117 = vadd.f32 %v2116, 1e-05
        %v2118 = vrsqrt.pop %v2117
        %v2119 = vmul.f32 %v2111, %v2118
        %s2120 = scalar_lea.vmem %s17, 1
        %v2121 = vld [vmem:[%s2120] sm:$0x1]
        %v2123 = vlaneseq
        %v2124 = vshrl.u32 %v2123, 7
        %v2125 = vsub.s32 0, %v2124
        %v2126 = vrot.slane %v2121, %v2125
        %v2128 = vmul.f32 %v2119, %v2126
        %s2129 = scalar_lea.vmem %s18, 1
        %v2130 = vld [vmem:[%s2129] sm:$0x1]
        %v2132 = vlaneseq
        %v2133 = vshrl.u32 %v2132, 7
        %v2134 = vsub.s32 0, %v2133
        %v2135 = vrot.slane %v2130, %v2134
        %v2137 = vadd.f32 %v2128, %v2135
        %v2138 = vpack.c.bf16 %v2137, %v2137
        %v2139 = vld [vmem:[%s13] sm:$0xf]
        %v2140 = vld [vmem:[%s13 + $0x4] sm:$0xf]
        %v2141 = vld [vmem:[%s13 + $0x8] sm:$0xf]
        %v2142 = vld [vmem:[%s13 + $0xc] sm:$0xf]
        %v2143 = vld [vmem:[%s14] sm:$0x1]
        %v2145 = vlaneseq
        %v2146 = vshrl.u32 %v2145, 7
        %v2147 = vsub.s32 0, %v2146
        %v2148 = vrot.slane %v2143, %v2147
        %v2154 = vunpack.c.l.b16 %v2139
        %v2155 = vunpack.c.l.b16 %v2140
        %v2156 = vunpack.c.l.b16 %v2141
        %v2157 = vunpack.c.l.b16 %v2142
        %v2158 = vpack.c.b16 %v2155, %v2154
        %v2159 = vpack.c.b16 %v2157, %v2156
        %v2163 = vsel %vm699, %v2138, 0
        %2165 = vmatprep.subr.bf16.mxu0 0
        %2166 = vmatpush1.bf16.msra.mxu0 %v2158
        %2167 = vmatprep.subr.bf16.mxu0 0
        %2168 = vmatpush1.bf16.msra.mxu0 %v2159
        %2169 = vmatprep.subr.bf16.mxu0 0
        %2170 = vmatpush1.bf16.msra.mxu0 0
        %2171 = vmatprep.subr.bf16.mxu0 0
        %2172 = vmatpush1.bf16.msra.mxu0 0
        %2173 = vmatprep.subr.bf16.mxu0 0
        %2174 = vmatpush1.bf16.msra.mxu0 0
        %2175 = vmatprep.subr.bf16.mxu0 0
        %2176 = vmatpush1.bf16.msra.mxu0 0
        %2177 = vmatprep.subr.bf16.mxu0 0
        %2178 = vmatpush1.bf16.msra.mxu0 0
        %2179 = vmatprep.subr.bf16.mxu0 0
        %2180 = vmatpush1.bf16.msra.mxu0 0
        %2181 = vmatprep.subr.bf16.mxu0 0
        %2182 = vmatpush1.bf16.msra.mxu0 0
        %2183 = vmatprep.subr.bf16.mxu0 0
        %2184 = vmatpush1.bf16.msra.mxu0 0
        %2185 = vmatprep.subr.bf16.mxu0 0
        %2186 = vmatpush1.bf16.msra.mxu0 0
        %2187 = vmatprep.subr.bf16.mxu0 0
        %2188 = vmatpush1.bf16.msra.mxu0 0
        %2189 = vmatprep.subr.bf16.mxu0 0
        %2190 = vmatpush1.bf16.msra.mxu0 0
        %2191 = vmatprep.subr.bf16.mxu0 0
        %2192 = vmatpush1.bf16.msra.mxu0 0
        %2193 = vmatprep.subr.bf16.mxu0 0
        %2194 = vmatpush1.bf16.msra.mxu0 0
        %2195 = vmatprep.subr.bf16.mxu0 0
        %2196 = vmatpush1.bf16.msra.mxu0 0
        %2197 = vmatprep.mubr.bf16.mxu0 0
        %2198 = vmatmul.mubr.bf16.gmra.mrb[0].mxu0 %v2163
        %v2199 = vpop.f32.mrb[0].mxu0
        %v2200 = vadd.f32 %v2148, %v2199
        %v2201 = vpop.f32.mrb[0].mxu0
        %v2202 = vpop.f32.mrb[0].mxu0
        %v2203 = vpop.f32.mrb[0].mxu0
        %2204 = vdwg.mxu0
        %v2205 = vmax.f32 %v2200, 0.0
        %v2206 = vpack.c.bf16 %v2205, %v2205
        %v2207 = vld [vmem:[%s15] sm:$0xf]
        %v2208 = vld [vmem:[%s15 + $0x4] sm:$0xf]
        %v2209 = vld [vmem:[%s15 + $0x8] sm:$0xf]
        %v2210 = vld [vmem:[%s15 + $0xc] sm:$0xf]
        %v2211 = vld [vmem:[%s15 + $0x10] sm:$0xf]
        %v2212 = vld [vmem:[%s15 + $0x14] sm:$0xf]
        %v2213 = vld [vmem:[%s15 + $0x18] sm:$0xf]
        %v2214 = vld [vmem:[%s15 + $0x1c] sm:$0xf]
        %v2215 = vld [vmem:[%s16] sm:$0x1]
        %v2217 = vlaneseq
        %v2218 = vshrl.u32 %v2217, 7
        %v2219 = vsub.s32 0, %v2218
        %v2220 = vrot.slane %v2215, %v2219
        %v2230 = vunpack.c.l.b16 %v2207
        %v2231 = vunpack.c.l.b16 %v2208
        %v2232 = vunpack.c.l.b16 %v2209
        %v2233 = vunpack.c.l.b16 %v2210
        %v2234 = vunpack.c.l.b16 %v2211
        %v2235 = vunpack.c.l.b16 %v2212
        %v2236 = vunpack.c.l.b16 %v2213
        %v2237 = vunpack.c.l.b16 %v2214
        %v2238 = vpack.c.b16 %v2231, %v2230
        %v2239 = vpack.c.b16 %v2233, %v2232
        %v2240 = vpack.c.b16 %v2235, %v2234
        %v2241 = vpack.c.b16 %v2237, %v2236
        %v2247 = vsel %vm1548, %v2206, 0
        %2249 = vmatprep.subr.bf16.mxu0 0
        %2250 = vmatpush1.bf16.msra.mxu0 %v2238
        %2251 = vmatprep.subr.bf16.mxu0 0
        %2252 = vmatpush1.bf16.msra.mxu0 %v2239
        %2253 = vmatprep.subr.bf16.mxu0 0
        %2254 = vmatpush1.bf16.msra.mxu0 %v2240
        %2255 = vmatprep.subr.bf16.mxu0 0
        %2256 = vmatpush1.bf16.msra.mxu0 %v2241
        %2257 = vmatprep.subr.bf16.mxu0 0
        %2258 = vmatpush1.bf16.msra.mxu0 0
        %2259 = vmatprep.subr.bf16.mxu0 0
        %2260 = vmatpush1.bf16.msra.mxu0 0
        %2261 = vmatprep.subr.bf16.mxu0 0
        %2262 = vmatpush1.bf16.msra.mxu0 0
        %2263 = vmatprep.subr.bf16.mxu0 0
        %2264 = vmatpush1.bf16.msra.mxu0 0
        %2265 = vmatprep.subr.bf16.mxu0 0
        %2266 = vmatpush1.bf16.msra.mxu0 0
        %2267 = vmatprep.subr.bf16.mxu0 0
        %2268 = vmatpush1.bf16.msra.mxu0 0
        %2269 = vmatprep.subr.bf16.mxu0 0
        %2270 = vmatpush1.bf16.msra.mxu0 0
        %2271 = vmatprep.subr.bf16.mxu0 0
        %2272 = vmatpush1.bf16.msra.mxu0 0
        %2273 = vmatprep.subr.bf16.mxu0 0
        %2274 = vmatpush1.bf16.msra.mxu0 0
        %2275 = vmatprep.subr.bf16.mxu0 0
        %2276 = vmatpush1.bf16.msra.mxu0 0
        %2277 = vmatprep.subr.bf16.mxu0 0
        %2278 = vmatpush1.bf16.msra.mxu0 0
        %2279 = vmatprep.subr.bf16.mxu0 0
        %2280 = vmatpush1.bf16.msra.mxu0 0
        %2281 = vmatprep.mubr.bf16.mxu0 0
        %2282 = vmatmul.mubr.bf16.gmra.mrb[0].mxu0 %v2247
        %v2283 = vpop.f32.mrb[0].mxu0
        %v2284 = vadd.f32 %v2220, %v2283
        %v2285 = vpop.f32.mrb[0].mxu0
        %v2286 = vpop.f32.mrb[0].mxu0
        %v2287 = vpop.f32.mrb[0].mxu0
        %2288 = vdwg.mxu0
        %v2289 = vadd.f32 %v2137, %v2284
        %v2290 = vsel %vm699, %v2289, 0.0
        %2291 = vadd.xlane.f32.xlu0 %v2290
        %v2292 = vpop.xlane.xlu0 %2291
        %v2293 = vmul.f32 %v2292, %v1397
        %v2294 = vsub.f32 %v2289, %v2293
        %v2295 = vmul.f32 %v2294, %v2294
        %v2296 = vsel %vm699, %v2295, 0.0
        %2297 = vadd.xlane.f32.xlu0 %v2296
        %v2298 = vpop.xlane.xlu0 %2297
        %v2299 = vmul.f32 %v2298, %v1397
        %v2300 = vadd.f32 %v2299, 1e-05
        %v2301 = vrsqrt.pop %v2300
        %v2302 = vmul.f32 %v2294, %v2301
        %s2303 = scalar_lea.vmem %s17, 2
        %v2304 = vld [vmem:[%s2303] sm:$0x1]
        %v2306 = vlaneseq
        %v2307 = vshrl.u32 %v2306, 7
        %v2308 = vsub.s32 0, %v2307
        %v2309 = vrot.slane %v2304, %v2308
        %v2311 = vmul.f32 %v2302, %v2309
        %s2312 = scalar_lea.vmem %s18, 2
        %v2313 = vld [vmem:[%s2312] sm:$0x1]
        %v2315 = vlaneseq
        %v2316 = vshrl.u32 %v2315, 7
        %v2317 = vsub.s32 0, %v2316
        %v2318 = vrot.slane %v2313, %v2317
        %v2320 = vadd.f32 %v2311, %v2318
      $region101: #{light_decoder_forward.4} parent=95 // loop_footer
        %s786 = sadd.s32 1, %s782
      $region102: #{light_decoder_forward.4} parent=95 // loop_footer_branch
        %781 = sbr.rel target = $region98
      $region103: #{light_decoder_forward.4} parent=95 // loop_exit
        _
      %v2321 = vpack.c.bf16 %v787, %v787
      %vm2322 = vcmask 257024
      %2323 = vst.msk [vmem:[%s631] sm:$0xf] %vm2322, %v2321
      %p2324 = scmp.lt.s32.totalorder %s30, 1
      %s2325 = scalar_select %p2324, %s30, 1
      %s2326 = smul.addr %s2325, 4
      %s2327 = scalar_lea.vmem %s19, %s2326
      // Predicated region
      $region104: #{light_decoder_forward.4} parent=95 // pred_check
        %p2328 = pneg %p462
      $region105: #{light_decoder_forward.4} parent=95 // pred_check_branch
        %2330 = sbr.rel (%p2328) target = $region107
      $region106: #{light_decoder_forward.4} parent=95 // pred_region
        _
      $region107: #{light_decoder_forward.4} parent=95 // pred_fallthru
        _
    $region96: #{light_decoder_forward.4} parent=5 // pred_fallthru
      _
    %p2331 = scmp.le.s32.totalorder 2, %s25
    // Predicated region
    $region108: #{light_decoder_forward.4} parent=5 // pred_check
      %p2332 = pneg %p2331
    $region109: #{light_decoder_forward.4} parent=5 // pred_check_branch
      %2334 = sbr.rel (%p2332) target = $region111
    $region110: #{light_decoder_forward.4} parent=5 // pred_region
      %s2335 = ssub.s32 %s25, 2
      // Predicated region
      $region112: #{light_decoder_forward.4} parent=110 // pred_check
        %p2336 = pneg %p468
      $region113: #{light_decoder_forward.4} parent=110 // pred_check_branch
        %2338 = sbr.rel (%p2336) target = $region115
      $region114: #{light_decoder_forward.4} parent=110 // pred_region
        %p2339 = scmp.lt.s32.totalorder %s31, 1
        %s2340 = scalar_select %p2339, %s31, 1
        %s2341 = smul.addr %s2340, 4
        %s2342 = scalar_lea.vmem %s19, %s2341
      $region115: #{light_decoder_forward.4} parent=110 // pred_fallthru
        _
    $region111: #{light_decoder_forward.4} parent=5 // pred_fallthru
      _
  $region6: #{light_decoder_forward.4} parent=0 // loop_footer
    %s29 = sadd.s32 1, %s25
  $region7: #{light_decoder_forward.4} parent=0 // loop_footer_branch
    %24 = sbr.rel target = $region3
  $region8: #{light_decoder_forward.4} parent=0 // loop_exit
    _

</llo_original>
